<compile_context>
chip_gen: v6e
topology: v6e:2x2x1
jax: 0.10.0
libtpu: 0.0.40
codegen_flags: <defaults>
</compile_context>

<pallas_src>
import math
from functools import partial

import jax
import jax.numpy as jnp
from jax import lax
from jax.experimental import pallas as pl
from jax.experimental.pallas import tpu as pltpu


# ----------------------------- shared helpers ------------------------------

def _layer_norm(v, w, b, eps=1e-5):
    mu = jnp.mean(v, axis=-1, keepdims=True)
    var = jnp.mean(jnp.square(v - mu), axis=-1, keepdims=True)
    return (v - mu) * lax.rsqrt(var + eps) * w + b


def _gelu(x):
    # TODO(synk): PyTorch nn.GELU() defaults to the exact erf formulation;
    # using the tanh approximation (max deviation ~1e-3) since erf lowering
    # in-kernel is not guaranteed on all Mosaic versions.
    c = math.sqrt(2.0 / math.pi)
    return 0.5 * x * (1.0 + jnp.tanh(c * (x + 0.044715 * x * x * x)))


def _bdot(a_f32, w_bf16):
    """f32 activation -> bf16 MXU operands, f32 accumulation."""
    return jnp.dot(a_f32.astype(jnp.bfloat16), w_bf16,
                   preferred_element_type=jnp.float32)


# ------------------------------ fused kernel --------------------------------

def gpt_block_kernel(n_layer, n_head, b_blk,
                     x_ref, pos_ref, tokw_ref, tokb_ref,
                     ln1w_ref, ln1b_ref, wqkv_ref, bqkv_ref, wo_ref, bo_ref,
                     ln2w_ref, ln2b_ref, w1_ref, b1_ref, w2_ref, b2_ref,
                     lnfw_ref, lnfb_ref, headw_ref,
                     o_ref, x_scr):
    """Grid = (batch_blocks, n_layer).  One invocation runs one transformer
    layer for B_BLK batch elements; the activation stream lives in x_scr
    (f32 VMEM) across the layer axis.  Per-layer weights arrive streamed
    (double-buffered) through their layer-indexed BlockSpecs."""
    l = pl.program_id(1)
    T = x_ref.shape[1]
    D = x_ref.shape[2]
    C = tokw_ref.shape[1]
    hd = C // n_head
    M = b_blk * T
    scale = 1.0 / math.sqrt(hd)

    # ---- layer 0: token embedding + positional embedding (dropout=identity) --
    @pl.when(l == 0)
    def _():
        xin = x_ref[...].reshape(M, D)                              # (M, D)
        emb = _bdot(xin, tokw_ref[...]) + tokb_ref[...]             # (M, C) f32
        emb = emb.reshape(b_blk, T, C) + pos_ref[...][None]
        x_scr[...] = emb.reshape(M, C)

    # Causal additive mask: finite (-1e30), so no -inf - (-inf) NaN risk.
    row = lax.broadcasted_iota(jnp.int32, (T, T), 0)
    col = lax.broadcasted_iota(jnp.int32, (T, T), 1)
    mask_bias = jnp.where(row >= col, 0.0, -1e30).astype(jnp.float32)

    x = x_scr[...]                                                  # (M, C) f32

    # ---- causal self-attention (attn/resid dropouts = identity) ----
    h = _layer_norm(x, ln1w_ref[...], ln1b_ref[...])
    qkv = _bdot(h, wqkv_ref[...]) + bqkv_ref[...]                   # (M, 3C) f32
    q3 = qkv[:, :C].reshape(b_blk, T, C)
    k3 = qkv[:, C:2 * C].reshape(b_blk, T, C)
    v3 = qkv[:, 2 * C:].reshape(b_blk, T, C).astype(jnp.bfloat16)
    # Per-head loop, but every matmul is batched over B_BLK; output projection
    # is one full (M,C)@(C,C) matmul after the concat (no K=hd accumulation).
    heads = []
    for hh in range(n_head):
        sl = slice(hh * hd, (hh + 1) * hd)
        att = jnp.einsum('bqd,bkd->bqk',
                         q3[:, :, sl].astype(jnp.bfloat16),
                         k3[:, :, sl].astype(jnp.bfloat16),
                         preferred_element_type=jnp.float32)        # (b, T, T)
        att = att * scale + mask_bias[None]
        att = att - jnp.max(att, axis=-1, keepdims=True)
        p = jnp.exp(att)
        p = p * pl.reciprocal(jnp.sum(p, axis=-1, keepdims=True), approx=True)
        heads.append(jnp.einsum('bqk,bkd->bqd',
                                p.astype(jnp.bfloat16), v3[:, :, sl],
                                preferred_element_type=jnp.float32))
    y = jnp.concatenate(heads, axis=-1).reshape(M, C)               # (M, C) f32
    x = x + _bdot(y, wo_ref[...]) + bo_ref[...]

    # ---- MLP ----
    h2 = _layer_norm(x, ln2w_ref[...], ln2b_ref[...])
    m = _gelu(_bdot(h2, w1_ref[...]) + b1_ref[...])
    x = x + _bdot(m, w2_ref[...]) + b2_ref[...]

    x_scr[...] = x

    # ---- last layer: final LayerNorm + head (lane-padded, no bias) ----
    @pl.when(l == n_layer - 1)
    def _():
        a_pad = headw_ref.shape[1]
        hf = _layer_norm(x, lnfw_ref[...], lnfb_ref[...])
        out = _bdot(hf, headw_ref[...])                             # (M, A_pad)
        o_ref[...] = out.reshape(b_blk, T, a_pad).astype(o_ref.dtype)


# ------------------------- parameter construction --------------------------

def init_gpt_params(key, obs_size, n_embd, n_head, n_layer, block_size,
                    action_size):
    """Matches GPT._init_weights: Linear weight ~ N(0, 0.02), bias 0,
    LayerNorm (1, 0), pos_emb zeros.  Linear weights are stored pre-transposed
    (in, out), stacked over layers on a leading axis, and cast to bf16
    (MXU-native).  Biases / LN params stay f32."""
    std = 0.02
    k_tok, k_head, k_qkv, k_o, k_1, k_2 = jax.random.split(key, 6)

    def lin(k, *shape):
        return (std * jax.random.normal(k, shape, jnp.float32)).astype(
            jnp.bfloat16)

    C = n_embd
    return {
        'tok_w': lin(k_tok, obs_size, C),
        'tok_b': jnp.zeros((1, C), jnp.float32),
        'pos_emb': jnp.zeros((1, block_size, C), jnp.float32),
        'ln1_w': jnp.ones((n_layer, 1, C), jnp.float32),
        'ln1_b': jnp.zeros((n_layer, 1, C), jnp.float32),
        'wqkv': lin(k_qkv, n_layer, C, 3 * C),          # [Wq | Wk | Wv]
        'bqkv': jnp.zeros((n_layer, 1, 3 * C), jnp.float32),
        'wo': lin(k_o, n_layer, C, C),
        'bo': jnp.zeros((n_layer, 1, C), jnp.float32),
        'ln2_w': jnp.ones((n_layer, 1, C), jnp.float32),
        'ln2_b': jnp.zeros((n_layer, 1, C), jnp.float32),
        'w1': lin(k_1, n_layer, C, 4 * C),
        'b1': jnp.zeros((n_layer, 1, 4 * C), jnp.float32),
        'w2': lin(k_2, n_layer, 4 * C, C),
        'b2': jnp.zeros((n_layer, 1, C), jnp.float32),
        'lnf_w': jnp.ones((1, C), jnp.float32),
        'lnf_b': jnp.zeros((1, C), jnp.float32),
        'head_w': lin(k_head, C, action_size),          # head has no bias
    }


# ------------------------------ forward pass --------------------------------

def gpt_forward(params, idx, *, n_head, block_size):
    """Pallas implementation of GPT.forward (eval mode, dropouts = identity)."""
    added_dim = False
    if idx.ndim == 2:
        idx = idx[:, None, :]
        added_dim = True
    b, t, d = idx.shape
    assert t <= block_size, 'Cannot forward, model block size is exhausted.'

    C = params['tok_w'].shape[1]
    A = params['head_w'].shape[1]
    n_layer = params['wqkv'].shape[0]
    assert C % n_head == 0

    # Lane-dense head: pad output features to a multiple of 128.
    A_pad = ((A + 127) // 128) * 128
    head_w = params['head_w']
    if A_pad != A:
        head_w = jnp.pad(head_w, ((0, 0), (0, A_pad - A)))

    pos = params['pos_emb'][0, :t, :].astype(jnp.float32)           # (t, C)

    # Batch blocking: target ~256 MXU rows per grid step; keep b_blk a divisor
    # of b so no partial blocks are needed.
    target = max(1, 256 // max(t, 1))
    b_blk = 1
    for cand in range(1, min(b, target) + 1):
        if b % cand == 0:
            b_blk = cand
    nb = b // b_blk

    per_layer = [params['ln1_w'], params['ln1_b'], params['wqkv'],
                 params['bqkv'], params['wo'], params['bo'],
                 params['ln2_w'], params['ln2_b'], params['w1'],
                 params['b1'], params['w2'], params['b2']]
    resident = [params['lnf_w'], params['lnf_b'], head_w]

    def const_spec(arr):
        # Whole (small) array, constant block index -> fetched once, stays
        # resident across grid steps.
        nd = arr.ndim
        return pl.BlockSpec(arr.shape, lambda i, l, _nd=nd: (0,) * _nd)

    def layer_spec(arr):
        # One layer's slice per step along the "arbitrary" layer axis; Pallas
        # double-buffers so layer l+1's DMA overlaps layer-l compute.
        nd = arr.ndim
        return pl.BlockSpec((None,) + tuple(arr.shape[1:]),
                            lambda i, l, _nd=nd: (l,) + (0,) * (_nd - 1))

    in_specs = ([pl.BlockSpec((b_blk, t, d), lambda i, l: (i, 0, 0)),
                 const_spec(pos),
                 const_spec(params['tok_w']), const_spec(params['tok_b'])]
                + [layer_spec(w) for w in per_layer]
                + [const_spec(w) for w in resident])
    out_specs = pl.BlockSpec((b_blk, t, A_pad), lambda i, l: (i, 0, 0))

    # vmem_limit computed from actual buffer sizes (double-buffered inputs +
    # output + scratch + temporaries headroom), capped by device VMEM.
    est = 0
    est += 2 * b_blk * t * d * idx.dtype.itemsize
    est += 2 * b_blk * t * A_pad * 4
    est += 2 * sum(math.prod(w.shape[1:]) * w.dtype.itemsize for w in per_layer)
    est += 2 * sum(int(w.size) * w.dtype.itemsize
                   for w in [pos, params['tok_w'], params['tok_b']] + resident)
    est += b_blk * t * C * 4                       # activation scratch
    est += 8 * b_blk * t * 4 * C * 4               # in-kernel temporaries
    try:
        cap = pltpu.get_tpu_info().vmem_capacity_bytes
    except Exception:
        cap = 64 * 1024 * 1024                     # conservative (v7x per-TC)
    vmem_limit = int(min(0.9 * cap, max(32 * 1024 * 1024, 2 * est)))

    out = pl.pallas_call(
        partial(gpt_block_kernel, n_layer, n_head, b_blk),
        out_shape=jax.ShapeDtypeStruct((b, t, A_pad), jnp.float32),
        grid=(nb, n_layer),                        # batch outer, layers inner
        in_specs=in_specs,
        out_specs=out_specs,
        scratch_shapes=[pltpu.VMEM((b_blk * t, C), jnp.float32)],
        compiler_params=pltpu.CompilerParams(
            dimension_semantics=("parallel", "arbitrary"),
            vmem_limit_bytes=vmem_limit),
    )(idx, pos, params['tok_w'], params['tok_b'], *per_layer,
      params['lnf_w'], params['lnf_b'], head_w)

    out = out[:, :, :A]                            # drop lane padding
    if added_dim:
        out = out[:, 0, :]
    return out


# --------------------------- pure-JAX reference -----------------------------

def gpt_forward_ref(params, idx, *, n_head, block_size):
    added_dim = False
    if idx.ndim == 2:
        idx = idx[:, None, :]
        added_dim = True
    b, t, d = idx.shape
    C = params['tok_w'].shape[1]
    hd = C // n_head
    n_layer = params['wqkv'].shape[0]

    x = idx @ params['tok_w'] + params['tok_b'] + params['pos_emb'][:, :t, :]
    mask = jnp.tril(jnp.ones((t, t), jnp.bool_))[None, None]
    for l in range(n_layer):
        h = _layer_norm(x, params['ln1_w'][l], params['ln1_b'][l])
        qkv = h @ params['wqkv'][l] + params['bqkv'][l]
        q, k, v = qkv[..., :C], qkv[..., C:2 * C], qkv[..., 2 * C:]
        q = q.reshape(b, t, n_head, hd).transpose(0, 2, 1, 3)
        k = k.reshape(b, t, n_head, hd).transpose(0, 2, 1, 3)
        v = v.reshape(b, t, n_head, hd).transpose(0, 2, 1, 3)
        att = (q @ k.transpose(0, 1, 3, 2)) / math.sqrt(hd)
        att = jnp.where(mask, att, -jnp.inf)
        att = jax.nn.softmax(att, axis=-1)
        y = (att @ v).transpose(0, 2, 1, 3).reshape(b, t, C)
        y = y @ params['wo'][l] + params['bo'][l]
        x = x + y
        h2 = _layer_norm(x, params['ln2_w'][l], params['ln2_b'][l])
        m = _gelu(h2 @ params['w1'][l] + params['b1'][l]) @ params['w2'][l] \
            + params['b2'][l]
        x = x + m
    x = _layer_norm(x, params['lnf_w'], params['lnf_b'])
    out = x @ params['head_w']
    if added_dim:
        out = out[:, 0, :]
    return out


# ---------------------------------- main -------------------------------------

if __name__ == "__main__":
    # Small config consistent with the module's __init__
    obs_size, n_embd, n_head, n_layer = 16, 32, 4, 2
    block_size, action_size = 8, 8
    B, T = 2, 8

    key = jax.random.PRNGKey(0)
    kp, kb, kx, kx2 = jax.random.split(key, 4)
    params = init_gpt_params(kp, obs_size, n_embd, n_head, n_layer,
                             block_size, action_size)

    # _init_weights leaves biases / pos_emb at zero; perturb them here so the
    # bias-add and positional-embedding paths are actually exercised by the
    # numerical check.
    bkeys = jax.random.split(kb, 8)
    for i, name in enumerate(['tok_b', 'pos_emb', 'bqkv', 'bo',
                              'b1', 'b2', 'ln1_b', 'ln2_b']):
        params[name] = 0.02 * jax.random.normal(bkeys[i], params[name].shape,
                                                jnp.float32)

    idx = jax.random.normal(kx, (B, T, obs_size), jnp.float32)

    out = jax.block_until_ready(
        gpt_forward(params, idx, n_head=n_head, block_size=block_size))
    ref = gpt_forward_ref(params, idx, n_head=n_head, block_size=block_size)
    assert out.shape == (B, T, action_size)
    # Tolerance reflects bf16 MXU operands vs. the f32-math reference.
    assert jnp.allclose(out, ref, atol=1e-2, rtol=1e-2), (
        float(jnp.max(jnp.abs(out - ref))))

    # Also exercise the 2-D input path (idx.ndim == 2 -> unsqueeze/squeeze, T=1)
    idx2 = jax.random.normal(kx2, (B, obs_size), jnp.float32)
    out2 = jax.block_until_ready(
        gpt_forward(params, idx2, n_head=n_head, block_size=block_size))
    ref2 = gpt_forward_ref(params, idx2, n_head=n_head, block_size=block_size)
    assert out2.shape == (B, action_size)
    assert jnp.allclose(out2, ref2, atol=1e-2, rtol=1e-2), (
        float(jnp.max(jnp.abs(out2 - ref2))))

    print("KERNEL_OK")
</pallas_src>

<mosaic_0001>
module attributes {stable_mosaic.version = 11 : i64} {
  func.func @gpt_block_kernel(%arg0: i32, %arg1: i32, %arg2: memref<2x8x16xf32, #tpu.memory_space<vmem>>, %arg3: memref<8x32xf32, #tpu.memory_space<vmem>>, %arg4: memref<16x32xbf16, #tpu.memory_space<vmem>>, %arg5: memref<1x32xf32, #tpu.memory_space<vmem>>, %arg6: memref<1x1x32xf32, #tpu.memory_space<vmem>>, %arg7: memref<1x1x32xf32, #tpu.memory_space<vmem>>, %arg8: memref<1x32x96xbf16, #tpu.memory_space<vmem>>, %arg9: memref<1x1x96xf32, #tpu.memory_space<vmem>>, %arg10: memref<1x32x32xbf16, #tpu.memory_space<vmem>>, %arg11: memref<1x1x32xf32, #tpu.memory_space<vmem>>, %arg12: memref<1x1x32xf32, #tpu.memory_space<vmem>>, %arg13: memref<1x1x32xf32, #tpu.memory_space<vmem>>, %arg14: memref<1x32x128xbf16, #tpu.memory_space<vmem>>, %arg15: memref<1x1x128xf32, #tpu.memory_space<vmem>>, %arg16: memref<1x128x32xbf16, #tpu.memory_space<vmem>>, %arg17: memref<1x1x32xf32, #tpu.memory_space<vmem>>, %arg18: memref<1x32xf32, #tpu.memory_space<vmem>>, %arg19: memref<1x32xf32, #tpu.memory_space<vmem>>, %arg20: memref<32x128xbf16, #tpu.memory_space<vmem>>, %arg21: memref<2x8x128xf32, #tpu.memory_space<vmem>>, %arg22: memref<16x32xf32, #tpu.memory_space<vmem>>) attributes {dimension_semantics = [#tpu.dimension_semantics<parallel>, #tpu.dimension_semantics<arbitrary>], iteration_bounds = array<i64: 1, 2>, scalar_prefetch = 0 : i64, scratch_operands = 1 : i64, tpu.core_type = #tpu.core_type<tc>, window_params = [{transform_indices = @transform_0, window_bounds = array<i64: 2, 8, 16>}, {pipeline_mode = #tpu.pipeline_mode<synchronous>, transform_indices = @transform_1, window_bounds = array<i64: 8, 32>}, {pipeline_mode = #tpu.pipeline_mode<synchronous>, transform_indices = @transform_2, window_bounds = array<i64: 16, 32>}, {pipeline_mode = #tpu.pipeline_mode<synchronous>, transform_indices = @transform_3, window_bounds = array<i64: 1, 32>}, {transform_indices = @transform_4, window_bounds = array<i64: 1, 1, 32>}, {transform_indices = @transform_5, window_bounds = array<i64: 1, 1, 32>}, {transform_indices = @transform_6, window_bounds = array<i64: 1, 32, 96>}, {transform_indices = @transform_7, window_bounds = array<i64: 1, 1, 96>}, {transform_indices = @transform_8, window_bounds = array<i64: 1, 32, 32>}, {transform_indices = @transform_9, window_bounds = array<i64: 1, 1, 32>}, {transform_indices = @transform_10, window_bounds = array<i64: 1, 1, 32>}, {transform_indices = @transform_11, window_bounds = array<i64: 1, 1, 32>}, {transform_indices = @transform_12, window_bounds = array<i64: 1, 32, 128>}, {transform_indices = @transform_13, window_bounds = array<i64: 1, 1, 128>}, {transform_indices = @transform_14, window_bounds = array<i64: 1, 128, 32>}, {transform_indices = @transform_15, window_bounds = array<i64: 1, 1, 32>}, {pipeline_mode = #tpu.pipeline_mode<synchronous>, transform_indices = @transform_16, window_bounds = array<i64: 1, 32>}, {pipeline_mode = #tpu.pipeline_mode<synchronous>, transform_indices = @transform_17, window_bounds = array<i64: 1, 32>}, {pipeline_mode = #tpu.pipeline_mode<synchronous>, transform_indices = @transform_18, window_bounds = array<i64: 32, 128>}, {transform_indices = @transform_19, window_bounds = array<i64: 2, 8, 128>}]} {
    %c0_i32 = arith.constant 0 : i32
    %0 = arith.cmpi eq, %arg1, %c0_i32 : i32
    %1 = arith.extui %0 : i1 to i32
    %c0_i32_0 = arith.constant 0 : i32
    %2 = arith.cmpi ne, %1, %c0_i32_0 : i32
    scf.if %2 {
      %c0_80 = arith.constant 0 : index
      %c0_81 = arith.constant 0 : index
      %c0_82 = arith.constant 0 : index
      %214 = vector.load %arg2[%c0_80, %c0_81, %c0_82] : memref<2x8x16xf32, #tpu.memory_space<vmem>>, vector<2x8x16xf32>
      %215 = vector.shape_cast %214 : vector<2x8x16xf32> to vector<16x16xf32>
      %c0_83 = arith.constant 0 : index
      %c0_84 = arith.constant 0 : index
      %216 = vector.load %arg4[%c0_83, %c0_84] : memref<16x32xbf16, #tpu.memory_space<vmem>>, vector<16x32xbf16>
      %217 = arith.truncf %215 : vector<16x16xf32> to vector<16x16xbf16>
      %cst_85 = arith.constant dense<0.000000e+00> : vector<16x32xf32>
      %218 = tpu.matmul %217, %216, %cst_85 {dimension_numbers = #tpu.dot_dimension_numbers<[1], [0], [0], [1], [0, 0, 1, 1], [], []>} : vector<16x16xbf16>, vector<16x32xbf16>, vector<16x32xf32> -> vector<16x32xf32>
      %c0_86 = arith.constant 0 : index
      %c0_87 = arith.constant 0 : index
      %219 = vector.load %arg5[%c0_86, %c0_87] : memref<1x32xf32, #tpu.memory_space<vmem>>, vector<1x32xf32>
      %220 = vector.broadcast %219 : vector<1x32xf32> to vector<16x32xf32>
      %221 = arith.addf %218, %220 : vector<16x32xf32>
      %222 = vector.shape_cast %221 : vector<16x32xf32> to vector<2x8x32xf32>
      %c0_88 = arith.constant 0 : index
      %c0_89 = arith.constant 0 : index
      %223 = vector.load %arg3[%c0_88, %c0_89] : memref<8x32xf32, #tpu.memory_space<vmem>>, vector<8x32xf32>
      %224 = vector.shape_cast %223 : vector<8x32xf32> to vector<1x8x32xf32>
      %225 = vector.broadcast %224 : vector<1x8x32xf32> to vector<2x8x32xf32>
      %226 = arith.addf %222, %225 : vector<2x8x32xf32>
      %227 = vector.shape_cast %226 : vector<2x8x32xf32> to vector<16x32xf32>
      %c0_90 = arith.constant 0 : index
      %c0_91 = arith.constant 0 : index
      %228 = vector.load %arg22[%c0_90, %c0_91] : memref<16x32xf32, #tpu.memory_space<vmem>>, vector<16x32xf32>
      tpu.vector_store %arg22[%c0_90, %c0_91], %227 {strides = array<i32>} : memref<16x32xf32, #tpu.memory_space<vmem>>, vector<16x32xf32>,
    } else {
    }
    %3 = tpu.iota {dimensions = array<i32: 0>} : vector<8x8xi32>
    %4 = tpu.iota {dimensions = array<i32: 1>} : vector<8x8xi32>
    %5 = arith.cmpi sge, %3, %4 : vector<8x8xi32>
    %cst = arith.constant 0.000000e+00 : f32
    %cst_1 = arith.constant -1.000000e+30 : f32
    %6 = vector.broadcast %cst : f32 to vector<8x8xf32>
    %7 = vector.broadcast %cst_1 : f32 to vector<8x8xf32>
    %8 = arith.select %5, %6, %7 : vector<8x8xi1>, vector<8x8xf32>
    %c0 = arith.constant 0 : index
    %c0_2 = arith.constant 0 : index
    %9 = vector.load %arg22[%c0, %c0_2] : memref<16x32xf32, #tpu.memory_space<vmem>>, vector<16x32xf32>
    %c0_3 = arith.constant 0 : index
    %c0_4 = arith.constant 0 : index
    %c0_5 = arith.constant 0 : index
    %10 = vector.load %arg6[%c0_3, %c0_4, %c0_5] : memref<1x1x32xf32, #tpu.memory_space<vmem>>, vector<1x1x32xf32>
    %11 = vector.shape_cast %10 : vector<1x1x32xf32> to vector<1x32xf32>
    %c0_6 = arith.constant 0 : index
    %c0_7 = arith.constant 0 : index
    %c0_8 = arith.constant 0 : index
    %12 = vector.load %arg7[%c0_6, %c0_7, %c0_8] : memref<1x1x32xf32, #tpu.memory_space<vmem>>, vector<1x1x32xf32>
    %13 = vector.shape_cast %12 : vector<1x1x32xf32> to vector<1x32xf32>
    %cst_9 = arith.constant dense<0.000000e+00> : vector<16xf32>
    %14 = vector.multi_reduction <add>, %9, %cst_9 [1] : vector<16x32xf32> to vector<16xf32>
    %15 = vector.shape_cast %14 : vector<16xf32> to vector<16x1xf32>
    %cst_10 = arith.constant 3.200000e+01 : f32
    %16 = vector.broadcast %cst_10 : f32 to vector<16x1xf32>
    %17 = arith.divf %15, %16 : vector<16x1xf32>
    %18 = vector.broadcast %17 : vector<16x1xf32> to vector<16x32xf32>
    %19 = arith.subf %9, %18 : vector<16x32xf32>
    %20 = arith.mulf %19, %19 : vector<16x32xf32>
    %cst_11 = arith.constant dense<0.000000e+00> : vector<16xf32>
    %21 = vector.multi_reduction <add>, %20, %cst_11 [1] : vector<16x32xf32> to vector<16xf32>
    %22 = vector.shape_cast %21 : vector<16xf32> to vector<16x1xf32>
    %cst_12 = arith.constant 3.200000e+01 : f32
    %23 = vector.broadcast %cst_12 : f32 to vector<16x1xf32>
    %24 = arith.divf %22, %23 : vector<16x1xf32>
    %25 = vector.broadcast %17 : vector<16x1xf32> to vector<16x32xf32>
    %26 = arith.subf %9, %25 : vector<16x32xf32>
    %cst_13 = arith.constant 9.99999974E-6 : f32
    %27 = vector.broadcast %cst_13 : f32 to vector<16x1xf32>
    %28 = arith.addf %24, %27 : vector<16x1xf32>
    %29 = math.rsqrt %28 : vector<16x1xf32>
    %30 = vector.broadcast %29 : vector<16x1xf32> to vector<16x32xf32>
    %31 = arith.mulf %26, %30 : vector<16x32xf32>
    %32 = vector.broadcast %11 : vector<1x32xf32> to vector<16x32xf32>
    %33 = arith.mulf %31, %32 : vector<16x32xf32>
    %34 = vector.broadcast %13 : vector<1x32xf32> to vector<16x32xf32>
    %35 = arith.addf %33, %34 : vector<16x32xf32>
    %c0_14 = arith.constant 0 : index
    %c0_15 = arith.constant 0 : index
    %c0_16 = arith.constant 0 : index
    %36 = vector.load %arg8[%c0_14, %c0_15, %c0_16] : memref<1x32x96xbf16, #tpu.memory_space<vmem>>, vector<1x32x96xbf16>
    %37 = vector.shape_cast %36 : vector<1x32x96xbf16> to vector<32x96xbf16>
    %38 = arith.truncf %35 : vector<16x32xf32> to vector<16x32xbf16>
    %cst_17 = arith.constant dense<0.000000e+00> : vector<16x96xf32>
    %39 = tpu.matmul %38, %37, %cst_17 {dimension_numbers = #tpu.dot_dimension_numbers<[1], [0], [0], [1], [0, 0, 1, 1], [], []>} : vector<16x32xbf16>, vector<32x96xbf16>, vector<16x96xf32> -> vector<16x96xf32>
    %c0_18 = arith.constant 0 : index
    %c0_19 = arith.constant 0 : index
    %c0_20 = arith.constant 0 : index
    %40 = vector.load %arg9[%c0_18, %c0_19, %c0_20] : memref<1x1x96xf32, #tpu.memory_space<vmem>>, vector<1x1x96xf32>
    %41 = vector.shape_cast %40 : vector<1x1x96xf32> to vector<1x96xf32>
    %42 = vector.broadcast %41 : vector<1x96xf32> to vector<16x96xf32>
    %43 = arith.addf %39, %42 : vector<16x96xf32>
    %44 = vector.extract_strided_slice %43 {offsets = [0, 0], sizes = [16, 32], strides = [1, 1]} : vector<16x96xf32> to vector<16x32xf32>
    %45 = vector.shape_cast %44 : vector<16x32xf32> to vector<2x8x32xf32>
    %46 = vector.extract_strided_slice %43 {offsets = [0, 32], sizes = [16, 32], strides = [1, 1]} : vector<16x96xf32> to vector<16x32xf32>
    %47 = vector.shape_cast %46 : vector<16x32xf32> to vector<2x8x32xf32>
    %48 = vector.extract_strided_slice %43 {offsets = [0, 64], sizes = [16, 32], strides = [1, 1]} : vector<16x96xf32> to vector<16x32xf32>
    %49 = vector.shape_cast %48 : vector<16x32xf32> to vector<2x8x32xf32>
    %50 = arith.truncf %49 : vector<2x8x32xf32> to vector<2x8x32xbf16>
    %51 = vector.extract_strided_slice %45 {offsets = [0, 0, 0], sizes = [2, 8, 8], strides = [1, 1, 1]} : vector<2x8x32xf32> to vector<2x8x8xf32>
    %52 = arith.truncf %51 : vector<2x8x8xf32> to vector<2x8x8xbf16>
    %53 = vector.extract_strided_slice %47 {offsets = [0, 0, 0], sizes = [2, 8, 8], strides = [1, 1, 1]} : vector<2x8x32xf32> to vector<2x8x8xf32>
    %54 = arith.truncf %53 : vector<2x8x8xf32> to vector<2x8x8xbf16>
    "tpu.trace_start"() <{level = 10 : i32, message = "bqd,bkd->bqk"}> : () -> ()
    %cst_21 = arith.constant dense<0.000000e+00> : vector<2x8x8xf32>
    %55 = tpu.matmul %52, %54, %cst_21 {dimension_numbers = #tpu.dot_dimension_numbers<[2], [2], [1], [1], [0, 0, 0, 1, 1, 1], [0], [0]>} : vector<2x8x8xbf16>, vector<2x8x8xbf16>, vector<2x8x8xf32> -> vector<2x8x8xf32>
    "tpu.trace_stop"() : () -> ()
    %cst_22 = arith.constant 0.353553385 : f32
    %56 = vector.broadcast %cst_22 : f32 to vector<2x8x8xf32>
    %57 = arith.mulf %55, %56 : vector<2x8x8xf32>
    %58 = vector.shape_cast %8 : vector<8x8xf32> to vector<1x8x8xf32>
    %59 = vector.broadcast %58 : vector<1x8x8xf32> to vector<2x8x8xf32>
    %60 = arith.addf %57, %59 : vector<2x8x8xf32>
    %cst_23 = arith.constant dense<0xFF800000> : vector<2x8xf32>
    %61 = vector.multi_reduction <maximumf>, %60, %cst_23 [2] : vector<2x8x8xf32> to vector<2x8xf32>
    %62 = vector.shape_cast %61 : vector<2x8xf32> to vector<2x8x1xf32>
    %63 = vector.broadcast %62 : vector<2x8x1xf32> to vector<2x8x8xf32>
    %64 = arith.subf %60, %63 : vector<2x8x8xf32>
    %65 = math.exp %64 : vector<2x8x8xf32>
    %cst_24 = arith.constant dense<0.000000e+00> : vector<2x8xf32>
    %66 = vector.multi_reduction <add>, %65, %cst_24 [2] : vector<2x8x8xf32> to vector<2x8xf32>
    %67 = vector.shape_cast %66 : vector<2x8xf32> to vector<2x8x1xf32>
    %68 = tpu.reciprocal %67 {approx = true} : vector<2x8x1xf32> -> vector<2x8x1xf32>
    %69 = vector.broadcast %68 : vector<2x8x1xf32> to vector<2x8x8xf32>
    %70 = arith.mulf %65, %69 : vector<2x8x8xf32>
    %71 = arith.truncf %70 : vector<2x8x8xf32> to vector<2x8x8xbf16>
    %72 = vector.extract_strided_slice %50 {offsets = [0, 0, 0], sizes = [2, 8, 8], strides = [1, 1, 1]} : vector<2x8x32xbf16> to vector<2x8x8xbf16>
    "tpu.trace_start"() <{level = 10 : i32, message = "bqk,bkd->bqd"}> : () -> ()
    %cst_25 = arith.constant dense<0.000000e+00> : vector<2x8x8xf32>
    %73 = tpu.matmul %71, %72, %cst_25 {dimension_numbers = #tpu.dot_dimension_numbers<[2], [1], [1], [2], [0, 0, 0, 1, 1, 2], [0], [0]>} : vector<2x8x8xbf16>, vector<2x8x8xbf16>, vector<2x8x8xf32> -> vector<2x8x8xf32>
    "tpu.trace_stop"() : () -> ()
    %74 = vector.extract_strided_slice %45 {offsets = [0, 0, 8], sizes = [2, 8, 8], strides = [1, 1, 1]} : vector<2x8x32xf32> to vector<2x8x8xf32>
    %75 = arith.truncf %74 : vector<2x8x8xf32> to vector<2x8x8xbf16>
    %76 = vector.extract_strided_slice %47 {offsets = [0, 0, 8], sizes = [2, 8, 8], strides = [1, 1, 1]} : vector<2x8x32xf32> to vector<2x8x8xf32>
    %77 = arith.truncf %76 : vector<2x8x8xf32> to vector<2x8x8xbf16>
    "tpu.trace_start"() <{level = 10 : i32, message = "bqd,bkd->bqk"}> : () -> ()
    %cst_26 = arith.constant dense<0.000000e+00> : vector<2x8x8xf32>
    %78 = tpu.matmul %75, %77, %cst_26 {dimension_numbers = #tpu.dot_dimension_numbers<[2], [2], [1], [1], [0, 0, 0, 1, 1, 1], [0], [0]>} : vector<2x8x8xbf16>, vector<2x8x8xbf16>, vector<2x8x8xf32> -> vector<2x8x8xf32>
    "tpu.trace_stop"() : () -> ()
    %cst_27 = arith.constant 0.353553385 : f32
    %79 = vector.broadcast %cst_27 : f32 to vector<2x8x8xf32>
    %80 = arith.mulf %78, %79 : vector<2x8x8xf32>
    %81 = vector.shape_cast %8 : vector<8x8xf32> to vector<1x8x8xf32>
    %82 = vector.broadcast %81 : vector<1x8x8xf32> to vector<2x8x8xf32>
    %83 = arith.addf %80, %82 : vector<2x8x8xf32>
    %cst_28 = arith.constant dense<0xFF800000> : vector<2x8xf32>
    %84 = vector.multi_reduction <maximumf>, %83, %cst_28 [2] : vector<2x8x8xf32> to vector<2x8xf32>
    %85 = vector.shape_cast %84 : vector<2x8xf32> to vector<2x8x1xf32>
    %86 = vector.broadcast %85 : vector<2x8x1xf32> to vector<2x8x8xf32>
    %87 = arith.subf %83, %86 : vector<2x8x8xf32>
    %88 = math.exp %87 : vector<2x8x8xf32>
    %cst_29 = arith.constant dense<0.000000e+00> : vector<2x8xf32>
    %89 = vector.multi_reduction <add>, %88, %cst_29 [2] : vector<2x8x8xf32> to vector<2x8xf32>
    %90 = vector.shape_cast %89 : vector<2x8xf32> to vector<2x8x1xf32>
    %91 = tpu.reciprocal %90 {approx = true} : vector<2x8x1xf32> -> vector<2x8x1xf32>
    %92 = vector.broadcast %91 : vector<2x8x1xf32> to vector<2x8x8xf32>
    %93 = arith.mulf %88, %92 : vector<2x8x8xf32>
    %94 = arith.truncf %93 : vector<2x8x8xf32> to vector<2x8x8xbf16>
    %95 = vector.extract_strided_slice %50 {offsets = [0, 0, 8], sizes = [2, 8, 8], strides = [1, 1, 1]} : vector<2x8x32xbf16> to vector<2x8x8xbf16>
    "tpu.trace_start"() <{level = 10 : i32, message = "bqk,bkd->bqd"}> : () -> ()
    %cst_30 = arith.constant dense<0.000000e+00> : vector<2x8x8xf32>
    %96 = tpu.matmul %94, %95, %cst_30 {dimension_numbers = #tpu.dot_dimension_numbers<[2], [1], [1], [2], [0, 0, 0, 1, 1, 2], [0], [0]>} : vector<2x8x8xbf16>, vector<2x8x8xbf16>, vector<2x8x8xf32> -> vector<2x8x8xf32>
    "tpu.trace_stop"() : () -> ()
    %97 = vector.extract_strided_slice %45 {offsets = [0, 0, 16], sizes = [2, 8, 8], strides = [1, 1, 1]} : vector<2x8x32xf32> to vector<2x8x8xf32>
    %98 = arith.truncf %97 : vector<2x8x8xf32> to vector<2x8x8xbf16>
    %99 = vector.extract_strided_slice %47 {offsets = [0, 0, 16], sizes = [2, 8, 8], strides = [1, 1, 1]} : vector<2x8x32xf32> to vector<2x8x8xf32>
    %100 = arith.truncf %99 : vector<2x8x8xf32> to vector<2x8x8xbf16>
    "tpu.trace_start"() <{level = 10 : i32, message = "bqd,bkd->bqk"}> : () -> ()
    %cst_31 = arith.constant dense<0.000000e+00> : vector<2x8x8xf32>
    %101 = tpu.matmul %98, %100, %cst_31 {dimension_numbers = #tpu.dot_dimension_numbers<[2], [2], [1], [1], [0, 0, 0, 1, 1, 1], [0], [0]>} : vector<2x8x8xbf16>, vector<2x8x8xbf16>, vector<2x8x8xf32> -> vector<2x8x8xf32>
    "tpu.trace_stop"() : () -> ()
    %cst_32 = arith.constant 0.353553385 : f32
    %102 = vector.broadcast %cst_32 : f32 to vector<2x8x8xf32>
    %103 = arith.mulf %101, %102 : vector<2x8x8xf32>
    %104 = vector.shape_cast %8 : vector<8x8xf32> to vector<1x8x8xf32>
    %105 = vector.broadcast %104 : vector<1x8x8xf32> to vector<2x8x8xf32>
    %106 = arith.addf %103, %105 : vector<2x8x8xf32>
    %cst_33 = arith.constant dense<0xFF800000> : vector<2x8xf32>
    %107 = vector.multi_reduction <maximumf>, %106, %cst_33 [2] : vector<2x8x8xf32> to vector<2x8xf32>
    %108 = vector.shape_cast %107 : vector<2x8xf32> to vector<2x8x1xf32>
    %109 = vector.broadcast %108 : vector<2x8x1xf32> to vector<2x8x8xf32>
    %110 = arith.subf %106, %109 : vector<2x8x8xf32>
    %111 = math.exp %110 : vector<2x8x8xf32>
    %cst_34 = arith.constant dense<0.000000e+00> : vector<2x8xf32>
    %112 = vector.multi_reduction <add>, %111, %cst_34 [2] : vector<2x8x8xf32> to vector<2x8xf32>
    %113 = vector.shape_cast %112 : vector<2x8xf32> to vector<2x8x1xf32>
    %114 = tpu.reciprocal %113 {approx = true} : vector<2x8x1xf32> -> vector<2x8x1xf32>
    %115 = vector.broadcast %114 : vector<2x8x1xf32> to vector<2x8x8xf32>
    %116 = arith.mulf %111, %115 : vector<2x8x8xf32>
    %117 = arith.truncf %116 : vector<2x8x8xf32> to vector<2x8x8xbf16>
    %118 = vector.extract_strided_slice %50 {offsets = [0, 0, 16], sizes = [2, 8, 8], strides = [1, 1, 1]} : vector<2x8x32xbf16> to vector<2x8x8xbf16>
    "tpu.trace_start"() <{level = 10 : i32, message = "bqk,bkd->bqd"}> : () -> ()
    %cst_35 = arith.constant dense<0.000000e+00> : vector<2x8x8xf32>
    %119 = tpu.matmul %117, %118, %cst_35 {dimension_numbers = #tpu.dot_dimension_numbers<[2], [1], [1], [2], [0, 0, 0, 1, 1, 2], [0], [0]>} : vector<2x8x8xbf16>, vector<2x8x8xbf16>, vector<2x8x8xf32> -> vector<2x8x8xf32>
    "tpu.trace_stop"() : () -> ()
    %120 = vector.extract_strided_slice %45 {offsets = [0, 0, 24], sizes = [2, 8, 8], strides = [1, 1, 1]} : vector<2x8x32xf32> to vector<2x8x8xf32>
    %121 = arith.truncf %120 : vector<2x8x8xf32> to vector<2x8x8xbf16>
    %122 = vector.extract_strided_slice %47 {offsets = [0, 0, 24], sizes = [2, 8, 8], strides = [1, 1, 1]} : vector<2x8x32xf32> to vector<2x8x8xf32>
    %123 = arith.truncf %122 : vector<2x8x8xf32> to vector<2x8x8xbf16>
    "tpu.trace_start"() <{level = 10 : i32, message = "bqd,bkd->bqk"}> : () -> ()
    %cst_36 = arith.constant dense<0.000000e+00> : vector<2x8x8xf32>
    %124 = tpu.matmul %121, %123, %cst_36 {dimension_numbers = #tpu.dot_dimension_numbers<[2], [2], [1], [1], [0, 0, 0, 1, 1, 1], [0], [0]>} : vector<2x8x8xbf16>, vector<2x8x8xbf16>, vector<2x8x8xf32> -> vector<2x8x8xf32>
    "tpu.trace_stop"() : () -> ()
    %cst_37 = arith.constant 0.353553385 : f32
    %125 = vector.broadcast %cst_37 : f32 to vector<2x8x8xf32>
    %126 = arith.mulf %124, %125 : vector<2x8x8xf32>
    %127 = vector.shape_cast %8 : vector<8x8xf32> to vector<1x8x8xf32>
    %128 = vector.broadcast %127 : vector<1x8x8xf32> to vector<2x8x8xf32>
    %129 = arith.addf %126, %128 : vector<2x8x8xf32>
    %cst_38 = arith.constant dense<0xFF800000> : vector<2x8xf32>
    %130 = vector.multi_reduction <maximumf>, %129, %cst_38 [2] : vector<2x8x8xf32> to vector<2x8xf32>
    %131 = vector.shape_cast %130 : vector<2x8xf32> to vector<2x8x1xf32>
    %132 = vector.broadcast %131 : vector<2x8x1xf32> to vector<2x8x8xf32>
    %133 = arith.subf %129, %132 : vector<2x8x8xf32>
    %134 = math.exp %133 : vector<2x8x8xf32>
    %cst_39 = arith.constant dense<0.000000e+00> : vector<2x8xf32>
    %135 = vector.multi_reduction <add>, %134, %cst_39 [2] : vector<2x8x8xf32> to vector<2x8xf32>
    %136 = vector.shape_cast %135 : vector<2x8xf32> to vector<2x8x1xf32>
    %137 = tpu.reciprocal %136 {approx = true} : vector<2x8x1xf32> -> vector<2x8x1xf32>
    %138 = vector.broadcast %137 : vector<2x8x1xf32> to vector<2x8x8xf32>
    %139 = arith.mulf %134, %138 : vector<2x8x8xf32>
    %140 = arith.truncf %139 : vector<2x8x8xf32> to vector<2x8x8xbf16>
    %141 = vector.extract_strided_slice %50 {offsets = [0, 0, 24], sizes = [2, 8, 8], strides = [1, 1, 1]} : vector<2x8x32xbf16> to vector<2x8x8xbf16>
    "tpu.trace_start"() <{level = 10 : i32, message = "bqk,bkd->bqd"}> : () -> ()
    %cst_40 = arith.constant dense<0.000000e+00> : vector<2x8x8xf32>
    %142 = tpu.matmul %140, %141, %cst_40 {dimension_numbers = #tpu.dot_dimension_numbers<[2], [1], [1], [2], [0, 0, 0, 1, 1, 2], [0], [0]>} : vector<2x8x8xbf16>, vector<2x8x8xbf16>, vector<2x8x8xf32> -> vector<2x8x8xf32>
    "tpu.trace_stop"() : () -> ()
    %143 = tpu.concatenate %73, %96, %119, %142 in 2 : vector<2x8x8xf32>, vector<2x8x8xf32>, vector<2x8x8xf32>, vector<2x8x8xf32> -> vector<2x8x32xf32>
    %144 = vector.shape_cast %143 : vector<2x8x32xf32> to vector<16x32xf32>
    %c0_41 = arith.constant 0 : index
    %c0_42 = arith.constant 0 : index
    %c0_43 = arith.constant 0 : index
    %145 = vector.load %arg10[%c0_41, %c0_42, %c0_43] : memref<1x32x32xbf16, #tpu.memory_space<vmem>>, vector<1x32x32xbf16>
    %146 = vector.shape_cast %145 : vector<1x32x32xbf16> to vector<32x32xbf16>
    %147 = arith.truncf %144 : vector<16x32xf32> to vector<16x32xbf16>
    %cst_44 = arith.constant dense<0.000000e+00> : vector<16x32xf32>
    %148 = tpu.matmul %147, %146, %cst_44 {dimension_numbers = #tpu.dot_dimension_numbers<[1], [0], [0], [1], [0, 0, 1, 1], [], []>} : vector<16x32xbf16>, vector<32x32xbf16>, vector<16x32xf32> -> vector<16x32xf32>
    %149 = arith.addf %9, %148 : vector<16x32xf32>
    %c0_45 = arith.constant 0 : index
    %c0_46 = arith.constant 0 : index
    %c0_47 = arith.constant 0 : index
    %150 = vector.load %arg11[%c0_45, %c0_46, %c0_47] : memref<1x1x32xf32, #tpu.memory_space<vmem>>, vector<1x1x32xf32>
    %151 = vector.shape_cast %150 : vector<1x1x32xf32> to vector<1x32xf32>
    %152 = vector.broadcast %151 : vector<1x32xf32> to vector<16x32xf32>
    %153 = arith.addf %149, %152 : vector<16x32xf32>
    %c0_48 = arith.constant 0 : index
    %c0_49 = arith.constant 0 : index
    %c0_50 = arith.constant 0 : index
    %154 = vector.load %arg12[%c0_48, %c0_49, %c0_50] : memref<1x1x32xf32, #tpu.memory_space<vmem>>, vector<1x1x32xf32>
    %155 = vector.shape_cast %154 : vector<1x1x32xf32> to vector<1x32xf32>
    %c0_51 = arith.constant 0 : index
    %c0_52 = arith.constant 0 : index
    %c0_53 = arith.constant 0 : index
    %156 = vector.load %arg13[%c0_51, %c0_52, %c0_53] : memref<1x1x32xf32, #tpu.memory_space<vmem>>, vector<1x1x32xf32>
    %157 = vector.shape_cast %156 : vector<1x1x32xf32> to vector<1x32xf32>
    %cst_54 = arith.constant dense<0.000000e+00> : vector<16xf32>
    %158 = vector.multi_reduction <add>, %153, %cst_54 [1] : vector<16x32xf32> to vector<16xf32>
    %159 = vector.shape_cast %158 : vector<16xf32> to vector<16x1xf32>
    %cst_55 = arith.constant 3.200000e+01 : f32
    %160 = vector.broadcast %cst_55 : f32 to vector<16x1xf32>
    %161 = arith.divf %159, %160 : vector<16x1xf32>
    %162 = vector.broadcast %161 : vector<16x1xf32> to vector<16x32xf32>
    %163 = arith.subf %153, %162 : vector<16x32xf32>
    %164 = arith.mulf %163, %163 : vector<16x32xf32>
    %cst_56 = arith.constant dense<0.000000e+00> : vector<16xf32>
    %165 = vector.multi_reduction <add>, %164, %cst_56 [1] : vector<16x32xf32> to vector<16xf32>
    %166 = vector.shape_cast %165 : vector<16xf32> to vector<16x1xf32>
    %cst_57 = arith.constant 3.200000e+01 : f32
    %167 = vector.broadcast %cst_57 : f32 to vector<16x1xf32>
    %168 = arith.divf %166, %167 : vector<16x1xf32>
    %169 = vector.broadcast %161 : vector<16x1xf32> to vector<16x32xf32>
    %170 = arith.subf %153, %169 : vector<16x32xf32>
    %cst_58 = arith.constant 9.99999974E-6 : f32
    %171 = vector.broadcast %cst_58 : f32 to vector<16x1xf32>
    %172 = arith.addf %168, %171 : vector<16x1xf32>
    %173 = math.rsqrt %172 : vector<16x1xf32>
    %174 = vector.broadcast %173 : vector<16x1xf32> to vector<16x32xf32>
    %175 = arith.mulf %170, %174 : vector<16x32xf32>
    %176 = vector.broadcast %155 : vector<1x32xf32> to vector<16x32xf32>
    %177 = arith.mulf %175, %176 : vector<16x32xf32>
    %178 = vector.broadcast %157 : vector<1x32xf32> to vector<16x32xf32>
    %179 = arith.addf %177, %178 : vector<16x32xf32>
    %c0_59 = arith.constant 0 : index
    %c0_60 = arith.constant 0 : index
    %c0_61 = arith.constant 0 : index
    %180 = vector.load %arg14[%c0_59, %c0_60, %c0_61] : memref<1x32x128xbf16, #tpu.memory_space<vmem>>, vector<1x32x128xbf16>
    %181 = vector.shape_cast %180 : vector<1x32x128xbf16> to vector<32x128xbf16>
    %182 = arith.truncf %179 : vector<16x32xf32> to vector<16x32xbf16>
    %cst_62 = arith.constant dense<0.000000e+00> : vector<16x128xf32>
    %183 = tpu.matmul %182, %181, %cst_62 {dimension_numbers = #tpu.dot_dimension_numbers<[1], [0], [0], [1], [0, 0, 1, 1], [], []>} : vector<16x32xbf16>, vector<32x128xbf16>, vector<16x128xf32> -> vector<16x128xf32>
    %c0_63 = arith.constant 0 : index
    %c0_64 = arith.constant 0 : index
    %c0_65 = arith.constant 0 : index
    %184 = vector.load %arg15[%c0_63, %c0_64, %c0_65] : memref<1x1x128xf32, #tpu.memory_space<vmem>>, vector<1x1x128xf32>
    %185 = vector.shape_cast %184 : vector<1x1x128xf32> to vector<1x128xf32>
    %186 = vector.broadcast %185 : vector<1x128xf32> to vector<16x128xf32>
    %187 = arith.addf %183, %186 : vector<16x128xf32>
    %cst_66 = arith.constant 5.000000e-01 : f32
    %188 = vector.broadcast %cst_66 : f32 to vector<16x128xf32>
    %189 = arith.mulf %188, %187 : vector<16x128xf32>
    %cst_67 = arith.constant 4.471500e-02 : f32
    %190 = vector.broadcast %cst_67 : f32 to vector<16x128xf32>
    %191 = arith.mulf %190, %187 : vector<16x128xf32>
    %192 = arith.mulf %191, %187 : vector<16x128xf32>
    %193 = arith.mulf %192, %187 : vector<16x128xf32>
    %194 = arith.addf %187, %193 : vector<16x128xf32>
    %cst_68 = arith.constant 0.797884583 : f32
    %195 = vector.broadcast %cst_68 : f32 to vector<16x128xf32>
    %196 = arith.mulf %195, %194 : vector<16x128xf32>
    %197 = math.tanh %196 : vector<16x128xf32>
    %cst_69 = arith.constant 1.000000e+00 : f32
    %198 = vector.broadcast %cst_69 : f32 to vector<16x128xf32>
    %199 = arith.addf %198, %197 : vector<16x128xf32>
    %200 = arith.mulf %189, %199 : vector<16x128xf32>
    %c0_70 = arith.constant 0 : index
    %c0_71 = arith.constant 0 : index
    %c0_72 = arith.constant 0 : index
    %201 = vector.load %arg16[%c0_70, %c0_71, %c0_72] : memref<1x128x32xbf16, #tpu.memory_space<vmem>>, vector<1x128x32xbf16>
    %202 = vector.shape_cast %201 : vector<1x128x32xbf16> to vector<128x32xbf16>
    %203 = arith.truncf %200 : vector<16x128xf32> to vector<16x128xbf16>
    %cst_73 = arith.constant dense<0.000000e+00> : vector<16x32xf32>
    %204 = tpu.matmul %203, %202, %cst_73 {dimension_numbers = #tpu.dot_dimension_numbers<[1], [0], [0], [1], [0, 0, 1, 1], [], []>} : vector<16x128xbf16>, vector<128x32xbf16>, vector<16x32xf32> -> vector<16x32xf32>
    %205 = arith.addf %153, %204 : vector<16x32xf32>
    %c0_74 = arith.constant 0 : index
    %c0_75 = arith.constant 0 : index
    %c0_76 = arith.constant 0 : index
    %206 = vector.load %arg17[%c0_74, %c0_75, %c0_76] : memref<1x1x32xf32, #tpu.memory_space<vmem>>, vector<1x1x32xf32>
    %207 = vector.shape_cast %206 : vector<1x1x32xf32> to vector<1x32xf32>
    %208 = vector.broadcast %207 : vector<1x32xf32> to vector<16x32xf32>
    %209 = arith.addf %205, %208 : vector<16x32xf32>
    %c0_77 = arith.constant 0 : index
    %c0_78 = arith.constant 0 : index
    %210 = vector.load %arg22[%c0_77, %c0_78] : memref<16x32xf32, #tpu.memory_space<vmem>>, vector<16x32xf32>
    tpu.vector_store %arg22[%c0_77, %c0_78], %209 {strides = array<i32>} : memref<16x32xf32, #tpu.memory_space<vmem>>, vector<16x32xf32>,
    %c1_i32 = arith.constant 1 : i32
    %211 = arith.cmpi eq, %arg1, %c1_i32 : i32
    %212 = arith.extui %211 : i1 to i32
    %c0_i32_79 = arith.constant 0 : i32
    %213 = arith.cmpi ne, %212, %c0_i32_79 : i32
    scf.if %213 {
      %c0_80 = arith.constant 0 : index
      %c0_81 = arith.constant 0 : index
      %214 = vector.load %arg18[%c0_80, %c0_81] : memref<1x32xf32, #tpu.memory_space<vmem>>, vector<1x32xf32>
      %c0_82 = arith.constant 0 : index
      %c0_83 = arith.constant 0 : index
      %215 = vector.load %arg19[%c0_82, %c0_83] : memref<1x32xf32, #tpu.memory_space<vmem>>, vector<1x32xf32>
      %cst_84 = arith.constant dense<0.000000e+00> : vector<16xf32>
      %216 = vector.multi_reduction <add>, %209, %cst_84 [1] : vector<16x32xf32> to vector<16xf32>
      %217 = vector.shape_cast %216 : vector<16xf32> to vector<16x1xf32>
      %cst_85 = arith.constant 3.200000e+01 : f32
      %218 = vector.broadcast %cst_85 : f32 to vector<16x1xf32>
      %219 = arith.divf %217, %218 : vector<16x1xf32>
      %220 = vector.broadcast %219 : vector<16x1xf32> to vector<16x32xf32>
      %221 = arith.subf %209, %220 : vector<16x32xf32>
      %222 = arith.mulf %221, %221 : vector<16x32xf32>
      %cst_86 = arith.constant dense<0.000000e+00> : vector<16xf32>
      %223 = vector.multi_reduction <add>, %222, %cst_86 [1] : vector<16x32xf32> to vector<16xf32>
      %224 = vector.shape_cast %223 : vector<16xf32> to vector<16x1xf32>
      %cst_87 = arith.constant 3.200000e+01 : f32
      %225 = vector.broadcast %cst_87 : f32 to vector<16x1xf32>
      %226 = arith.divf %224, %225 : vector<16x1xf32>
      %227 = vector.broadcast %219 : vector<16x1xf32> to vector<16x32xf32>
      %228 = arith.subf %209, %227 : vector<16x32xf32>
      %cst_88 = arith.constant 9.99999974E-6 : f32
      %229 = vector.broadcast %cst_88 : f32 to vector<16x1xf32>
      %230 = arith.addf %226, %229 : vector<16x1xf32>
      %231 = math.rsqrt %230 : vector<16x1xf32>
      %232 = vector.broadcast %231 : vector<16x1xf32> to vector<16x32xf32>
      %233 = arith.mulf %228, %232 : vector<16x32xf32>
      %234 = vector.broadcast %214 : vector<1x32xf32> to vector<16x32xf32>
      %235 = arith.mulf %233, %234 : vector<16x32xf32>
      %236 = vector.broadcast %215 : vector<1x32xf32> to vector<16x32xf32>
      %237 = arith.addf %235, %236 : vector<16x32xf32>
      %c0_89 = arith.constant 0 : index
      %c0_90 = arith.constant 0 : index
      %238 = vector.load %arg20[%c0_89, %c0_90] : memref<32x128xbf16, #tpu.memory_space<vmem>>, vector<32x128xbf16>
      %239 = arith.truncf %237 : vector<16x32xf32> to vector<16x32xbf16>
      %cst_91 = arith.constant dense<0.000000e+00> : vector<16x128xf32>
      %240 = tpu.matmul %239, %238, %cst_91 {dimension_numbers = #tpu.dot_dimension_numbers<[1], [0], [0], [1], [0, 0, 1, 1], [], []>} : vector<16x32xbf16>, vector<32x128xbf16>, vector<16x128xf32> -> vector<16x128xf32>
      %241 = vector.shape_cast %240 : vector<16x128xf32> to vector<2x8x128xf32>
      %c0_92 = arith.constant 0 : index
      %c0_93 = arith.constant 0 : index
      %c0_94 = arith.constant 0 : index
      %242 = vector.load %arg21[%c0_92, %c0_93, %c0_94] : memref<2x8x128xf32, #tpu.memory_space<vmem>>, vector<2x8x128xf32>
      tpu.vector_store %arg21[%c0_92, %c0_93, %c0_94], %241 {strides = array<i32>} : memref<2x8x128xf32, #tpu.memory_space<vmem>>, vector<2x8x128xf32>,
    } else {
    }
    return
  }
  func.func @transform_0(%arg0: i32, %arg1: i32) -> (i32, i32, i32) {
    %c0_i32 = arith.constant 0 : i32
    %c0_i32_0 = arith.constant 0 : i32
    %c0_i32_1 = arith.constant 0 : i32
    return %arg0, %c0_i32, %c0_i32_0 : i32, i32, i32
  }
  func.func @transform_1(%arg0: i32, %arg1: i32) -> (i32, i32) {
    %c0_i32 = arith.constant 0 : i32
    %c0_i32_0 = arith.constant 0 : i32
    %c0_i32_1 = arith.constant 0 : i32
    return %c0_i32, %c0_i32_0 : i32, i32
  }
  func.func @transform_2(%arg0: i32, %arg1: i32) -> (i32, i32) {
    %c0_i32 = arith.constant 0 : i32
    %c0_i32_0 = arith.constant 0 : i32
    %c0_i32_1 = arith.constant 0 : i32
    return %c0_i32, %c0_i32_0 : i32, i32
  }
  func.func @transform_3(%arg0: i32, %arg1: i32) -> (i32, i32) {
    %c0_i32 = arith.constant 0 : i32
    %c0_i32_0 = arith.constant 0 : i32
    %c0_i32_1 = arith.constant 0 : i32
    return %c0_i32, %c0_i32_0 : i32, i32
  }
  func.func @transform_4(%arg0: i32, %arg1: i32) -> (i32, i32, i32) {
    %c0_i32 = arith.constant 0 : i32
    %c0_i32_0 = arith.constant 0 : i32
    %c0_i32_1 = arith.constant 0 : i32
    return %arg1, %c0_i32, %c0_i32_0 : i32, i32, i32
  }
  func.func @transform_5(%arg0: i32, %arg1: i32) -> (i32, i32, i32) {
    %c0_i32 = arith.constant 0 : i32
    %c0_i32_0 = arith.constant 0 : i32
    %c0_i32_1 = arith.constant 0 : i32
    return %arg1, %c0_i32, %c0_i32_0 : i32, i32, i32
  }
  func.func @transform_6(%arg0: i32, %arg1: i32) -> (i32, i32, i32) {
    %c0_i32 = arith.constant 0 : i32
    %c0_i32_0 = arith.constant 0 : i32
    %c0_i32_1 = arith.constant 0 : i32
    return %arg1, %c0_i32, %c0_i32_0 : i32, i32, i32
  }
  func.func @transform_7(%arg0: i32, %arg1: i32) -> (i32, i32, i32) {
    %c0_i32 = arith.constant 0 : i32
    %c0_i32_0 = arith.constant 0 : i32
    %c0_i32_1 = arith.constant 0 : i32
    return %arg1, %c0_i32, %c0_i32_0 : i32, i32, i32
  }
  func.func @transform_8(%arg0: i32, %arg1: i32) -> (i32, i32, i32) {
    %c0_i32 = arith.constant 0 : i32
    %c0_i32_0 = arith.constant 0 : i32
    %c0_i32_1 = arith.constant 0 : i32
    return %arg1, %c0_i32, %c0_i32_0 : i32, i32, i32
  }
  func.func @transform_9(%arg0: i32, %arg1: i32) -> (i32, i32, i32) {
    %c0_i32 = arith.constant 0 : i32
    %c0_i32_0 = arith.constant 0 : i32
    %c0_i32_1 = arith.constant 0 : i32
    return %arg1, %c0_i32, %c0_i32_0 : i32, i32, i32
  }
  func.func @transform_10(%arg0: i32, %arg1: i32) -> (i32, i32, i32) {
    %c0_i32 = arith.constant 0 : i32
    %c0_i32_0 = arith.constant 0 : i32
    %c0_i32_1 = arith.constant 0 : i32
    return %arg1, %c0_i32, %c0_i32_0 : i32, i32, i32
  }
  func.func @transform_11(%arg0: i32, %arg1: i32) -> (i32, i32, i32) {
    %c0_i32 = arith.constant 0 : i32
    %c0_i32_0 = arith.constant 0 : i32
    %c0_i32_1 = arith.constant 0 : i32
    return %arg1, %c0_i32, %c0_i32_0 : i32, i32, i32
  }
  func.func @transform_12(%arg0: i32, %arg1: i32) -> (i32, i32, i32) {
    %c0_i32 = arith.constant 0 : i32
    %c0_i32_0 = arith.constant 0 : i32
    %c0_i32_1 = arith.constant 0 : i32
    return %arg1, %c0_i32, %c0_i32_0 : i32, i32, i32
  }
  func.func @transform_13(%arg0: i32, %arg1: i32) -> (i32, i32, i32) {
    %c0_i32 = arith.constant 0 : i32
    %c0_i32_0 = arith.constant 0 : i32
    %c0_i32_1 = arith.constant 0 : i32
    return %arg1, %c0_i32, %c0_i32_0 : i32, i32, i32
  }
  func.func @transform_14(%arg0: i32, %arg1: i32) -> (i32, i32, i32) {
    %c0_i32 = arith.constant 0 : i32
    %c0_i32_0 = arith.constant 0 : i32
    %c0_i32_1 = arith.constant 0 : i32
    return %arg1, %c0_i32, %c0_i32_0 : i32, i32, i32
  }
  func.func @transform_15(%arg0: i32, %arg1: i32) -> (i32, i32, i32) {
    %c0_i32 = arith.constant 0 : i32
    %c0_i32_0 = arith.constant 0 : i32
    %c0_i32_1 = arith.constant 0 : i32
    return %arg1, %c0_i32, %c0_i32_0 : i32, i32, i32
  }
  func.func @transform_16(%arg0: i32, %arg1: i32) -> (i32, i32) {
    %c0_i32 = arith.constant 0 : i32
    %c0_i32_0 = arith.constant 0 : i32
    %c0_i32_1 = arith.constant 0 : i32
    return %c0_i32, %c0_i32_0 : i32, i32
  }
  func.func @transform_17(%arg0: i32, %arg1: i32) -> (i32, i32) {
    %c0_i32 = arith.constant 0 : i32
    %c0_i32_0 = arith.constant 0 : i32
    %c0_i32_1 = arith.constant 0 : i32
    return %c0_i32, %c0_i32_0 : i32, i32
  }
  func.func @transform_18(%arg0: i32, %arg1: i32) -> (i32, i32) {
    %c0_i32 = arith.constant 0 : i32
    %c0_i32_0 = arith.constant 0 : i32
    %c0_i32_1 = arith.constant 0 : i32
    return %c0_i32, %c0_i32_0 : i32, i32
  }
  func.func @transform_19(%arg0: i32, %arg1: i32) -> (i32, i32, i32) {
    %c0_i32 = arith.constant 0 : i32
    %c0_i32_0 = arith.constant 0 : i32
    %c0_i32_1 = arith.constant 0 : i32
    return %arg0, %c0_i32, %c0_i32_0 : i32, i32, i32
  }
}

</mosaic_0001>

<llo_original>
// kernel: tpu_custom_call.1
$region0: #{tpu_custom_call.1}
  #allocation0 [shape = 'u32[]', space=smem, size = 0x4, offset = 0x4, fixed_abs, tag = 'smem constant byte address 0x4 - core index']
  #allocation1 [shape = 'u32[144,128]{1,0:T(1,128)}', space=vmem, size = 0x12000, scoped, tag = 'internal scratch']
  #allocation2 [shape = 'f32[16,32]{1,0:T(8,128)}', space=vmem, size = 0x2000, scoped, tag = 'scratch operand']
  %s0 = inlined_call_operand.vmem [shape: f32[2,8,16], index: 0, kind: input, shape index: {}]
  %s1 = inlined_call_operand.vmem [shape: f32[8,32], index: 1, kind: input, shape index: {}]
  %s2 = inlined_call_operand.vmem [shape: bf16[16,32], index: 2, kind: input, shape index: {}]
  %s3 = inlined_call_operand.vmem [shape: f32[1,32], index: 3, kind: input, shape index: {}]
  %s4 = inlined_call_operand.vmem [shape: f32[2,1,32], index: 4, kind: input, shape index: {}]
  %s5 = inlined_call_operand.vmem [shape: f32[2,1,32], index: 5, kind: input, shape index: {}]
  %s6 = inlined_call_operand.vmem [shape: bf16[2,32,96], index: 6, kind: input, shape index: {}]
  %s7 = inlined_call_operand.vmem [shape: f32[2,1,96], index: 7, kind: input, shape index: {}]
  %s8 = inlined_call_operand.vmem [shape: bf16[2,32,32], index: 8, kind: input, shape index: {}]
  %s9 = inlined_call_operand.vmem [shape: f32[2,1,32], index: 9, kind: input, shape index: {}]
  %s10 = inlined_call_operand.vmem [shape: f32[2,1,32], index: 10, kind: input, shape index: {}]
  %s11 = inlined_call_operand.vmem [shape: f32[2,1,32], index: 11, kind: input, shape index: {}]
  %s12 = inlined_call_operand.vmem [shape: bf16[2,32,128], index: 12, kind: input, shape index: {}]
  %s13 = inlined_call_operand.vmem [shape: f32[2,1,128], index: 13, kind: input, shape index: {}]
  %s14 = inlined_call_operand.vmem [shape: bf16[2,128,32], index: 14, kind: input, shape index: {}]
  %s15 = inlined_call_operand.vmem [shape: f32[2,1,32], index: 15, kind: input, shape index: {}]
  %s16 = inlined_call_operand.vmem [shape: f32[1,32], index: 16, kind: input, shape index: {}]
  %s17 = inlined_call_operand.vmem [shape: f32[1,32], index: 17, kind: input, shape index: {}]
  %s18 = inlined_call_operand.vmem [shape: bf16[32,128], index: 18, kind: input, shape index: {}]
  %s19 = inlined_call_operand.hbm [shape: f32[2,8,128], index: 19, kind: output, shape index: {}]
  %s20 = sld [smem:[#allocation0]]
  $region117: #{tpu_custom_call.1} parent=0
    _
  %s22 = ssub.s32 1, %s20
  %s23 = scalar_select 0, %s22, %s20
  $region1: #{tpu_custom_call.1} parent=0
    #allocation3 [shape = 'u8[8192]{0}', space=vmem, size = 0x2000, scoped, tag = 'output window, operand 0, single buffered']
    #allocation4 [shape = 's32[2]{0}', space=sflag, size = 0x8, scoped, tag = 'scoped memory for tpu_custom_call.1']
    %24 = vsyncpa [#allocation4], 0
    loop: start=0, step=1, limit=4
    $region2: #{tpu_custom_call.1} parent=1 // loop_pre_header
      _
    $region3: #{tpu_custom_call.1} parent=1 // loop_header
      %s26 = sphi 0, %s30
      %p27 = scmp.ge.s32.totalorder %s26, 4
      %s33 = sphi 0, %s45
      %s34 = sphi 0, %s41
      %s35 = sphi 0, %s33
      %s36 = sphi 0, %s34
      %s37 = sphi 0, %s35
      %s38 = sphi 0, %s36
      %s48 = sphi 0, %s50
      %s51 = sphi 0, %s48
      %s52 = sphi 0, %s51
      %s68 = sphi 0, %s52
      %s72 = sphi 0, %s72
      %s74 = sphi 0, %s72
      %s75 = sphi 0, %s74
      %s89 = sphi 0, %s75
      %s93 = sphi 0, %s93
      %s95 = sphi 0, %s93
      %s96 = sphi 0, %s95
      %s110 = sphi 0, %s96
      %s114 = sphi 0, %s114
      %s116 = sphi 0, %s114
      %s117 = sphi 0, %s116
      %s131 = sphi 0, %s117
      %s137 = sphi 0, %s139
      %s140 = sphi 0, %s137
      %s141 = sphi 0, %s140
      %s157 = sphi 0, %s141
      %s163 = sphi 0, %s165
      %s166 = sphi 0, %s163
      %s167 = sphi 0, %s166
      %s183 = sphi 0, %s167
      %s189 = sphi 0, %s191
      %s192 = sphi 0, %s189
      %s193 = sphi 0, %s192
      %s209 = sphi 0, %s193
      %s215 = sphi 0, %s217
      %s218 = sphi 0, %s215
      %s219 = sphi 0, %s218
      %s235 = sphi 0, %s219
      %s241 = sphi 0, %s243
      %s244 = sphi 0, %s241
      %s245 = sphi 0, %s244
      %s261 = sphi 0, %s245
      %s267 = sphi 0, %s269
      %s270 = sphi 0, %s267
      %s271 = sphi 0, %s270
      %s287 = sphi 0, %s271
      %s293 = sphi 0, %s295
      %s296 = sphi 0, %s293
      %s297 = sphi 0, %s296
      %s313 = sphi 0, %s297
      %s319 = sphi 0, %s321
      %s322 = sphi 0, %s319
      %s323 = sphi 0, %s322
      %s339 = sphi 0, %s323
      %s345 = sphi 0, %s347
      %s348 = sphi 0, %s345
      %s349 = sphi 0, %s348
      %s365 = sphi 0, %s349
      %s371 = sphi 0, %s373
      %s374 = sphi 0, %s371
      %s375 = sphi 0, %s374
      %s391 = sphi 0, %s375
      %s397 = sphi 0, %s399
      %s400 = sphi 0, %s397
      %s401 = sphi 0, %s400
      %s417 = sphi 0, %s401
      %s423 = sphi 0, %s425
      %s426 = sphi 0, %s423
      %s427 = sphi 0, %s426
      %s443 = sphi 0, %s427
      %s447 = sphi 0, %s447
      %s449 = sphi 0, %s447
      %s450 = sphi 0, %s449
      %s464 = sphi 0, %s450
      %s468 = sphi 0, %s468
      %s470 = sphi 0, %s468
      %s471 = sphi 0, %s470
      %s485 = sphi 0, %s471
      %s489 = sphi 0, %s489
      %s491 = sphi 0, %s489
      %s492 = sphi 0, %s491
      %s506 = sphi 0, %s492
      %s512 = sphi 0, %s514
      %s515 = sphi 0, %s512
      %s516 = sphi 0, %s515
      %s532 = sphi 0, %s516
    $region4: #{tpu_custom_call.1} parent=1 // loop_header_branch
      %29 = sbr.rel (%p27) target = $region8
    $region5: #{tpu_custom_call.1} parent=1 // loop_body
      %s31 = ssub.s32 %s26, 1
      %s32 = ssub.s32 %s26, 2
      %s39 = sadd.s32 1, %s34
      %p40 = scmp.ge.s32.totalorder %s39, 2
      %s41 = scalar_select %p40, 0, %s39
      %s42 = sadd.s32 1, %s33
      %s43 = scalar_select %p40, %s42, %s33
      %p44 = scmp.ge.s32.totalorder %s43, 1
      %s45 = scalar_select %p44, 0, %s43
      %s46 = ssub.s32 %s33, %s45
      %p47 = scmp.eq.s32.totalorder %s46, 0
      %s49 = sadd.s32 %s48, 1
      %s50 = scalar_select %p47, %s48, %s49
      %p53 = pneg %p47
      %p54 = scmp.eq.s32.totalorder %s26, 1
      %p55 = por %p53, %p54
      %p56 = scmp.ne.s32.totalorder %s48, %s51
      %p57 = scmp.eq.s32.totalorder %s26, 0
      %p58 = por %p56, %p57
      %p59 = scmp.ne.s32.totalorder %s48, %s51
      %p60 = scmp.eq.s32.totalorder %s31, 1
      %p61 = por %p59, %p60
      %p62 = scmp.ne.s32.totalorder %s51, %s52
      %p63 = scmp.eq.s32.totalorder %s31, 0
      %p64 = por %p62, %p63
      %p65 = scmp.ne.s32.totalorder %s51, %s52
      %p66 = scmp.eq.s32.totalorder %s32, 1
      %p67 = por %p65, %p66
      %p69 = scmp.ne.s32.totalorder %s52, %s68
      %p70 = scmp.eq.s32.totalorder %s32, 0
      %p71 = por %p69, %p70
      %s73 = sadd.s32 %s72, 1
      %p76 = scmp.eq.s32.totalorder %s26, 1
      %p77 = scmp.ne.s32.totalorder %s72, %s74
      %p78 = scmp.eq.s32.totalorder %s26, 0
      %p79 = por %p77, %p78
      %p80 = scmp.ne.s32.totalorder %s72, %s74
      %p81 = scmp.eq.s32.totalorder %s31, 1
      %p82 = por %p80, %p81
      %p83 = scmp.ne.s32.totalorder %s74, %s75
      %p84 = scmp.eq.s32.totalorder %s31, 0
      %p85 = por %p83, %p84
      %p86 = scmp.ne.s32.totalorder %s74, %s75
      %p87 = scmp.eq.s32.totalorder %s32, 1
      %p88 = por %p86, %p87
      %p90 = scmp.ne.s32.totalorder %s75, %s89
      %p91 = scmp.eq.s32.totalorder %s32, 0
      %p92 = por %p90, %p91
      %s94 = sadd.s32 %s93, 1
      %p97 = scmp.eq.s32.totalorder %s26, 1
      %p98 = scmp.ne.s32.totalorder %s93, %s95
      %p99 = scmp.eq.s32.totalorder %s26, 0
      %p100 = por %p98, %p99
      %p101 = scmp.ne.s32.totalorder %s93, %s95
      %p102 = scmp.eq.s32.totalorder %s31, 1
      %p103 = por %p101, %p102
      %p104 = scmp.ne.s32.totalorder %s95, %s96
      %p105 = scmp.eq.s32.totalorder %s31, 0
      %p106 = por %p104, %p105
      %p107 = scmp.ne.s32.totalorder %s95, %s96
      %p108 = scmp.eq.s32.totalorder %s32, 1
      %p109 = por %p107, %p108
      %p111 = scmp.ne.s32.totalorder %s96, %s110
      %p112 = scmp.eq.s32.totalorder %s32, 0
      %p113 = por %p111, %p112
      %s115 = sadd.s32 %s114, 1
      %p118 = scmp.eq.s32.totalorder %s26, 1
      %p119 = scmp.ne.s32.totalorder %s114, %s116
      %p120 = scmp.eq.s32.totalorder %s26, 0
      %p121 = por %p119, %p120
      %p122 = scmp.ne.s32.totalorder %s114, %s116
      %p123 = scmp.eq.s32.totalorder %s31, 1
      %p124 = por %p122, %p123
      %p125 = scmp.ne.s32.totalorder %s116, %s117
      %p126 = scmp.eq.s32.totalorder %s31, 0
      %p127 = por %p125, %p126
      %p128 = scmp.ne.s32.totalorder %s116, %s117
      %p129 = scmp.eq.s32.totalorder %s32, 1
      %p130 = por %p128, %p129
      %p132 = scmp.ne.s32.totalorder %s117, %s131
      %p133 = scmp.eq.s32.totalorder %s32, 0
      %p134 = por %p132, %p133
      %s135 = ssub.s32 %s34, %s41
      %p136 = scmp.eq.s32.totalorder %s135, 0
      %s138 = sadd.s32 %s137, 1
      %s139 = scalar_select %p136, %s137, %s138
      %p142 = pneg %p136
      %p143 = scmp.eq.s32.totalorder %s26, 1
      %p144 = por %p142, %p143
      %p145 = scmp.ne.s32.totalorder %s137, %s140
      %p146 = scmp.eq.s32.totalorder %s26, 0
      %p147 = por %p145, %p146
      %p148 = scmp.ne.s32.totalorder %s137, %s140
      %p149 = scmp.eq.s32.totalorder %s31, 1
      %p150 = por %p148, %p149
      %p151 = scmp.ne.s32.totalorder %s140, %s141
      %p152 = scmp.eq.s32.totalorder %s31, 0
      %p153 = por %p151, %p152
      %p154 = scmp.ne.s32.totalorder %s140, %s141
      %p155 = scmp.eq.s32.totalorder %s32, 1
      %p156 = por %p154, %p155
      %p158 = scmp.ne.s32.totalorder %s141, %s157
      %p159 = scmp.eq.s32.totalorder %s32, 0
      %p160 = por %p158, %p159
      %s161 = ssub.s32 %s34, %s41
      %p162 = scmp.eq.s32.totalorder %s161, 0
      %s164 = sadd.s32 %s163, 1
      %s165 = scalar_select %p162, %s163, %s164
      %p168 = pneg %p162
      %p169 = scmp.eq.s32.totalorder %s26, 1
      %p170 = por %p168, %p169
      %p171 = scmp.ne.s32.totalorder %s163, %s166
      %p172 = scmp.eq.s32.totalorder %s26, 0
      %p173 = por %p171, %p172
      %p174 = scmp.ne.s32.totalorder %s163, %s166
      %p175 = scmp.eq.s32.totalorder %s31, 1
      %p176 = por %p174, %p175
      %p177 = scmp.ne.s32.totalorder %s166, %s167
      %p178 = scmp.eq.s32.totalorder %s31, 0
      %p179 = por %p177, %p178
      %p180 = scmp.ne.s32.totalorder %s166, %s167
      %p181 = scmp.eq.s32.totalorder %s32, 1
      %p182 = por %p180, %p181
      %p184 = scmp.ne.s32.totalorder %s167, %s183
      %p185 = scmp.eq.s32.totalorder %s32, 0
      %p186 = por %p184, %p185
      %s187 = ssub.s32 %s34, %s41
      %p188 = scmp.eq.s32.totalorder %s187, 0
      %s190 = sadd.s32 %s189, 1
      %s191 = scalar_select %p188, %s189, %s190
      %p194 = pneg %p188
      %p195 = scmp.eq.s32.totalorder %s26, 1
      %p196 = por %p194, %p195
      %p197 = scmp.ne.s32.totalorder %s189, %s192
      %p198 = scmp.eq.s32.totalorder %s26, 0
      %p199 = por %p197, %p198
      %p200 = scmp.ne.s32.totalorder %s189, %s192
      %p201 = scmp.eq.s32.totalorder %s31, 1
      %p202 = por %p200, %p201
      %p203 = scmp.ne.s32.totalorder %s192, %s193
      %p204 = scmp.eq.s32.totalorder %s31, 0
      %p205 = por %p203, %p204
      %p206 = scmp.ne.s32.totalorder %s192, %s193
      %p207 = scmp.eq.s32.totalorder %s32, 1
      %p208 = por %p206, %p207
      %p210 = scmp.ne.s32.totalorder %s193, %s209
      %p211 = scmp.eq.s32.totalorder %s32, 0
      %p212 = por %p210, %p211
      %s213 = ssub.s32 %s34, %s41
      %p214 = scmp.eq.s32.totalorder %s213, 0
      %s216 = sadd.s32 %s215, 1
      %s217 = scalar_select %p214, %s215, %s216
      %p220 = pneg %p214
      %p221 = scmp.eq.s32.totalorder %s26, 1
      %p222 = por %p220, %p221
      %p223 = scmp.ne.s32.totalorder %s215, %s218
      %p224 = scmp.eq.s32.totalorder %s26, 0
      %p225 = por %p223, %p224
      %p226 = scmp.ne.s32.totalorder %s215, %s218
      %p227 = scmp.eq.s32.totalorder %s31, 1
      %p228 = por %p226, %p227
      %p229 = scmp.ne.s32.totalorder %s218, %s219
      %p230 = scmp.eq.s32.totalorder %s31, 0
      %p231 = por %p229, %p230
      %p232 = scmp.ne.s32.totalorder %s218, %s219
      %p233 = scmp.eq.s32.totalorder %s32, 1
      %p234 = por %p232, %p233
      %p236 = scmp.ne.s32.totalorder %s219, %s235
      %p237 = scmp.eq.s32.totalorder %s32, 0
      %p238 = por %p236, %p237
      %s239 = ssub.s32 %s34, %s41
      %p240 = scmp.eq.s32.totalorder %s239, 0
      %s242 = sadd.s32 %s241, 1
      %s243 = scalar_select %p240, %s241, %s242
      %p246 = pneg %p240
      %p247 = scmp.eq.s32.totalorder %s26, 1
      %p248 = por %p246, %p247
      %p249 = scmp.ne.s32.totalorder %s241, %s244
      %p250 = scmp.eq.s32.totalorder %s26, 0
      %p251 = por %p249, %p250
      %p252 = scmp.ne.s32.totalorder %s241, %s244
      %p253 = scmp.eq.s32.totalorder %s31, 1
      %p254 = por %p252, %p253
      %p255 = scmp.ne.s32.totalorder %s244, %s245
      %p256 = scmp.eq.s32.totalorder %s31, 0
      %p257 = por %p255, %p256
      %p258 = scmp.ne.s32.totalorder %s244, %s245
      %p259 = scmp.eq.s32.totalorder %s32, 1
      %p260 = por %p258, %p259
      %p262 = scmp.ne.s32.totalorder %s245, %s261
      %p263 = scmp.eq.s32.totalorder %s32, 0
      %p264 = por %p262, %p263
      %s265 = ssub.s32 %s34, %s41
      %p266 = scmp.eq.s32.totalorder %s265, 0
      %s268 = sadd.s32 %s267, 1
      %s269 = scalar_select %p266, %s267, %s268
      %p272 = pneg %p266
      %p273 = scmp.eq.s32.totalorder %s26, 1
      %p274 = por %p272, %p273
      %p275 = scmp.ne.s32.totalorder %s267, %s270
      %p276 = scmp.eq.s32.totalorder %s26, 0
      %p277 = por %p275, %p276
      %p278 = scmp.ne.s32.totalorder %s267, %s270
      %p279 = scmp.eq.s32.totalorder %s31, 1
      %p280 = por %p278, %p279
      %p281 = scmp.ne.s32.totalorder %s270, %s271
      %p282 = scmp.eq.s32.totalorder %s31, 0
      %p283 = por %p281, %p282
      %p284 = scmp.ne.s32.totalorder %s270, %s271
      %p285 = scmp.eq.s32.totalorder %s32, 1
      %p286 = por %p284, %p285
      %p288 = scmp.ne.s32.totalorder %s271, %s287
      %p289 = scmp.eq.s32.totalorder %s32, 0
      %p290 = por %p288, %p289
      %s291 = ssub.s32 %s34, %s41
      %p292 = scmp.eq.s32.totalorder %s291, 0
      %s294 = sadd.s32 %s293, 1
      %s295 = scalar_select %p292, %s293, %s294
      %p298 = pneg %p292
      %p299 = scmp.eq.s32.totalorder %s26, 1
      %p300 = por %p298, %p299
      %p301 = scmp.ne.s32.totalorder %s293, %s296
      %p302 = scmp.eq.s32.totalorder %s26, 0
      %p303 = por %p301, %p302
      %p304 = scmp.ne.s32.totalorder %s293, %s296
      %p305 = scmp.eq.s32.totalorder %s31, 1
      %p306 = por %p304, %p305
      %p307 = scmp.ne.s32.totalorder %s296, %s297
      %p308 = scmp.eq.s32.totalorder %s31, 0
      %p309 = por %p307, %p308
      %p310 = scmp.ne.s32.totalorder %s296, %s297
      %p311 = scmp.eq.s32.totalorder %s32, 1
      %p312 = por %p310, %p311
      %p314 = scmp.ne.s32.totalorder %s297, %s313
      %p315 = scmp.eq.s32.totalorder %s32, 0
      %p316 = por %p314, %p315
      %s317 = ssub.s32 %s34, %s41
      %p318 = scmp.eq.s32.totalorder %s317, 0
      %s320 = sadd.s32 %s319, 1
      %s321 = scalar_select %p318, %s319, %s320
      %p324 = pneg %p318
      %p325 = scmp.eq.s32.totalorder %s26, 1
      %p326 = por %p324, %p325
      %p327 = scmp.ne.s32.totalorder %s319, %s322
      %p328 = scmp.eq.s32.totalorder %s26, 0
      %p329 = por %p327, %p328
      %p330 = scmp.ne.s32.totalorder %s319, %s322
      %p331 = scmp.eq.s32.totalorder %s31, 1
      %p332 = por %p330, %p331
      %p333 = scmp.ne.s32.totalorder %s322, %s323
      %p334 = scmp.eq.s32.totalorder %s31, 0
      %p335 = por %p333, %p334
      %p336 = scmp.ne.s32.totalorder %s322, %s323
      %p337 = scmp.eq.s32.totalorder %s32, 1
      %p338 = por %p336, %p337
      %p340 = scmp.ne.s32.totalorder %s323, %s339
      %p341 = scmp.eq.s32.totalorder %s32, 0
      %p342 = por %p340, %p341
      %s343 = ssub.s32 %s34, %s41
      %p344 = scmp.eq.s32.totalorder %s343, 0
      %s346 = sadd.s32 %s345, 1
      %s347 = scalar_select %p344, %s345, %s346
      %p350 = pneg %p344
      %p351 = scmp.eq.s32.totalorder %s26, 1
      %p352 = por %p350, %p351
      %p353 = scmp.ne.s32.totalorder %s345, %s348
      %p354 = scmp.eq.s32.totalorder %s26, 0
      %p355 = por %p353, %p354
      %p356 = scmp.ne.s32.totalorder %s345, %s348
      %p357 = scmp.eq.s32.totalorder %s31, 1
      %p358 = por %p356, %p357
      %p359 = scmp.ne.s32.totalorder %s348, %s349
      %p360 = scmp.eq.s32.totalorder %s31, 0
      %p361 = por %p359, %p360
      %p362 = scmp.ne.s32.totalorder %s348, %s349
      %p363 = scmp.eq.s32.totalorder %s32, 1
      %p364 = por %p362, %p363
      %p366 = scmp.ne.s32.totalorder %s349, %s365
      %p367 = scmp.eq.s32.totalorder %s32, 0
      %p368 = por %p366, %p367
      %s369 = ssub.s32 %s34, %s41
      %p370 = scmp.eq.s32.totalorder %s369, 0
      %s372 = sadd.s32 %s371, 1
      %s373 = scalar_select %p370, %s371, %s372
      %p376 = pneg %p370
      %p377 = scmp.eq.s32.totalorder %s26, 1
      %p378 = por %p376, %p377
      %p379 = scmp.ne.s32.totalorder %s371, %s374
      %p380 = scmp.eq.s32.totalorder %s26, 0
      %p381 = por %p379, %p380
      %p382 = scmp.ne.s32.totalorder %s371, %s374
      %p383 = scmp.eq.s32.totalorder %s31, 1
      %p384 = por %p382, %p383
      %p385 = scmp.ne.s32.totalorder %s374, %s375
      %p386 = scmp.eq.s32.totalorder %s31, 0
      %p387 = por %p385, %p386
      %p388 = scmp.ne.s32.totalorder %s374, %s375
      %p389 = scmp.eq.s32.totalorder %s32, 1
      %p390 = por %p388, %p389
      %p392 = scmp.ne.s32.totalorder %s375, %s391
      %p393 = scmp.eq.s32.totalorder %s32, 0
      %p394 = por %p392, %p393
      %s395 = ssub.s32 %s34, %s41
      %p396 = scmp.eq.s32.totalorder %s395, 0
      %s398 = sadd.s32 %s397, 1
      %s399 = scalar_select %p396, %s397, %s398
      %p402 = pneg %p396
      %p403 = scmp.eq.s32.totalorder %s26, 1
      %p404 = por %p402, %p403
      %p405 = scmp.ne.s32.totalorder %s397, %s400
      %p406 = scmp.eq.s32.totalorder %s26, 0
      %p407 = por %p405, %p406
      %p408 = scmp.ne.s32.totalorder %s397, %s400
      %p409 = scmp.eq.s32.totalorder %s31, 1
      %p410 = por %p408, %p409
      %p411 = scmp.ne.s32.totalorder %s400, %s401
      %p412 = scmp.eq.s32.totalorder %s31, 0
      %p413 = por %p411, %p412
      %p414 = scmp.ne.s32.totalorder %s400, %s401
      %p415 = scmp.eq.s32.totalorder %s32, 1
      %p416 = por %p414, %p415
      %p418 = scmp.ne.s32.totalorder %s401, %s417
      %p419 = scmp.eq.s32.totalorder %s32, 0
      %p420 = por %p418, %p419
      %s421 = ssub.s32 %s34, %s41
      %p422 = scmp.eq.s32.totalorder %s421, 0
      %s424 = sadd.s32 %s423, 1
      %s425 = scalar_select %p422, %s423, %s424
      %p428 = pneg %p422
      %p429 = scmp.eq.s32.totalorder %s26, 1
      %p430 = por %p428, %p429
      %p431 = scmp.ne.s32.totalorder %s423, %s426
      %p432 = scmp.eq.s32.totalorder %s26, 0
      %p433 = por %p431, %p432
      %p434 = scmp.ne.s32.totalorder %s423, %s426
      %p435 = scmp.eq.s32.totalorder %s31, 1
      %p436 = por %p434, %p435
      %p437 = scmp.ne.s32.totalorder %s426, %s427
      %p438 = scmp.eq.s32.totalorder %s31, 0
      %p439 = por %p437, %p438
      %p440 = scmp.ne.s32.totalorder %s426, %s427
      %p441 = scmp.eq.s32.totalorder %s32, 1
      %p442 = por %p440, %p441
      %p444 = scmp.ne.s32.totalorder %s427, %s443
      %p445 = scmp.eq.s32.totalorder %s32, 0
      %p446 = por %p444, %p445
      %s448 = sadd.s32 %s447, 1
      %p451 = scmp.eq.s32.totalorder %s26, 1
      %p452 = scmp.ne.s32.totalorder %s447, %s449
      %p453 = scmp.eq.s32.totalorder %s26, 0
      %p454 = por %p452, %p453
      %p455 = scmp.ne.s32.totalorder %s447, %s449
      %p456 = scmp.eq.s32.totalorder %s31, 1
      %p457 = por %p455, %p456
      %p458 = scmp.ne.s32.totalorder %s449, %s450
      %p459 = scmp.eq.s32.totalorder %s31, 0
      %p460 = por %p458, %p459
      %p461 = scmp.ne.s32.totalorder %s449, %s450
      %p462 = scmp.eq.s32.totalorder %s32, 1
      %p463 = por %p461, %p462
      %p465 = scmp.ne.s32.totalorder %s450, %s464
      %p466 = scmp.eq.s32.totalorder %s32, 0
      %p467 = por %p465, %p466
      %s469 = sadd.s32 %s468, 1
      %p472 = scmp.eq.s32.totalorder %s26, 1
      %p473 = scmp.ne.s32.totalorder %s468, %s470
      %p474 = scmp.eq.s32.totalorder %s26, 0
      %p475 = por %p473, %p474
      %p476 = scmp.ne.s32.totalorder %s468, %s470
      %p477 = scmp.eq.s32.totalorder %s31, 1
      %p478 = por %p476, %p477
      %p479 = scmp.ne.s32.totalorder %s470, %s471
      %p480 = scmp.eq.s32.totalorder %s31, 0
      %p481 = por %p479, %p480
      %p482 = scmp.ne.s32.totalorder %s470, %s471
      %p483 = scmp.eq.s32.totalorder %s32, 1
      %p484 = por %p482, %p483
      %p486 = scmp.ne.s32.totalorder %s471, %s485
      %p487 = scmp.eq.s32.totalorder %s32, 0
      %p488 = por %p486, %p487
      %s490 = sadd.s32 %s489, 1
      %p493 = scmp.eq.s32.totalorder %s26, 1
      %p494 = scmp.ne.s32.totalorder %s489, %s491
      %p495 = scmp.eq.s32.totalorder %s26, 0
      %p496 = por %p494, %p495
      %p497 = scmp.ne.s32.totalorder %s489, %s491
      %p498 = scmp.eq.s32.totalorder %s31, 1
      %p499 = por %p497, %p498
      %p500 = scmp.ne.s32.totalorder %s491, %s492
      %p501 = scmp.eq.s32.totalorder %s31, 0
      %p502 = por %p500, %p501
      %p503 = scmp.ne.s32.totalorder %s491, %s492
      %p504 = scmp.eq.s32.totalorder %s32, 1
      %p505 = por %p503, %p504
      %p507 = scmp.ne.s32.totalorder %s492, %s506
      %p508 = scmp.eq.s32.totalorder %s32, 0
      %p509 = por %p507, %p508
      %s510 = ssub.s32 %s33, %s45
      %p511 = scmp.eq.s32.totalorder %s510, 0
      %s513 = sadd.s32 %s512, 1
      %s514 = scalar_select %p511, %s512, %s513
      %p517 = pneg %p511
      %p518 = scmp.eq.s32.totalorder %s26, 1
      %p519 = por %p517, %p518
      %p520 = scmp.ne.s32.totalorder %s512, %s515
      %p521 = scmp.eq.s32.totalorder %s26, 0
      %p522 = por %p520, %p521
      %p523 = scmp.ne.s32.totalorder %s512, %s515
      %p524 = scmp.eq.s32.totalorder %s31, 1
      %p525 = por %p523, %p524
      %p526 = scmp.ne.s32.totalorder %s515, %s516
      %p527 = scmp.eq.s32.totalorder %s31, 0
      %p528 = por %p526, %p527
      %p529 = scmp.ne.s32.totalorder %s515, %s516
      %p530 = scmp.eq.s32.totalorder %s32, 1
      %p531 = por %p529, %p530
      %p533 = scmp.ne.s32.totalorder %s516, %s532
      %p534 = scmp.eq.s32.totalorder %s32, 0
      %p535 = por %p533, %p534
      %p536 = scmp.le.s32.totalorder 1, %s26
      %p537 = scmp.lt.s32.totalorder %s26, 3
      %p538 = pnand %p536, %p537
      %p539 = pneg %p538
      // Predicated region
      $region9: #{tpu_custom_call.1} parent=5 // pred_check
        _
      $region10: #{tpu_custom_call.1} parent=5 // pred_check_branch
        %541 = sbr.rel (%p538) target = $region12
      $region11: #{tpu_custom_call.1} parent=5 // pred_region
        %s542 = ssub.s32 %s26, 1
        // Predicated region
        $region13: #{tpu_custom_call.1} parent=11 // pred_check
          %p543 = pneg %p64
        $region14: #{tpu_custom_call.1} parent=11 // pred_check_branch
          %545 = sbr.rel (%p543) target = $region16
        $region15: #{tpu_custom_call.1} parent=11 // pred_region
          %s546 = smul.u32 2, %s35
          %p547 = scmp.lt.s32.totalorder %s546, 1
          %s548 = scalar_select %p547, %s546, 1
          %s549 = smul.addr %s548, 8
          %s550 = scalar_lea.vmem %s0, %s549
          %s551 = smul.u32 2, %s35
        $region16: #{tpu_custom_call.1} parent=11 // pred_fallthru
          _
        // Predicated region
        $region17: #{tpu_custom_call.1} parent=11 // pred_check
          %p552 = pneg %p85
        $region18: #{tpu_custom_call.1} parent=11 // pred_check_branch
          %554 = sbr.rel (%p552) target = $region20
        $region19: #{tpu_custom_call.1} parent=11 // pred_region
          _
        $region20: #{tpu_custom_call.1} parent=11 // pred_fallthru
          _
        // Predicated region
        $region21: #{tpu_custom_call.1} parent=11 // pred_check
          %p555 = pneg %p106
        $region22: #{tpu_custom_call.1} parent=11 // pred_check_branch
          %557 = sbr.rel (%p555) target = $region24
        $region23: #{tpu_custom_call.1} parent=11 // pred_region
          _
        $region24: #{tpu_custom_call.1} parent=11 // pred_fallthru
          _
        // Predicated region
        $region25: #{tpu_custom_call.1} parent=11 // pred_check
          %p558 = pneg %p127
        $region26: #{tpu_custom_call.1} parent=11 // pred_check_branch
          %560 = sbr.rel (%p558) target = $region28
        $region27: #{tpu_custom_call.1} parent=11 // pred_region
          _
        $region28: #{tpu_custom_call.1} parent=11 // pred_fallthru
          _
        // Predicated region
        $region29: #{tpu_custom_call.1} parent=11 // pred_check
          %p561 = pneg %p460
        $region30: #{tpu_custom_call.1} parent=11 // pred_check_branch
          %563 = sbr.rel (%p561) target = $region32
        $region31: #{tpu_custom_call.1} parent=11 // pred_region
          _
        $region32: #{tpu_custom_call.1} parent=11 // pred_fallthru
          _
        // Predicated region
        $region33: #{tpu_custom_call.1} parent=11 // pred_check
          %p564 = pneg %p481
        $region34: #{tpu_custom_call.1} parent=11 // pred_check_branch
          %566 = sbr.rel (%p564) target = $region36
        $region35: #{tpu_custom_call.1} parent=11 // pred_region
          _
        $region36: #{tpu_custom_call.1} parent=11 // pred_fallthru
          _
        // Predicated region
        $region37: #{tpu_custom_call.1} parent=11 // pred_check
          %p567 = pneg %p502
        $region38: #{tpu_custom_call.1} parent=11 // pred_check_branch
          %569 = sbr.rel (%p567) target = $region40
        $region39: #{tpu_custom_call.1} parent=11 // pred_region
          _
        $region40: #{tpu_custom_call.1} parent=11 // pred_fallthru
          _
      $region12: #{tpu_custom_call.1} parent=5 // pred_fallthru
        _
      %p570 = scmp.lt.s32.totalorder %s26, 2
      // Predicated region
      $region41: #{tpu_custom_call.1} parent=5 // pred_check
        %p571 = pneg %p570
      $region42: #{tpu_custom_call.1} parent=5 // pred_check_branch
        %573 = sbr.rel (%p571) target = $region44
      $region43: #{tpu_custom_call.1} parent=5 // pred_region
        // Predicated region
        $region45: #{tpu_custom_call.1} parent=43 // pred_check
          %p574 = pneg %p147
        $region46: #{tpu_custom_call.1} parent=43 // pred_check_branch
          %576 = sbr.rel (%p574) target = $region48
        $region47: #{tpu_custom_call.1} parent=43 // pred_region
          %p577 = scmp.lt.s32.totalorder %s34, 1
          %s578 = scalar_select %p577, %s34, 1
          %s579 = scalar_lea.vmem %s4, %s578
        $region48: #{tpu_custom_call.1} parent=43 // pred_fallthru
          _
        // Predicated region
        $region49: #{tpu_custom_call.1} parent=43 // pred_check
          %p580 = pneg %p173
        $region50: #{tpu_custom_call.1} parent=43 // pred_check_branch
          %582 = sbr.rel (%p580) target = $region52
        $region51: #{tpu_custom_call.1} parent=43 // pred_region
          %p583 = scmp.lt.s32.totalorder %s34, 1
          %s584 = scalar_select %p583, %s34, 1
          %s585 = scalar_lea.vmem %s5, %s584
        $region52: #{tpu_custom_call.1} parent=43 // pred_fallthru
          _
        // Predicated region
        $region53: #{tpu_custom_call.1} parent=43 // pred_check
          %p586 = pneg %p199
        $region54: #{tpu_custom_call.1} parent=43 // pred_check_branch
          %588 = sbr.rel (%p586) target = $region56
        $region55: #{tpu_custom_call.1} parent=43 // pred_region
          %p589 = scmp.lt.s32.totalorder %s34, 1
          %s590 = scalar_select %p589, %s34, 1
          %s591 = smul.addr %s590, 4
          %s592 = smul.addr %s591, 4
          %s593 = scalar_lea.vmem %s6, %s592
        $region56: #{tpu_custom_call.1} parent=43 // pred_fallthru
          _
        // Predicated region
        $region57: #{tpu_custom_call.1} parent=43 // pred_check
          %p594 = pneg %p225
        $region58: #{tpu_custom_call.1} parent=43 // pred_check_branch
          %596 = sbr.rel (%p594) target = $region60
        $region59: #{tpu_custom_call.1} parent=43 // pred_region
          %p597 = scmp.lt.s32.totalorder %s34, 1
          %s598 = scalar_select %p597, %s34, 1
          %s599 = scalar_lea.vmem %s7, %s598
        $region60: #{tpu_custom_call.1} parent=43 // pred_fallthru
          _
        // Predicated region
        $region61: #{tpu_custom_call.1} parent=43 // pred_check
          %p600 = pneg %p251
        $region62: #{tpu_custom_call.1} parent=43 // pred_check_branch
          %602 = sbr.rel (%p600) target = $region64
        $region63: #{tpu_custom_call.1} parent=43 // pred_region
          %p603 = scmp.lt.s32.totalorder %s34, 1
          %s604 = scalar_select %p603, %s34, 1
          %s605 = smul.addr %s604, 4
          %s606 = smul.addr %s605, 4
          %s607 = scalar_lea.vmem %s8, %s606
        $region64: #{tpu_custom_call.1} parent=43 // pred_fallthru
          _
        // Predicated region
        $region65: #{tpu_custom_call.1} parent=43 // pred_check
          %p608 = pneg %p277
        $region66: #{tpu_custom_call.1} parent=43 // pred_check_branch
          %610 = sbr.rel (%p608) target = $region68
        $region67: #{tpu_custom_call.1} parent=43 // pred_region
          %p611 = scmp.lt.s32.totalorder %s34, 1
          %s612 = scalar_select %p611, %s34, 1
          %s613 = scalar_lea.vmem %s9, %s612
        $region68: #{tpu_custom_call.1} parent=43 // pred_fallthru
          _
        // Predicated region
        $region69: #{tpu_custom_call.1} parent=43 // pred_check
          %p614 = pneg %p303
        $region70: #{tpu_custom_call.1} parent=43 // pred_check_branch
          %616 = sbr.rel (%p614) target = $region72
        $region71: #{tpu_custom_call.1} parent=43 // pred_region
          %p617 = scmp.lt.s32.totalorder %s34, 1
          %s618 = scalar_select %p617, %s34, 1
          %s619 = scalar_lea.vmem %s10, %s618
        $region72: #{tpu_custom_call.1} parent=43 // pred_fallthru
          _
        // Predicated region
        $region73: #{tpu_custom_call.1} parent=43 // pred_check
          %p620 = pneg %p329
        $region74: #{tpu_custom_call.1} parent=43 // pred_check_branch
          %622 = sbr.rel (%p620) target = $region76
        $region75: #{tpu_custom_call.1} parent=43 // pred_region
          %p623 = scmp.lt.s32.totalorder %s34, 1
          %s624 = scalar_select %p623, %s34, 1
          %s625 = scalar_lea.vmem %s11, %s624
        $region76: #{tpu_custom_call.1} parent=43 // pred_fallthru
          _
        // Predicated region
        $region77: #{tpu_custom_call.1} parent=43 // pred_check
          %p626 = pneg %p355
        $region78: #{tpu_custom_call.1} parent=43 // pred_check_branch
          %628 = sbr.rel (%p626) target = $region80
        $region79: #{tpu_custom_call.1} parent=43 // pred_region
          %p629 = scmp.lt.s32.totalorder %s34, 1
          %s630 = scalar_select %p629, %s34, 1
          %s631 = smul.addr %s630, 4
          %s632 = smul.addr %s631, 4
          %s633 = scalar_lea.vmem %s12, %s632
        $region80: #{tpu_custom_call.1} parent=43 // pred_fallthru
          _
        // Predicated region
        $region81: #{tpu_custom_call.1} parent=43 // pred_check
          %p634 = pneg %p381
        $region82: #{tpu_custom_call.1} parent=43 // pred_check_branch
          %636 = sbr.rel (%p634) target = $region84
        $region83: #{tpu_custom_call.1} parent=43 // pred_region
          %p637 = scmp.lt.s32.totalorder %s34, 1
          %s638 = scalar_select %p637, %s34, 1
          %s639 = scalar_lea.vmem %s13, %s638
        $region84: #{tpu_custom_call.1} parent=43 // pred_fallthru
          _
        // Predicated region
        $region85: #{tpu_custom_call.1} parent=43 // pred_check
          %p640 = pneg %p407
        $region86: #{tpu_custom_call.1} parent=43 // pred_check_branch
          %642 = sbr.rel (%p640) target = $region88
        $region87: #{tpu_custom_call.1} parent=43 // pred_region
          %p643 = scmp.lt.s32.totalorder %s34, 1
          %s644 = scalar_select %p643, %s34, 1
          %s645 = smul.addr %s644, 16
          %s646 = smul.addr %s645, 4
          %s647 = scalar_lea.vmem %s14, %s646
        $region88: #{tpu_custom_call.1} parent=43 // pred_fallthru
          _
        // Predicated region
        $region89: #{tpu_custom_call.1} parent=43 // pred_check
          %p648 = pneg %p433
        $region90: #{tpu_custom_call.1} parent=43 // pred_check_branch
          %650 = sbr.rel (%p648) target = $region92
        $region91: #{tpu_custom_call.1} parent=43 // pred_region
          %p651 = scmp.lt.s32.totalorder %s34, 1
          %s652 = scalar_select %p651, %s34, 1
          %s653 = scalar_lea.vmem %s15, %s652
        $region92: #{tpu_custom_call.1} parent=43 // pred_fallthru
          _
      $region44: #{tpu_custom_call.1} parent=5 // pred_fallthru
        _
      %p654 = scmp.le.s32.totalorder 1, %s26
      %p655 = scmp.lt.s32.totalorder %s26, 3
      %p656 = pnand %p654, %p655
      %p657 = pneg %p656
      // Predicated region
      $region93: #{tpu_custom_call.1} parent=5 // pred_check
        _
      $region94: #{tpu_custom_call.1} parent=5 // pred_check_branch
        %659 = sbr.rel (%p656) target = $region96
      $region95: #{tpu_custom_call.1} parent=5 // pred_region
        %s660 = ssub.s32 %s26, 1
        %s661 = smul.u32 2, %s35
        %p662 = scmp.lt.s32.totalorder %s661, 1
        %s663 = scalar_select %p662, %s661, 1
        %s664 = smul.addr %s663, 8
        %s665 = scalar_lea.vmem %s0, %s664
        %p666 = pneg %p64
        %p667 = pneg %p61
        %p668 = pneg %p85
        %p669 = pneg %p82
        %p670 = pneg %p106
        %p671 = pneg %p103
        %p672 = pneg %p127
        %p673 = pneg %p124
        %p674 = scmp.lt.s32.totalorder %s36, 1
        %s675 = scalar_select %p674, %s36, 1
        %s676 = scalar_lea.vmem %s4, %s675
        %p677 = pneg %p153
        %p678 = pneg %p150
        %p679 = scmp.lt.s32.totalorder %s36, 1
        %s680 = scalar_select %p679, %s36, 1
        %s681 = scalar_lea.vmem %s5, %s680
        %p682 = pneg %p179
        %p683 = pneg %p176
        %p684 = scmp.lt.s32.totalorder %s36, 1
        %s685 = scalar_select %p684, %s36, 1
        %s686 = smul.addr %s685, 4
        %s687 = smul.addr %s686, 4
        %s688 = scalar_lea.vmem %s6, %s687
        %p689 = pneg %p205
        %p690 = pneg %p202
        %p691 = scmp.lt.s32.totalorder %s36, 1
        %s692 = scalar_select %p691, %s36, 1
        %s693 = scalar_lea.vmem %s7, %s692
        %p694 = pneg %p231
        %p695 = pneg %p228
        %p696 = scmp.lt.s32.totalorder %s36, 1
        %s697 = scalar_select %p696, %s36, 1
        %s698 = smul.addr %s697, 4
        %s699 = smul.addr %s698, 4
        %s700 = scalar_lea.vmem %s8, %s699
        %p701 = pneg %p257
        %p702 = pneg %p254
        %p703 = scmp.lt.s32.totalorder %s36, 1
        %s704 = scalar_select %p703, %s36, 1
        %s705 = scalar_lea.vmem %s9, %s704
        %p706 = pneg %p283
        %p707 = pneg %p280
        %p708 = scmp.lt.s32.totalorder %s36, 1
        %s709 = scalar_select %p708, %s36, 1
        %s710 = scalar_lea.vmem %s10, %s709
        %p711 = pneg %p309
        %p712 = pneg %p306
        %p713 = scmp.lt.s32.totalorder %s36, 1
        %s714 = scalar_select %p713, %s36, 1
        %s715 = scalar_lea.vmem %s11, %s714
        %p716 = pneg %p335
        %p717 = pneg %p332
        %p718 = scmp.lt.s32.totalorder %s36, 1
        %s719 = scalar_select %p718, %s36, 1
        %s720 = smul.addr %s719, 4
        %s721 = smul.addr %s720, 4
        %s722 = scalar_lea.vmem %s12, %s721
        %p723 = pneg %p361
        %p724 = pneg %p358
        %p725 = scmp.lt.s32.totalorder %s36, 1
        %s726 = scalar_select %p725, %s36, 1
        %s727 = scalar_lea.vmem %s13, %s726
        %p728 = pneg %p387
        %p729 = pneg %p384
        %p730 = scmp.lt.s32.totalorder %s36, 1
        %s731 = scalar_select %p730, %s36, 1
        %s732 = smul.addr %s731, 16
        %s733 = smul.addr %s732, 4
        %s734 = scalar_lea.vmem %s14, %s733
        %p735 = pneg %p413
        %p736 = pneg %p410
        %p737 = scmp.lt.s32.totalorder %s36, 1
        %s738 = scalar_select %p737, %s36, 1
        %s739 = scalar_lea.vmem %s15, %s738
        %p740 = pneg %p439
        %p741 = pneg %p436
        %p742 = pneg %p460
        %p743 = pneg %p457
        %p744 = pneg %p481
        %p745 = pneg %p478
        %p746 = pneg %p502
        %p747 = pneg %p499
        %p748 = pneg %p528
        %p749 = pneg %p525
        %s750 = smul.u32 2, %s35
        %p751 = scmp.lt.s32.totalorder %s750, 1
        %s752 = scalar_select %p751, %s750, 1
        %s753 = smul.addr %s752, 8
        %s754 = scalar_lea.vmem %s0, %s753
        %s755 = smul.u32 2, %s35
        %p756 = scmp.lt.s32.totalorder %s36, 1
        %s757 = scalar_select %p756, %s36, 1
        %s758 = scalar_lea.vmem %s4, %s757
        %p759 = scmp.lt.s32.totalorder %s36, 1
        %s760 = scalar_select %p759, %s36, 1
        %s761 = scalar_lea.vmem %s5, %s760
        %p762 = scmp.lt.s32.totalorder %s36, 1
        %s763 = scalar_select %p762, %s36, 1
        %s764 = smul.addr %s763, 4
        %s765 = smul.addr %s764, 4
        %s766 = scalar_lea.vmem %s6, %s765
        %p767 = scmp.lt.s32.totalorder %s36, 1
        %s768 = scalar_select %p767, %s36, 1
        %s769 = scalar_lea.vmem %s7, %s768
        %p770 = scmp.lt.s32.totalorder %s36, 1
        %s771 = scalar_select %p770, %s36, 1
        %s772 = smul.addr %s771, 4
        %s773 = smul.addr %s772, 4
        %s774 = scalar_lea.vmem %s8, %s773
        %p775 = scmp.lt.s32.totalorder %s36, 1
        %s776 = scalar_select %p775, %s36, 1
        %s777 = scalar_lea.vmem %s9, %s776
        %p778 = scmp.lt.s32.totalorder %s36, 1
        %s779 = scalar_select %p778, %s36, 1
        %s780 = scalar_lea.vmem %s10, %s779
        %p781 = scmp.lt.s32.totalorder %s36, 1
        %s782 = scalar_select %p781, %s36, 1
        %s783 = scalar_lea.vmem %s11, %s782
        %p784 = scmp.lt.s32.totalorder %s36, 1
        %s785 = scalar_select %p784, %s36, 1
        %s786 = smul.addr %s785, 4
        %s787 = smul.addr %s786, 4
        %s788 = scalar_lea.vmem %s12, %s787
        %p789 = scmp.lt.s32.totalorder %s36, 1
        %s790 = scalar_select %p789, %s36, 1
        %s791 = scalar_lea.vmem %s13, %s790
        %p792 = scmp.lt.s32.totalorder %s36, 1
        %s793 = scalar_select %p792, %s36, 1
        %s794 = smul.addr %s793, 16
        %s795 = smul.addr %s794, 4
        %s796 = scalar_lea.vmem %s14, %s795
        %p797 = scmp.lt.s32.totalorder %s36, 1
        %s798 = scalar_select %p797, %s36, 1
        %s799 = scalar_lea.vmem %s15, %s798
        %s800 = smul.u32 2, %s35
        %p802 = scmp.eq.s32.totalorder %s36, 0
        // Predicated region
        $region97: #{tpu_custom_call.1} parent=95 // pred_check
          %p803 = pneg %p802
        $region98: #{tpu_custom_call.1} parent=95 // pred_check_branch
          %805 = sbr.rel (%p803) target = $region100
        $region99: #{tpu_custom_call.1} parent=95 // pred_region
          %v806 = vld [vmem:[%s754] sm:$0xff]
          %v807 = vld [vmem:[%s754 + $0x8] sm:$0xff]
          %v808 = vld [vmem:[%s2] sm:$0xf]
          %v809 = vld [vmem:[%s2 + $0x4] sm:$0xf]
          %v810 = vpack.c.bf16 %v807, %v806
          %v811 = vld [vmem:[%s3] sm:$0x1]
          %v813 = vlaneseq
          %v814 = vshrl.u32 %v813, 7
          %v815 = vsub.s32 0, %v814
          %v816 = vrot.slane %v811, %v815
          %v820 = vunpack.c.l.b16 %v808
          %v821 = vunpack.c.l.b16 %v809
          %v822 = vpack.c.b16 %v821, %v820
          %vm824 = vcmask 130048
          %v826 = vsel %vm824, %v810, 0
          %828 = vmatprep.subr.bf16.mxu0 0
          %829 = vmatpush1.bf16.msra.mxu0 0
          %830 = vmatprep.subr.bf16.mxu0 0
          %831 = vmatpush1.bf16.msra.mxu0 0
          %832 = vmatprep.subr.bf16.mxu0 0
          %833 = vmatpush1.bf16.msra.mxu0 0
          %834 = vmatprep.subr.bf16.mxu0 0
          %835 = vmatpush1.bf16.msra.mxu0 0
          %836 = vmatprep.subr.bf16.mxu0 0
          %837 = vmatpush1.bf16.msra.mxu0 0
          %838 = vmatprep.subr.bf16.mxu0 0
          %839 = vmatpush1.bf16.msra.mxu0 0
          %840 = vmatprep.subr.bf16.mxu0 0
          %841 = vmatpush1.bf16.msra.mxu0 0
          %842 = vmatprep.subr.bf16.mxu0 0
          %843 = vmatpush1.bf16.msra.mxu0 %v822
          %844 = vmatprep.subr.bf16.mxu0 0
          %845 = vmatpush2.bf16.msra.mxu0 0
          %846 = vmatprep.subr.bf16.mxu0 0
          %847 = vmatpush2.bf16.msra.mxu0 0
          %848 = vmatprep.subr.bf16.mxu0 0
          %849 = vmatpush2.bf16.msra.mxu0 0
          %850 = vmatprep.subr.bf16.mxu0 0
          %851 = vmatpush2.bf16.msra.mxu0 0
          %852 = vmatprep.subr.bf16.mxu0 0
          %853 = vmatpush2.bf16.msra.mxu0 0
          %854 = vmatprep.subr.bf16.mxu0 0
          %855 = vmatpush2.bf16.msra.mxu0 0
          %856 = vmatprep.subr.bf16.mxu0 0
          %857 = vmatpush2.bf16.msra.mxu0 0
          %858 = vmatprep.subr.bf16.mxu0 0
          %859 = vmatpush2.bf16.msra.mxu0 0
          %860 = vmatprep.mubr.bf16.mxu0 0
          %861 = vmatmul.mubr.bf16.gmra.mxu0 %v826
          %v862 = vpop.f32.mrf.mxu0
          %v863 = vadd.f32 %v816, %v862
          %v864 = vpop.f32.mrf.mxu0
          %v865 = vpop.f32.mrf.mxu0
          %v866 = vadd.f32 %v816, %v865
          %v867 = vpop.f32.mrf.mxu0
          %868 = vdwg.mxu0
          %v869 = vld [vmem:[%s1] sm:$0xff]
          %v870 = vadd.f32 %v863, %v869
          %v871 = vadd.f32 %v866, %v869
          %vm872 = vcmask 261120
          %873 = vst.msk [vmem:[#allocation2] sm:$0xff] %vm872, %v870
          %874 = vst.msk [vmem:[#allocation2 + $0x8] sm:$0xff] %vm872, %v871
        $region100: #{tpu_custom_call.1} parent=95 // pred_fallthru
          _
        %v875 = vlaneseq
        %v876 = vshrl.u32 %v875, 7
        %v877 = vlaneseq
        %v878 = vand.u32 %v877, 127
        %vm879 = vcmp.ge.s32.totalorder %v876, %v878
        %v880 = vsel %vm879, 0.0, -1e+30
        %v881 = vld [vmem:[#allocation2] sm:$0xff]
        %v882 = vld [vmem:[#allocation2 + $0x8] sm:$0xff]
        %v883 = vld [vmem:[%s758] sm:$0x1]
        %v884 = vld [vmem:[%s761] sm:$0x1]
        %vm885 = vcmask 261120
        %v886 = vsel %vm885, %v881, 0.0
        %887 = vadd.xlane.f32.xlu0 %v886
        %v888 = vpop.xlane.xlu0 %887
        %v889 = vsel %vm885, %v882, 0.0
        %890 = vadd.xlane.f32.xlu0 %v889
        %v891 = vpop.xlane.xlu0 %890
        %v892 = vrcp.pop 32.0
        %v893 = vmul.f32 %v888, %v892
        %v894 = vmul.f32 %v891, %v892
        %v895 = vsub.f32 %v881, %v893
        %v896 = vsub.f32 %v882, %v894
        %v897 = vmul.f32 %v895, %v895
        %v898 = vmul.f32 %v896, %v896
        %v899 = vsel %vm885, %v897, 0.0
        %900 = vadd.xlane.f32.xlu0 %v899
        %v901 = vpop.xlane.xlu0 %900
        %v902 = vsel %vm885, %v898, 0.0
        %903 = vadd.xlane.f32.xlu0 %v902
        %v904 = vpop.xlane.xlu0 %903
        %v905 = vmul.f32 %v901, %v892
        %v906 = vmul.f32 %v904, %v892
        %v907 = vadd.f32 %v905, 1e-05
        %v908 = vadd.f32 %v906, 1e-05
        %v909 = vrsqrt.pop %v907
        %v910 = vrsqrt.pop %v908
        %v911 = vmul.f32 %v895, %v909
        %v912 = vmul.f32 %v896, %v910
        %v914 = vlaneseq
        %v915 = vshrl.u32 %v914, 7
        %v916 = vsub.s32 0, %v915
        %v917 = vrot.slane %v883, %v916
        %v919 = vmul.f32 %v911, %v917
        %v920 = vmul.f32 %v912, %v917
        %v922 = vlaneseq
        %v923 = vshrl.u32 %v922, 7
        %v924 = vsub.s32 0, %v923
        %v925 = vrot.slane %v884, %v924
        %v927 = vadd.f32 %v919, %v925
        %v928 = vadd.f32 %v920, %v925
        %v929 = vld [vmem:[%s766] sm:$0xf]
        %v930 = vld [vmem:[%s766 + $0x4] sm:$0xf]
        %v931 = vld [vmem:[%s766 + $0x8] sm:$0xf]
        %v932 = vld [vmem:[%s766 + $0xc] sm:$0xf]
        %v933 = vpack.c.bf16 %v928, %v927
        %v934 = vld [vmem:[%s769] sm:$0x1]
        %v936 = vlaneseq
        %v937 = vshrl.u32 %v936, 7
        %v938 = vsub.s32 0, %v937
        %v939 = vrot.slane %v934, %v938
        %v945 = vunpack.c.l.b16 %v929
        %v946 = vunpack.c.l.b16 %v930
        %v947 = vunpack.c.l.b16 %v931
        %v948 = vunpack.c.l.b16 %v932
        %v949 = vpack.c.b16 %v946, %v945
        %v950 = vpack.c.b16 %v948, %v947
        %v954 = vsel %vm885, %v933, 0
        %956 = vmatprep.subr.bf16.mxu0 0
        %957 = vmatpush1.bf16.msra.mxu0 0
        %958 = vmatprep.subr.bf16.mxu0 0
        %959 = vmatpush1.bf16.msra.mxu0 0
        %960 = vmatprep.subr.bf16.mxu0 0
        %961 = vmatpush1.bf16.msra.mxu0 0
        %962 = vmatprep.subr.bf16.mxu0 0
        %963 = vmatpush1.bf16.msra.mxu0 0
        %964 = vmatprep.subr.bf16.mxu0 0
        %965 = vmatpush1.bf16.msra.mxu0 0
        %966 = vmatprep.subr.bf16.mxu0 0
        %967 = vmatpush1.bf16.msra.mxu0 0
        %968 = vmatprep.subr.bf16.mxu0 0
        %969 = vmatpush1.bf16.msra.mxu0 %v950
        %970 = vmatprep.subr.bf16.mxu0 0
        %971 = vmatpush1.bf16.msra.mxu0 %v949
        %972 = vmatprep.subr.bf16.mxu0 0
        %973 = vmatpush2.bf16.msra.mxu0 0
        %974 = vmatprep.subr.bf16.mxu0 0
        %975 = vmatpush2.bf16.msra.mxu0 0
        %976 = vmatprep.subr.bf16.mxu0 0
        %977 = vmatpush2.bf16.msra.mxu0 0
        %978 = vmatprep.subr.bf16.mxu0 0
        %979 = vmatpush2.bf16.msra.mxu0 0
        %980 = vmatprep.subr.bf16.mxu0 0
        %981 = vmatpush2.bf16.msra.mxu0 0
        %982 = vmatprep.subr.bf16.mxu0 0
        %983 = vmatpush2.bf16.msra.mxu0 0
        %984 = vmatprep.subr.bf16.mxu0 0
        %985 = vmatpush2.bf16.msra.mxu0 0
        %986 = vmatprep.subr.bf16.mxu0 0
        %987 = vmatpush2.bf16.msra.mxu0 0
        %988 = vmatprep.mubr.bf16.mxu0 0
        %989 = vmatmul.mubr.bf16.gmra.mxu0 %v954
        %v990 = vpop.f32.mrf.mxu0
        %v991 = vadd.f32 %v939, %v990
        %v992 = vpop.f32.mrf.mxu0
        %v993 = vpop.f32.mrf.mxu0
        %v994 = vadd.f32 %v939, %v993
        %v995 = vpop.f32.mrf.mxu0
        %996 = vdwg.mxu0
        %v997 = vpack.c.bf16 %v991, %v991
        %v998 = vpack.c.bf16 %v994, %v994
        %1000 = vrot.lane.b32.xlu0 %v997, 96
        %v1001 = vpop.permute.xlu0 %1000
        %vm1002 = vcmask 64512
        %v1004 = vsel %vm1002, %v997, 0
        %v1007 = vsel %vm1002, %v1001, 0
        %1009 = vmatprep.subr.bf16.mxu0 0
        %1010 = vmatpush1.bf16.xpose.msra.mxu0 0
        %1011 = vmatprep.subr.bf16.mxu0 0
        %1012 = vmatpush1.bf16.xpose.msra.mxu0 0
        %1013 = vmatprep.subr.bf16.mxu0 0
        %1014 = vmatpush1.bf16.xpose.msra.mxu0 0
        %1015 = vmatprep.subr.bf16.mxu0 0
        %1016 = vmatpush1.bf16.xpose.msra.mxu0 0
        %1017 = vmatprep.subr.bf16.mxu0 0
        %1018 = vmatpush1.bf16.xpose.msra.mxu0 0
        %1019 = vmatprep.subr.bf16.mxu0 0
        %1020 = vmatpush1.bf16.xpose.msra.mxu0 0
        %1021 = vmatprep.subr.bf16.mxu0 0
        %1022 = vmatpush1.bf16.xpose.msra.mxu0 0
        %1023 = vmatprep.subr.bf16.mxu0 0
        %1024 = vmatpush1.bf16.xpose.msra.mxu0 %v1007
        %1025 = vmatprep.subr.bf16.mxu0 0
        %1026 = vmatpush2.bf16.xpose.msra.mxu0 0
        %1027 = vmatprep.subr.bf16.mxu0 0
        %1028 = vmatpush2.bf16.xpose.msra.mxu0 0
        %1029 = vmatprep.subr.bf16.mxu0 0
        %1030 = vmatpush2.bf16.xpose.msra.mxu0 0
        %1031 = vmatprep.subr.bf16.mxu0 0
        %1032 = vmatpush2.bf16.xpose.msra.mxu0 0
        %1033 = vmatprep.subr.bf16.mxu0 0
        %1034 = vmatpush2.bf16.xpose.msra.mxu0 0
        %1035 = vmatprep.subr.bf16.mxu0 0
        %1036 = vmatpush2.bf16.xpose.msra.mxu0 0
        %1037 = vmatprep.subr.bf16.mxu0 0
        %1038 = vmatpush2.bf16.xpose.msra.mxu0 0
        %1039 = vmatprep.subr.bf16.mxu0 0
        %1040 = vmatpush2.bf16.xpose.msra.mxu0 0
        %1041 = vmatprep.mubr.bf16.mxu0 0
        %1042 = vmatmul.mubr.bf16.gmra.mxu0 %v1004
        %v1043 = vpop.f32.mrf.mxu0
        %v1044 = vadd.f32 0.0, %v1043
        %v1045 = vpop.f32.mrf.mxu0
        %v1046 = vpop.f32.mrf.mxu0
        %v1047 = vpop.f32.mrf.mxu0
        %1048 = vdwg.mxu0
        %1050 = vrot.lane.b32.xlu0 %v998, 96
        %v1051 = vpop.permute.xlu0 %1050
        %v1053 = vsel %vm1002, %v998, 0
        %v1056 = vsel %vm1002, %v1051, 0
        %1058 = vmatprep.subr.bf16.mxu0 0
        %1059 = vmatpush1.bf16.xpose.msra.mxu0 0
        %1060 = vmatprep.subr.bf16.mxu0 0
        %1061 = vmatpush1.bf16.xpose.msra.mxu0 0
        %1062 = vmatprep.subr.bf16.mxu0 0
        %1063 = vmatpush1.bf16.xpose.msra.mxu0 0
        %1064 = vmatprep.subr.bf16.mxu0 0
        %1065 = vmatpush1.bf16.xpose.msra.mxu0 0
        %1066 = vmatprep.subr.bf16.mxu0 0
        %1067 = vmatpush1.bf16.xpose.msra.mxu0 0
        %1068 = vmatprep.subr.bf16.mxu0 0
        %1069 = vmatpush1.bf16.xpose.msra.mxu0 0
        %1070 = vmatprep.subr.bf16.mxu0 0
        %1071 = vmatpush1.bf16.xpose.msra.mxu0 0
        %1072 = vmatprep.subr.bf16.mxu0 0
        %1073 = vmatpush1.bf16.xpose.msra.mxu0 %v1056
        %1074 = vmatprep.subr.bf16.mxu0 0
        %1075 = vmatpush2.bf16.xpose.msra.mxu0 0
        %1076 = vmatprep.subr.bf16.mxu0 0
        %1077 = vmatpush2.bf16.xpose.msra.mxu0 0
        %1078 = vmatprep.subr.bf16.mxu0 0
        %1079 = vmatpush2.bf16.xpose.msra.mxu0 0
        %1080 = vmatprep.subr.bf16.mxu0 0
        %1081 = vmatpush2.bf16.xpose.msra.mxu0 0
        %1082 = vmatprep.subr.bf16.mxu0 0
        %1083 = vmatpush2.bf16.xpose.msra.mxu0 0
        %1084 = vmatprep.subr.bf16.mxu0 0
        %1085 = vmatpush2.bf16.xpose.msra.mxu0 0
        %1086 = vmatprep.subr.bf16.mxu0 0
        %1087 = vmatpush2.bf16.xpose.msra.mxu0 0
        %1088 = vmatprep.subr.bf16.mxu0 0
        %1089 = vmatpush2.bf16.xpose.msra.mxu0 0
        %1090 = vmatprep.mubr.bf16.mxu0 0
        %1091 = vmatmul.mubr.bf16.gmra.mxu0 %v1053
        %v1092 = vpop.f32.mrf.mxu0
        %v1093 = vadd.f32 0.0, %v1092
        %v1094 = vpop.f32.mrf.mxu0
        %v1095 = vpop.f32.mrf.mxu0
        %v1096 = vpop.f32.mrf.mxu0
        %1097 = vdwg.mxu0
        %v1098 = vmul.f32 %v1044, 0.35355338
        %v1099 = vmul.f32 %v1093, 0.35355338
        %v1100 = vadd.f32 %v1098, %v880
        %v1101 = vadd.f32 %v1099, %v880
        %v1102 = vsel %vm1002, %v1100, -inf
        %1103 = vmax.xlane.f32.xlu0 %v1102
        %v1104 = vpop.xlane.xlu0 %1103
        %v1105 = vsel %vm1002, %v1101, -inf
        %1106 = vmax.xlane.f32.xlu0 %v1105
        %v1107 = vpop.xlane.xlu0 %1106
        %v1108 = vsub.f32 %v1100, %v1104
        %v1109 = vsub.f32 %v1101, %v1107
        %v1110 = vmul.f32 %v1108, 1.442695
        %v1111 = vpow.pop %v1110
        %v1112 = vmul.f32 %v1109, 1.442695
        %v1113 = vpow.pop %v1112
        %v1114 = vsel %vm1002, %v1111, 0.0
        %1115 = vadd.xlane.f32.xlu0 %v1114
        %v1116 = vpop.xlane.xlu0 %1115
        %v1117 = vsel %vm1002, %v1113, 0.0
        %1118 = vadd.xlane.f32.xlu0 %v1117
        %v1119 = vpop.xlane.xlu0 %1118
        %v1120 = vrcp.pop %v1116
        %v1121 = vrcp.pop %v1119
        %v1122 = vmul.f32 %v1111, %v1120
        %v1123 = vmul.f32 %v1113, %v1121
        %v1124 = vpack.c.bf16 %v1122, %v1122
        %v1125 = vpack.c.bf16 %v1123, %v1123
        %1126 = vrot.lane.b32.xlu0 %v997, 64
        %v1127 = vpop.permute.xlu0 %1126
        %v1129 = vsel %vm1002, %v1124, 0
        %vm1131 = vcmask 1043456
        %v1133 = vsel %vm1131, %v1127, 0
        %1135 = vmatprep.subr.bf16.mxu0 0
        %1136 = vmatpush1.bf16.msra.mxu0 0
        %1137 = vmatprep.subr.bf16.mxu0 0
        %1138 = vmatpush1.bf16.msra.mxu0 0
        %1139 = vmatprep.subr.bf16.mxu0 0
        %1140 = vmatpush1.bf16.msra.mxu0 0
        %1141 = vmatprep.subr.bf16.mxu0 0
        %1142 = vmatpush1.bf16.msra.mxu0 0
        %1143 = vmatprep.subr.bf16.mxu0 0
        %1144 = vmatpush1.bf16.msra.mxu0 0
        %1145 = vmatprep.subr.bf16.mxu0 0
        %1146 = vmatpush1.bf16.msra.mxu0 0
        %1147 = vmatprep.subr.bf16.mxu0 0
        %1148 = vmatpush1.bf16.msra.mxu0 0
        %1149 = vmatprep.subr.bf16.mxu0 0
        %1150 = vmatpush1.bf16.msra.mxu0 %v1133
        %1151 = vmatprep.subr.bf16.mxu0 0
        %1152 = vmatpush2.bf16.msra.mxu0 0
        %1153 = vmatprep.subr.bf16.mxu0 0
        %1154 = vmatpush2.bf16.msra.mxu0 0
        %1155 = vmatprep.subr.bf16.mxu0 0
        %1156 = vmatpush2.bf16.msra.mxu0 0
        %1157 = vmatprep.subr.bf16.mxu0 0
        %1158 = vmatpush2.bf16.msra.mxu0 0
        %1159 = vmatprep.subr.bf16.mxu0 0
        %1160 = vmatpush2.bf16.msra.mxu0 0
        %1161 = vmatprep.subr.bf16.mxu0 0
        %1162 = vmatpush2.bf16.msra.mxu0 0
        %1163 = vmatprep.subr.bf16.mxu0 0
        %1164 = vmatpush2.bf16.msra.mxu0 0
        %1165 = vmatprep.subr.bf16.mxu0 0
        %1166 = vmatpush2.bf16.msra.mxu0 0
        %1167 = vmatprep.mubr.bf16.mxu0 0
        %1168 = vmatmul.mubr.bf16.gmra.mxu0 %v1129
        %v1169 = vpop.f32.mrf.mxu0
        %v1170 = vadd.f32 0.0, %v1169
        %v1171 = vpop.f32.mrf.mxu0
        %v1172 = vpop.f32.mrf.mxu0
        %v1173 = vpop.f32.mrf.mxu0
        %1174 = vdwg.mxu0
        %1175 = vrot.lane.b32.xlu0 %v998, 64
        %v1176 = vpop.permute.xlu0 %1175
        %v1178 = vsel %vm1002, %v1125, 0
        %v1181 = vsel %vm1131, %v1176, 0
        %1183 = vmatprep.subr.bf16.mxu0 0
        %1184 = vmatpush1.bf16.msra.mxu0 0
        %1185 = vmatprep.subr.bf16.mxu0 0
        %1186 = vmatpush1.bf16.msra.mxu0 0
        %1187 = vmatprep.subr.bf16.mxu0 0
        %1188 = vmatpush1.bf16.msra.mxu0 0
        %1189 = vmatprep.subr.bf16.mxu0 0
        %1190 = vmatpush1.bf16.msra.mxu0 0
        %1191 = vmatprep.subr.bf16.mxu0 0
        %1192 = vmatpush1.bf16.msra.mxu0 0
        %1193 = vmatprep.subr.bf16.mxu0 0
        %1194 = vmatpush1.bf16.msra.mxu0 0
        %1195 = vmatprep.subr.bf16.mxu0 0
        %1196 = vmatpush1.bf16.msra.mxu0 0
        %1197 = vmatprep.subr.bf16.mxu0 0
        %1198 = vmatpush1.bf16.msra.mxu0 %v1181
        %1199 = vmatprep.subr.bf16.mxu0 0
        %1200 = vmatpush2.bf16.msra.mxu0 0
        %1201 = vmatprep.subr.bf16.mxu0 0
        %1202 = vmatpush2.bf16.msra.mxu0 0
        %1203 = vmatprep.subr.bf16.mxu0 0
        %1204 = vmatpush2.bf16.msra.mxu0 0
        %1205 = vmatprep.subr.bf16.mxu0 0
        %1206 = vmatpush2.bf16.msra.mxu0 0
        %1207 = vmatprep.subr.bf16.mxu0 0
        %1208 = vmatpush2.bf16.msra.mxu0 0
        %1209 = vmatprep.subr.bf16.mxu0 0
        %1210 = vmatpush2.bf16.msra.mxu0 0
        %1211 = vmatprep.subr.bf16.mxu0 0
        %1212 = vmatpush2.bf16.msra.mxu0 0
        %1213 = vmatprep.subr.bf16.mxu0 0
        %1214 = vmatpush2.bf16.msra.mxu0 0
        %1215 = vmatprep.mubr.bf16.mxu0 0
        %1216 = vmatmul.mubr.bf16.gmra.mxu0 %v1178
        %v1217 = vpop.f32.mrf.mxu0
        %v1218 = vadd.f32 0.0, %v1217
        %v1219 = vpop.f32.mrf.mxu0
        %v1220 = vpop.f32.mrf.mxu0
        %v1221 = vpop.f32.mrf.mxu0
        %1222 = vdwg.mxu0
        %1223 = vrot.lane.b32.xlu0 %v997, 120
        %v1224 = vpop.permute.xlu0 %1223
        %1225 = vrot.lane.b32.xlu0 %v997, 88
        %v1226 = vpop.permute.xlu0 %1225
        %v1228 = vsel %vm1002, %v1224, 0
        %v1231 = vsel %vm1002, %v1226, 0
        %1233 = vmatprep.subr.bf16.mxu0 0
        %1234 = vmatpush1.bf16.xpose.msra.mxu0 0
        %1235 = vmatprep.subr.bf16.mxu0 0
        %1236 = vmatpush1.bf16.xpose.msra.mxu0 0
        %1237 = vmatprep.subr.bf16.mxu0 0
        %1238 = vmatpush1.bf16.xpose.msra.mxu0 0
        %1239 = vmatprep.subr.bf16.mxu0 0
        %1240 = vmatpush1.bf16.xpose.msra.mxu0 0
        %1241 = vmatprep.subr.bf16.mxu0 0
        %1242 = vmatpush1.bf16.xpose.msra.mxu0 0
        %1243 = vmatprep.subr.bf16.mxu0 0
        %1244 = vmatpush1.bf16.xpose.msra.mxu0 0
        %1245 = vmatprep.subr.bf16.mxu0 0
        %1246 = vmatpush1.bf16.xpose.msra.mxu0 0
        %1247 = vmatprep.subr.bf16.mxu0 0
        %1248 = vmatpush1.bf16.xpose.msra.mxu0 %v1231
        %1249 = vmatprep.subr.bf16.mxu0 0
        %1250 = vmatpush2.bf16.xpose.msra.mxu0 0
        %1251 = vmatprep.subr.bf16.mxu0 0
        %1252 = vmatpush2.bf16.xpose.msra.mxu0 0
        %1253 = vmatprep.subr.bf16.mxu0 0
        %1254 = vmatpush2.bf16.xpose.msra.mxu0 0
        %1255 = vmatprep.subr.bf16.mxu0 0
        %1256 = vmatpush2.bf16.xpose.msra.mxu0 0
        %1257 = vmatprep.subr.bf16.mxu0 0
        %1258 = vmatpush2.bf16.xpose.msra.mxu0 0
        %1259 = vmatprep.subr.bf16.mxu0 0
        %1260 = vmatpush2.bf16.xpose.msra.mxu0 0
        %1261 = vmatprep.subr.bf16.mxu0 0
        %1262 = vmatpush2.bf16.xpose.msra.mxu0 0
        %1263 = vmatprep.subr.bf16.mxu0 0
        %1264 = vmatpush2.bf16.xpose.msra.mxu0 0
        %1265 = vmatprep.mubr.bf16.mxu0 0
        %1266 = vmatmul.mubr.bf16.gmra.mxu0 %v1228
        %v1267 = vpop.f32.mrf.mxu0
        %v1268 = vadd.f32 0.0, %v1267
        %v1269 = vpop.f32.mrf.mxu0
        %v1270 = vpop.f32.mrf.mxu0
        %v1271 = vpop.f32.mrf.mxu0
        %1272 = vdwg.mxu0
        %1273 = vrot.lane.b32.xlu0 %v998, 120
        %v1274 = vpop.permute.xlu0 %1273
        %1275 = vrot.lane.b32.xlu0 %v998, 88
        %v1276 = vpop.permute.xlu0 %1275
        %v1278 = vsel %vm1002, %v1274, 0
        %v1281 = vsel %vm1002, %v1276, 0
        %1283 = vmatprep.subr.bf16.mxu0 0
        %1284 = vmatpush1.bf16.xpose.msra.mxu0 0
        %1285 = vmatprep.subr.bf16.mxu0 0
        %1286 = vmatpush1.bf16.xpose.msra.mxu0 0
        %1287 = vmatprep.subr.bf16.mxu0 0
        %1288 = vmatpush1.bf16.xpose.msra.mxu0 0
        %1289 = vmatprep.subr.bf16.mxu0 0
        %1290 = vmatpush1.bf16.xpose.msra.mxu0 0
        %1291 = vmatprep.subr.bf16.mxu0 0
        %1292 = vmatpush1.bf16.xpose.msra.mxu0 0
        %1293 = vmatprep.subr.bf16.mxu0 0
        %1294 = vmatpush1.bf16.xpose.msra.mxu0 0
        %1295 = vmatprep.subr.bf16.mxu0 0
        %1296 = vmatpush1.bf16.xpose.msra.mxu0 0
        %1297 = vmatprep.subr.bf16.mxu0 0
        %1298 = vmatpush1.bf16.xpose.msra.mxu0 %v1281
        %1299 = vmatprep.subr.bf16.mxu0 0
        %1300 = vmatpush2.bf16.xpose.msra.mxu0 0
        %1301 = vmatprep.subr.bf16.mxu0 0
        %1302 = vmatpush2.bf16.xpose.msra.mxu0 0
        %1303 = vmatprep.subr.bf16.mxu0 0
        %1304 = vmatpush2.bf16.xpose.msra.mxu0 0
        %1305 = vmatprep.subr.bf16.mxu0 0
        %1306 = vmatpush2.bf16.xpose.msra.mxu0 0
        %1307 = vmatprep.subr.bf16.mxu0 0
        %1308 = vmatpush2.bf16.xpose.msra.mxu0 0
        %1309 = vmatprep.subr.bf16.mxu0 0
        %1310 = vmatpush2.bf16.xpose.msra.mxu0 0
        %1311 = vmatprep.subr.bf16.mxu0 0
        %1312 = vmatpush2.bf16.xpose.msra.mxu0 0
        %1313 = vmatprep.subr.bf16.mxu0 0
        %1314 = vmatpush2.bf16.xpose.msra.mxu0 0
        %1315 = vmatprep.mubr.bf16.mxu0 0
        %1316 = vmatmul.mubr.bf16.gmra.mxu0 %v1278
        %v1317 = vpop.f32.mrf.mxu0
        %v1318 = vadd.f32 0.0, %v1317
        %v1319 = vpop.f32.mrf.mxu0
        %v1320 = vpop.f32.mrf.mxu0
        %v1321 = vpop.f32.mrf.mxu0
        %1322 = vdwg.mxu0
        %v1323 = vmul.f32 %v1268, 0.35355338
        %v1324 = vmul.f32 %v1318, 0.35355338
        %v1325 = vadd.f32 %v1323, %v880
        %v1326 = vadd.f32 %v1324, %v880
        %v1327 = vsel %vm1002, %v1325, -inf
        %1328 = vmax.xlane.f32.xlu0 %v1327
        %v1329 = vpop.xlane.xlu0 %1328
        %v1330 = vsel %vm1002, %v1326, -inf
        %1331 = vmax.xlane.f32.xlu0 %v1330
        %v1332 = vpop.xlane.xlu0 %1331
        %v1333 = vsub.f32 %v1325, %v1329
        %v1334 = vsub.f32 %v1326, %v1332
        %v1335 = vmul.f32 %v1333, 1.442695
        %v1336 = vpow.pop %v1335
        %v1337 = vmul.f32 %v1334, 1.442695
        %v1338 = vpow.pop %v1337
        %v1339 = vsel %vm1002, %v1336, 0.0
        %1340 = vadd.xlane.f32.xlu0 %v1339
        %v1341 = vpop.xlane.xlu0 %1340
        %v1342 = vsel %vm1002, %v1338, 0.0
        %1343 = vadd.xlane.f32.xlu0 %v1342
        %v1344 = vpop.xlane.xlu0 %1343
        %v1345 = vrcp.pop %v1341
        %v1346 = vrcp.pop %v1344
        %v1347 = vmul.f32 %v1336, %v1345
        %v1348 = vmul.f32 %v1338, %v1346
        %v1349 = vpack.c.bf16 %v1347, %v1347
        %v1350 = vpack.c.bf16 %v1348, %v1348
        %1351 = vrot.lane.b32.xlu0 %v997, 56
        %v1352 = vpop.permute.xlu0 %1351
        %v1354 = vsel %vm1002, %v1349, 0
        %v1357 = vsel %vm1131, %v1352, 0
        %1359 = vmatprep.subr.bf16.mxu0 0
        %1360 = vmatpush1.bf16.msra.mxu0 0
        %1361 = vmatprep.subr.bf16.mxu0 0
        %1362 = vmatpush1.bf16.msra.mxu0 0
        %1363 = vmatprep.subr.bf16.mxu0 0
        %1364 = vmatpush1.bf16.msra.mxu0 0
        %1365 = vmatprep.subr.bf16.mxu0 0
        %1366 = vmatpush1.bf16.msra.mxu0 0
        %1367 = vmatprep.subr.bf16.mxu0 0
        %1368 = vmatpush1.bf16.msra.mxu0 0
        %1369 = vmatprep.subr.bf16.mxu0 0
        %1370 = vmatpush1.bf16.msra.mxu0 0
        %1371 = vmatprep.subr.bf16.mxu0 0
        %1372 = vmatpush1.bf16.msra.mxu0 0
        %1373 = vmatprep.subr.bf16.mxu0 0
        %1374 = vmatpush1.bf16.msra.mxu0 %v1357
        %1375 = vmatprep.subr.bf16.mxu0 0
        %1376 = vmatpush2.bf16.msra.mxu0 0
        %1377 = vmatprep.subr.bf16.mxu0 0
        %1378 = vmatpush2.bf16.msra.mxu0 0
        %1379 = vmatprep.subr.bf16.mxu0 0
        %1380 = vmatpush2.bf16.msra.mxu0 0
        %1381 = vmatprep.subr.bf16.mxu0 0
        %1382 = vmatpush2.bf16.msra.mxu0 0
        %1383 = vmatprep.subr.bf16.mxu0 0
        %1384 = vmatpush2.bf16.msra.mxu0 0
        %1385 = vmatprep.subr.bf16.mxu0 0
        %1386 = vmatpush2.bf16.msra.mxu0 0
        %1387 = vmatprep.subr.bf16.mxu0 0
        %1388 = vmatpush2.bf16.msra.mxu0 0
        %1389 = vmatprep.subr.bf16.mxu0 0
        %1390 = vmatpush2.bf16.msra.mxu0 0
        %1391 = vmatprep.mubr.bf16.mxu0 0
        %1392 = vmatmul.mubr.bf16.gmra.mxu0 %v1354
        %v1393 = vpop.f32.mrf.mxu0
        %v1394 = vadd.f32 0.0, %v1393
        %v1395 = vpop.f32.mrf.mxu0
        %v1396 = vpop.f32.mrf.mxu0
        %v1397 = vpop.f32.mrf.mxu0
        %1398 = vdwg.mxu0
        %1399 = vrot.lane.b32.xlu0 %v998, 56
        %v1400 = vpop.permute.xlu0 %1399
        %v1402 = vsel %vm1002, %v1350, 0
        %v1405 = vsel %vm1131, %v1400, 0
        %1407 = vmatprep.subr.bf16.mxu0 0
        %1408 = vmatpush1.bf16.msra.mxu0 0
        %1409 = vmatprep.subr.bf16.mxu0 0
        %1410 = vmatpush1.bf16.msra.mxu0 0
        %1411 = vmatprep.subr.bf16.mxu0 0
        %1412 = vmatpush1.bf16.msra.mxu0 0
        %1413 = vmatprep.subr.bf16.mxu0 0
        %1414 = vmatpush1.bf16.msra.mxu0 0
        %1415 = vmatprep.subr.bf16.mxu0 0
        %1416 = vmatpush1.bf16.msra.mxu0 0
        %1417 = vmatprep.subr.bf16.mxu0 0
        %1418 = vmatpush1.bf16.msra.mxu0 0
        %1419 = vmatprep.subr.bf16.mxu0 0
        %1420 = vmatpush1.bf16.msra.mxu0 0
        %1421 = vmatprep.subr.bf16.mxu0 0
        %1422 = vmatpush1.bf16.msra.mxu0 %v1405
        %1423 = vmatprep.subr.bf16.mxu0 0
        %1424 = vmatpush2.bf16.msra.mxu0 0
        %1425 = vmatprep.subr.bf16.mxu0 0
        %1426 = vmatpush2.bf16.msra.mxu0 0
        %1427 = vmatprep.subr.bf16.mxu0 0
        %1428 = vmatpush2.bf16.msra.mxu0 0
        %1429 = vmatprep.subr.bf16.mxu0 0
        %1430 = vmatpush2.bf16.msra.mxu0 0
        %1431 = vmatprep.subr.bf16.mxu0 0
        %1432 = vmatpush2.bf16.msra.mxu0 0
        %1433 = vmatprep.subr.bf16.mxu0 0
        %1434 = vmatpush2.bf16.msra.mxu0 0
        %1435 = vmatprep.subr.bf16.mxu0 0
        %1436 = vmatpush2.bf16.msra.mxu0 0
        %1437 = vmatprep.subr.bf16.mxu0 0
        %1438 = vmatpush2.bf16.msra.mxu0 0
        %1439 = vmatprep.mubr.bf16.mxu0 0
        %1440 = vmatmul.mubr.bf16.gmra.mxu0 %v1402
        %v1441 = vpop.f32.mrf.mxu0
        %v1442 = vadd.f32 0.0, %v1441
        %v1443 = vpop.f32.mrf.mxu0
        %v1444 = vpop.f32.mrf.mxu0
        %v1445 = vpop.f32.mrf.mxu0
        %1446 = vdwg.mxu0
        %1447 = vrot.lane.b32.xlu0 %v997, 112
        %v1448 = vpop.permute.xlu0 %1447
        %1449 = vrot.lane.b32.xlu0 %v997, 80
        %v1450 = vpop.permute.xlu0 %1449
        %v1452 = vsel %vm1002, %v1448, 0
        %v1455 = vsel %vm1002, %v1450, 0
        %1457 = vmatprep.subr.bf16.mxu0 0
        %1458 = vmatpush1.bf16.xpose.msra.mxu0 0
        %1459 = vmatprep.subr.bf16.mxu0 0
        %1460 = vmatpush1.bf16.xpose.msra.mxu0 0
        %1461 = vmatprep.subr.bf16.mxu0 0
        %1462 = vmatpush1.bf16.xpose.msra.mxu0 0
        %1463 = vmatprep.subr.bf16.mxu0 0
        %1464 = vmatpush1.bf16.xpose.msra.mxu0 0
        %1465 = vmatprep.subr.bf16.mxu0 0
        %1466 = vmatpush1.bf16.xpose.msra.mxu0 0
        %1467 = vmatprep.subr.bf16.mxu0 0
        %1468 = vmatpush1.bf16.xpose.msra.mxu0 0
        %1469 = vmatprep.subr.bf16.mxu0 0
        %1470 = vmatpush1.bf16.xpose.msra.mxu0 0
        %1471 = vmatprep.subr.bf16.mxu0 0
        %1472 = vmatpush1.bf16.xpose.msra.mxu0 %v1455
        %1473 = vmatprep.subr.bf16.mxu0 0
        %1474 = vmatpush2.bf16.xpose.msra.mxu0 0
        %1475 = vmatprep.subr.bf16.mxu0 0
        %1476 = vmatpush2.bf16.xpose.msra.mxu0 0
        %1477 = vmatprep.subr.bf16.mxu0 0
        %1478 = vmatpush2.bf16.xpose.msra.mxu0 0
        %1479 = vmatprep.subr.bf16.mxu0 0
        %1480 = vmatpush2.bf16.xpose.msra.mxu0 0
        %1481 = vmatprep.subr.bf16.mxu0 0
        %1482 = vmatpush2.bf16.xpose.msra.mxu0 0
        %1483 = vmatprep.subr.bf16.mxu0 0
        %1484 = vmatpush2.bf16.xpose.msra.mxu0 0
        %1485 = vmatprep.subr.bf16.mxu0 0
        %1486 = vmatpush2.bf16.xpose.msra.mxu0 0
        %1487 = vmatprep.subr.bf16.mxu0 0
        %1488 = vmatpush2.bf16.xpose.msra.mxu0 0
        %1489 = vmatprep.mubr.bf16.mxu0 0
        %1490 = vmatmul.mubr.bf16.gmra.mxu0 %v1452
        %v1491 = vpop.f32.mrf.mxu0
        %v1492 = vadd.f32 0.0, %v1491
        %v1493 = vpop.f32.mrf.mxu0
        %v1494 = vpop.f32.mrf.mxu0
        %v1495 = vpop.f32.mrf.mxu0
        %1496 = vdwg.mxu0
        %1497 = vrot.lane.b32.xlu0 %v998, 112
        %v1498 = vpop.permute.xlu0 %1497
        %1499 = vrot.lane.b32.xlu0 %v998, 80
        %v1500 = vpop.permute.xlu0 %1499
        %v1502 = vsel %vm1002, %v1498, 0
        %v1505 = vsel %vm1002, %v1500, 0
        %1507 = vmatprep.subr.bf16.mxu0 0
        %1508 = vmatpush1.bf16.xpose.msra.mxu0 0
        %1509 = vmatprep.subr.bf16.mxu0 0
        %1510 = vmatpush1.bf16.xpose.msra.mxu0 0
        %1511 = vmatprep.subr.bf16.mxu0 0
        %1512 = vmatpush1.bf16.xpose.msra.mxu0 0
        %1513 = vmatprep.subr.bf16.mxu0 0
        %1514 = vmatpush1.bf16.xpose.msra.mxu0 0
        %1515 = vmatprep.subr.bf16.mxu0 0
        %1516 = vmatpush1.bf16.xpose.msra.mxu0 0
        %1517 = vmatprep.subr.bf16.mxu0 0
        %1518 = vmatpush1.bf16.xpose.msra.mxu0 0
        %1519 = vmatprep.subr.bf16.mxu0 0
        %1520 = vmatpush1.bf16.xpose.msra.mxu0 0
        %1521 = vmatprep.subr.bf16.mxu0 0
        %1522 = vmatpush1.bf16.xpose.msra.mxu0 %v1505
        %1523 = vmatprep.subr.bf16.mxu0 0
        %1524 = vmatpush2.bf16.xpose.msra.mxu0 0
        %1525 = vmatprep.subr.bf16.mxu0 0
        %1526 = vmatpush2.bf16.xpose.msra.mxu0 0
        %1527 = vmatprep.subr.bf16.mxu0 0
        %1528 = vmatpush2.bf16.xpose.msra.mxu0 0
        %1529 = vmatprep.subr.bf16.mxu0 0
        %1530 = vmatpush2.bf16.xpose.msra.mxu0 0
        %1531 = vmatprep.subr.bf16.mxu0 0
        %1532 = vmatpush2.bf16.xpose.msra.mxu0 0
        %1533 = vmatprep.subr.bf16.mxu0 0
        %1534 = vmatpush2.bf16.xpose.msra.mxu0 0
        %1535 = vmatprep.subr.bf16.mxu0 0
        %1536 = vmatpush2.bf16.xpose.msra.mxu0 0
        %1537 = vmatprep.subr.bf16.mxu0 0
        %1538 = vmatpush2.bf16.xpose.msra.mxu0 0
        %1539 = vmatprep.mubr.bf16.mxu0 0
        %1540 = vmatmul.mubr.bf16.gmra.mxu0 %v1502
        %v1541 = vpop.f32.mrf.mxu0
        %v1542 = vadd.f32 0.0, %v1541
        %v1543 = vpop.f32.mrf.mxu0
        %v1544 = vpop.f32.mrf.mxu0
        %v1545 = vpop.f32.mrf.mxu0
        %1546 = vdwg.mxu0
        %v1547 = vmul.f32 %v1492, 0.35355338
        %v1548 = vmul.f32 %v1542, 0.35355338
        %v1549 = vadd.f32 %v1547, %v880
        %v1550 = vadd.f32 %v1548, %v880
        %v1551 = vsel %vm1002, %v1549, -inf
        %1552 = vmax.xlane.f32.xlu0 %v1551
        %v1553 = vpop.xlane.xlu0 %1552
        %v1554 = vsel %vm1002, %v1550, -inf
        %1555 = vmax.xlane.f32.xlu0 %v1554
        %v1556 = vpop.xlane.xlu0 %1555
        %v1557 = vsub.f32 %v1549, %v1553
        %v1558 = vsub.f32 %v1550, %v1556
        %v1559 = vmul.f32 %v1557, 1.442695
        %v1560 = vpow.pop %v1559
        %v1561 = vmul.f32 %v1558, 1.442695
        %v1562 = vpow.pop %v1561
        %v1563 = vsel %vm1002, %v1560, 0.0
        %1564 = vadd.xlane.f32.xlu0 %v1563
        %v1565 = vpop.xlane.xlu0 %1564
        %v1566 = vsel %vm1002, %v1562, 0.0
        %1567 = vadd.xlane.f32.xlu0 %v1566
        %v1568 = vpop.xlane.xlu0 %1567
        %v1569 = vrcp.pop %v1565
        %v1570 = vrcp.pop %v1568
        %v1571 = vmul.f32 %v1560, %v1569
        %v1572 = vmul.f32 %v1562, %v1570
        %v1573 = vpack.c.bf16 %v1571, %v1571
        %v1574 = vpack.c.bf16 %v1572, %v1572
        %1575 = vrot.lane.b32.xlu0 %v997, 48
        %v1576 = vpop.permute.xlu0 %1575
        %v1578 = vsel %vm1002, %v1573, 0
        %v1581 = vsel %vm1131, %v1576, 0
        %1583 = vmatprep.subr.bf16.mxu0 0
        %1584 = vmatpush1.bf16.msra.mxu0 0
        %1585 = vmatprep.subr.bf16.mxu0 0
        %1586 = vmatpush1.bf16.msra.mxu0 0
        %1587 = vmatprep.subr.bf16.mxu0 0
        %1588 = vmatpush1.bf16.msra.mxu0 0
        %1589 = vmatprep.subr.bf16.mxu0 0
        %1590 = vmatpush1.bf16.msra.mxu0 0
        %1591 = vmatprep.subr.bf16.mxu0 0
        %1592 = vmatpush1.bf16.msra.mxu0 0
        %1593 = vmatprep.subr.bf16.mxu0 0
        %1594 = vmatpush1.bf16.msra.mxu0 0
        %1595 = vmatprep.subr.bf16.mxu0 0
        %1596 = vmatpush1.bf16.msra.mxu0 0
        %1597 = vmatprep.subr.bf16.mxu0 0
        %1598 = vmatpush1.bf16.msra.mxu0 %v1581
        %1599 = vmatprep.subr.bf16.mxu0 0
        %1600 = vmatpush2.bf16.msra.mxu0 0
        %1601 = vmatprep.subr.bf16.mxu0 0
        %1602 = vmatpush2.bf16.msra.mxu0 0
        %1603 = vmatprep.subr.bf16.mxu0 0
        %1604 = vmatpush2.bf16.msra.mxu0 0
        %1605 = vmatprep.subr.bf16.mxu0 0
        %1606 = vmatpush2.bf16.msra.mxu0 0
        %1607 = vmatprep.subr.bf16.mxu0 0
        %1608 = vmatpush2.bf16.msra.mxu0 0
        %1609 = vmatprep.subr.bf16.mxu0 0
        %1610 = vmatpush2.bf16.msra.mxu0 0
        %1611 = vmatprep.subr.bf16.mxu0 0
        %1612 = vmatpush2.bf16.msra.mxu0 0
        %1613 = vmatprep.subr.bf16.mxu0 0
        %1614 = vmatpush2.bf16.msra.mxu0 0
        %1615 = vmatprep.mubr.bf16.mxu0 0
        %1616 = vmatmul.mubr.bf16.gmra.mxu0 %v1578
        %v1617 = vpop.f32.mrf.mxu0
        %v1618 = vadd.f32 0.0, %v1617
        %v1619 = vpop.f32.mrf.mxu0
        %v1620 = vpop.f32.mrf.mxu0
        %v1621 = vpop.f32.mrf.mxu0
        %1622 = vdwg.mxu0
        %1623 = vrot.lane.b32.xlu0 %v998, 48
        %v1624 = vpop.permute.xlu0 %1623
        %v1626 = vsel %vm1002, %v1574, 0
        %v1629 = vsel %vm1131, %v1624, 0
        %1631 = vmatprep.subr.bf16.mxu0 0
        %1632 = vmatpush1.bf16.msra.mxu0 0
        %1633 = vmatprep.subr.bf16.mxu0 0
        %1634 = vmatpush1.bf16.msra.mxu0 0
        %1635 = vmatprep.subr.bf16.mxu0 0
        %1636 = vmatpush1.bf16.msra.mxu0 0
        %1637 = vmatprep.subr.bf16.mxu0 0
        %1638 = vmatpush1.bf16.msra.mxu0 0
        %1639 = vmatprep.subr.bf16.mxu0 0
        %1640 = vmatpush1.bf16.msra.mxu0 0
        %1641 = vmatprep.subr.bf16.mxu0 0
        %1642 = vmatpush1.bf16.msra.mxu0 0
        %1643 = vmatprep.subr.bf16.mxu0 0
        %1644 = vmatpush1.bf16.msra.mxu0 0
        %1645 = vmatprep.subr.bf16.mxu0 0
        %1646 = vmatpush1.bf16.msra.mxu0 %v1629
        %1647 = vmatprep.subr.bf16.mxu0 0
        %1648 = vmatpush2.bf16.msra.mxu0 0
        %1649 = vmatprep.subr.bf16.mxu0 0
        %1650 = vmatpush2.bf16.msra.mxu0 0
        %1651 = vmatprep.subr.bf16.mxu0 0
        %1652 = vmatpush2.bf16.msra.mxu0 0
        %1653 = vmatprep.subr.bf16.mxu0 0
        %1654 = vmatpush2.bf16.msra.mxu0 0
        %1655 = vmatprep.subr.bf16.mxu0 0
        %1656 = vmatpush2.bf16.msra.mxu0 0
        %1657 = vmatprep.subr.bf16.mxu0 0
        %1658 = vmatpush2.bf16.msra.mxu0 0
        %1659 = vmatprep.subr.bf16.mxu0 0
        %1660 = vmatpush2.bf16.msra.mxu0 0
        %1661 = vmatprep.subr.bf16.mxu0 0
        %1662 = vmatpush2.bf16.msra.mxu0 0
        %1663 = vmatprep.mubr.bf16.mxu0 0
        %1664 = vmatmul.mubr.bf16.gmra.mxu0 %v1626
        %v1665 = vpop.f32.mrf.mxu0
        %v1666 = vadd.f32 0.0, %v1665
        %v1667 = vpop.f32.mrf.mxu0
        %v1668 = vpop.f32.mrf.mxu0
        %v1669 = vpop.f32.mrf.mxu0
        %1670 = vdwg.mxu0
        %1671 = vrot.lane.b32.xlu0 %v997, 104
        %v1672 = vpop.permute.xlu0 %1671
        %1673 = vrot.lane.b32.xlu0 %v997, 72
        %v1674 = vpop.permute.xlu0 %1673
        %v1676 = vsel %vm1002, %v1672, 0
        %v1679 = vsel %vm1002, %v1674, 0
        %1681 = vmatprep.subr.bf16.mxu0 0
        %1682 = vmatpush1.bf16.xpose.msra.mxu0 0
        %1683 = vmatprep.subr.bf16.mxu0 0
        %1684 = vmatpush1.bf16.xpose.msra.mxu0 0
        %1685 = vmatprep.subr.bf16.mxu0 0
        %1686 = vmatpush1.bf16.xpose.msra.mxu0 0
        %1687 = vmatprep.subr.bf16.mxu0 0
        %1688 = vmatpush1.bf16.xpose.msra.mxu0 0
        %1689 = vmatprep.subr.bf16.mxu0 0
        %1690 = vmatpush1.bf16.xpose.msra.mxu0 0
        %1691 = vmatprep.subr.bf16.mxu0 0
        %1692 = vmatpush1.bf16.xpose.msra.mxu0 0
        %1693 = vmatprep.subr.bf16.mxu0 0
        %1694 = vmatpush1.bf16.xpose.msra.mxu0 0
        %1695 = vmatprep.subr.bf16.mxu0 0
        %1696 = vmatpush1.bf16.xpose.msra.mxu0 %v1679
        %1697 = vmatprep.subr.bf16.mxu0 0
        %1698 = vmatpush2.bf16.xpose.msra.mxu0 0
        %1699 = vmatprep.subr.bf16.mxu0 0
        %1700 = vmatpush2.bf16.xpose.msra.mxu0 0
        %1701 = vmatprep.subr.bf16.mxu0 0
        %1702 = vmatpush2.bf16.xpose.msra.mxu0 0
        %1703 = vmatprep.subr.bf16.mxu0 0
        %1704 = vmatpush2.bf16.xpose.msra.mxu0 0
        %1705 = vmatprep.subr.bf16.mxu0 0
        %1706 = vmatpush2.bf16.xpose.msra.mxu0 0
        %1707 = vmatprep.subr.bf16.mxu0 0
        %1708 = vmatpush2.bf16.xpose.msra.mxu0 0
        %1709 = vmatprep.subr.bf16.mxu0 0
        %1710 = vmatpush2.bf16.xpose.msra.mxu0 0
        %1711 = vmatprep.subr.bf16.mxu0 0
        %1712 = vmatpush2.bf16.xpose.msra.mxu0 0
        %1713 = vmatprep.mubr.bf16.mxu0 0
        %1714 = vmatmul.mubr.bf16.gmra.mxu0 %v1676
        %v1715 = vpop.f32.mrf.mxu0
        %v1716 = vadd.f32 0.0, %v1715
        %v1717 = vpop.f32.mrf.mxu0
        %v1718 = vpop.f32.mrf.mxu0
        %v1719 = vpop.f32.mrf.mxu0
        %1720 = vdwg.mxu0
        %1721 = vrot.lane.b32.xlu0 %v998, 104
        %v1722 = vpop.permute.xlu0 %1721
        %1723 = vrot.lane.b32.xlu0 %v998, 72
        %v1724 = vpop.permute.xlu0 %1723
        %v1726 = vsel %vm1002, %v1722, 0
        %v1729 = vsel %vm1002, %v1724, 0
        %1731 = vmatprep.subr.bf16.mxu0 0
        %1732 = vmatpush1.bf16.xpose.msra.mxu0 0
        %1733 = vmatprep.subr.bf16.mxu0 0
        %1734 = vmatpush1.bf16.xpose.msra.mxu0 0
        %1735 = vmatprep.subr.bf16.mxu0 0
        %1736 = vmatpush1.bf16.xpose.msra.mxu0 0
        %1737 = vmatprep.subr.bf16.mxu0 0
        %1738 = vmatpush1.bf16.xpose.msra.mxu0 0
        %1739 = vmatprep.subr.bf16.mxu0 0
        %1740 = vmatpush1.bf16.xpose.msra.mxu0 0
        %1741 = vmatprep.subr.bf16.mxu0 0
        %1742 = vmatpush1.bf16.xpose.msra.mxu0 0
        %1743 = vmatprep.subr.bf16.mxu0 0
        %1744 = vmatpush1.bf16.xpose.msra.mxu0 0
        %1745 = vmatprep.subr.bf16.mxu0 0
        %1746 = vmatpush1.bf16.xpose.msra.mxu0 %v1729
        %1747 = vmatprep.subr.bf16.mxu0 0
        %1748 = vmatpush2.bf16.xpose.msra.mxu0 0
        %1749 = vmatprep.subr.bf16.mxu0 0
        %1750 = vmatpush2.bf16.xpose.msra.mxu0 0
        %1751 = vmatprep.subr.bf16.mxu0 0
        %1752 = vmatpush2.bf16.xpose.msra.mxu0 0
        %1753 = vmatprep.subr.bf16.mxu0 0
        %1754 = vmatpush2.bf16.xpose.msra.mxu0 0
        %1755 = vmatprep.subr.bf16.mxu0 0
        %1756 = vmatpush2.bf16.xpose.msra.mxu0 0
        %1757 = vmatprep.subr.bf16.mxu0 0
        %1758 = vmatpush2.bf16.xpose.msra.mxu0 0
        %1759 = vmatprep.subr.bf16.mxu0 0
        %1760 = vmatpush2.bf16.xpose.msra.mxu0 0
        %1761 = vmatprep.subr.bf16.mxu0 0
        %1762 = vmatpush2.bf16.xpose.msra.mxu0 0
        %1763 = vmatprep.mubr.bf16.mxu0 0
        %1764 = vmatmul.mubr.bf16.gmra.mxu0 %v1726
        %v1765 = vpop.f32.mrf.mxu0
        %v1766 = vadd.f32 0.0, %v1765
        %v1767 = vpop.f32.mrf.mxu0
        %v1768 = vpop.f32.mrf.mxu0
        %v1769 = vpop.f32.mrf.mxu0
        %1770 = vdwg.mxu0
        %v1771 = vmul.f32 %v1716, 0.35355338
        %v1772 = vmul.f32 %v1766, 0.35355338
        %v1773 = vadd.f32 %v1771, %v880
        %v1774 = vadd.f32 %v1772, %v880
        %v1775 = vsel %vm1002, %v1773, -inf
        %1776 = vmax.xlane.f32.xlu0 %v1775
        %v1777 = vpop.xlane.xlu0 %1776
        %v1778 = vsel %vm1002, %v1774, -inf
        %1779 = vmax.xlane.f32.xlu0 %v1778
        %v1780 = vpop.xlane.xlu0 %1779
        %v1781 = vsub.f32 %v1773, %v1777
        %v1782 = vsub.f32 %v1774, %v1780
        %v1783 = vmul.f32 %v1781, 1.442695
        %v1784 = vpow.pop %v1783
        %v1785 = vmul.f32 %v1782, 1.442695
        %v1786 = vpow.pop %v1785
        %v1787 = vsel %vm1002, %v1784, 0.0
        %1788 = vadd.xlane.f32.xlu0 %v1787
        %v1789 = vpop.xlane.xlu0 %1788
        %v1790 = vsel %vm1002, %v1786, 0.0
        %1791 = vadd.xlane.f32.xlu0 %v1790
        %v1792 = vpop.xlane.xlu0 %1791
        %v1793 = vrcp.pop %v1789
        %v1794 = vrcp.pop %v1792
        %v1795 = vmul.f32 %v1784, %v1793
        %v1796 = vmul.f32 %v1786, %v1794
        %v1797 = vpack.c.bf16 %v1795, %v1795
        %v1798 = vpack.c.bf16 %v1796, %v1796
        %1799 = vrot.lane.b32.xlu0 %v997, 40
        %v1800 = vpop.permute.xlu0 %1799
        %v1802 = vsel %vm1002, %v1797, 0
        %v1805 = vsel %vm1131, %v1800, 0
        %1807 = vmatprep.subr.bf16.mxu0 0
        %1808 = vmatpush1.bf16.msra.mxu0 0
        %1809 = vmatprep.subr.bf16.mxu0 0
        %1810 = vmatpush1.bf16.msra.mxu0 0
        %1811 = vmatprep.subr.bf16.mxu0 0
        %1812 = vmatpush1.bf16.msra.mxu0 0
        %1813 = vmatprep.subr.bf16.mxu0 0
        %1814 = vmatpush1.bf16.msra.mxu0 0
        %1815 = vmatprep.subr.bf16.mxu0 0
        %1816 = vmatpush1.bf16.msra.mxu0 0
        %1817 = vmatprep.subr.bf16.mxu0 0
        %1818 = vmatpush1.bf16.msra.mxu0 0
        %1819 = vmatprep.subr.bf16.mxu0 0
        %1820 = vmatpush1.bf16.msra.mxu0 0
        %1821 = vmatprep.subr.bf16.mxu0 0
        %1822 = vmatpush1.bf16.msra.mxu0 %v1805
        %1823 = vmatprep.subr.bf16.mxu0 0
        %1824 = vmatpush2.bf16.msra.mxu0 0
        %1825 = vmatprep.subr.bf16.mxu0 0
        %1826 = vmatpush2.bf16.msra.mxu0 0
        %1827 = vmatprep.subr.bf16.mxu0 0
        %1828 = vmatpush2.bf16.msra.mxu0 0
        %1829 = vmatprep.subr.bf16.mxu0 0
        %1830 = vmatpush2.bf16.msra.mxu0 0
        %1831 = vmatprep.subr.bf16.mxu0 0
        %1832 = vmatpush2.bf16.msra.mxu0 0
        %1833 = vmatprep.subr.bf16.mxu0 0
        %1834 = vmatpush2.bf16.msra.mxu0 0
        %1835 = vmatprep.subr.bf16.mxu0 0
        %1836 = vmatpush2.bf16.msra.mxu0 0
        %1837 = vmatprep.subr.bf16.mxu0 0
        %1838 = vmatpush2.bf16.msra.mxu0 0
        %1839 = vmatprep.mubr.bf16.mxu0 0
        %1840 = vmatmul.mubr.bf16.gmra.mxu0 %v1802
        %v1841 = vpop.f32.mrf.mxu0
        %v1842 = vadd.f32 0.0, %v1841
        %v1843 = vpop.f32.mrf.mxu0
        %v1844 = vpop.f32.mrf.mxu0
        %v1845 = vpop.f32.mrf.mxu0
        %1846 = vdwg.mxu0
        %1847 = vrot.lane.b32.xlu0 %v998, 40
        %v1848 = vpop.permute.xlu0 %1847
        %v1850 = vsel %vm1002, %v1798, 0
        %v1853 = vsel %vm1131, %v1848, 0
        %1855 = vmatprep.subr.bf16.mxu0 0
        %1856 = vmatpush1.bf16.msra.mxu0 0
        %1857 = vmatprep.subr.bf16.mxu0 0
        %1858 = vmatpush1.bf16.msra.mxu0 0
        %1859 = vmatprep.subr.bf16.mxu0 0
        %1860 = vmatpush1.bf16.msra.mxu0 0
        %1861 = vmatprep.subr.bf16.mxu0 0
        %1862 = vmatpush1.bf16.msra.mxu0 0
        %1863 = vmatprep.subr.bf16.mxu0 0
        %1864 = vmatpush1.bf16.msra.mxu0 0
        %1865 = vmatprep.subr.bf16.mxu0 0
        %1866 = vmatpush1.bf16.msra.mxu0 0
        %1867 = vmatprep.subr.bf16.mxu0 0
        %1868 = vmatpush1.bf16.msra.mxu0 0
        %1869 = vmatprep.subr.bf16.mxu0 0
        %1870 = vmatpush1.bf16.msra.mxu0 %v1853
        %1871 = vmatprep.subr.bf16.mxu0 0
        %1872 = vmatpush2.bf16.msra.mxu0 0
        %1873 = vmatprep.subr.bf16.mxu0 0
        %1874 = vmatpush2.bf16.msra.mxu0 0
        %1875 = vmatprep.subr.bf16.mxu0 0
        %1876 = vmatpush2.bf16.msra.mxu0 0
        %1877 = vmatprep.subr.bf16.mxu0 0
        %1878 = vmatpush2.bf16.msra.mxu0 0
        %1879 = vmatprep.subr.bf16.mxu0 0
        %1880 = vmatpush2.bf16.msra.mxu0 0
        %1881 = vmatprep.subr.bf16.mxu0 0
        %1882 = vmatpush2.bf16.msra.mxu0 0
        %1883 = vmatprep.subr.bf16.mxu0 0
        %1884 = vmatpush2.bf16.msra.mxu0 0
        %1885 = vmatprep.subr.bf16.mxu0 0
        %1886 = vmatpush2.bf16.msra.mxu0 0
        %1887 = vmatprep.mubr.bf16.mxu0 0
        %1888 = vmatmul.mubr.bf16.gmra.mxu0 %v1850
        %v1889 = vpop.f32.mrf.mxu0
        %v1890 = vadd.f32 0.0, %v1889
        %v1891 = vpop.f32.mrf.mxu0
        %v1892 = vpop.f32.mrf.mxu0
        %v1893 = vpop.f32.mrf.mxu0
        %1894 = vdwg.mxu0
        %1897 = vrot.lane.b32.xlu0 %v1394, 8
        %v1898 = vpop.permute.xlu0 %1897
        %1899 = vrot.lane.b32.xlu0 %v1442, 8
        %v1900 = vpop.permute.xlu0 %1899
        %1905 = vrot.lane.b32.xlu0 %v1618, 16
        %v1906 = vpop.permute.xlu0 %1905
        %1907 = vrot.lane.b32.xlu0 %v1666, 16
        %v1908 = vpop.permute.xlu0 %1907
        %1913 = vrot.lane.b32.xlu0 %v1842, 24
        %v1914 = vpop.permute.xlu0 %1913
        %1915 = vrot.lane.b32.xlu0 %v1890, 24
        %v1916 = vpop.permute.xlu0 %1915
        %v1919 = vsel %vm1002, %v1170, %v1898
        %v1920 = vsel %vm1002, %v1218, %v1900
        %vm1921 = vcmask 130048
        %v1922 = vsel %vm1921, %v1919, %v1906
        %v1923 = vsel %vm1921, %v1920, %v1908
        %vm1924 = vcmask 195584
        %v1925 = vsel %vm1924, %v1922, %v1914
        %v1926 = vsel %vm1924, %v1923, %v1916
        %v1927 = vld [vmem:[%s774] sm:$0xf]
        %v1928 = vld [vmem:[%s774 + $0x4] sm:$0xf]
        %v1929 = vld [vmem:[%s774 + $0x8] sm:$0xf]
        %v1930 = vld [vmem:[%s774 + $0xc] sm:$0xf]
        %v1931 = vpack.c.bf16 %v1926, %v1925
        %v1936 = vunpack.c.l.b16 %v1927
        %v1937 = vunpack.c.l.b16 %v1928
        %v1938 = vunpack.c.l.b16 %v1929
        %v1939 = vunpack.c.l.b16 %v1930
        %v1940 = vpack.c.b16 %v1937, %v1936
        %v1941 = vpack.c.b16 %v1939, %v1938
        %v1945 = vsel %vm885, %v1931, 0
        %1947 = vmatprep.subr.bf16.mxu0 0
        %1948 = vmatpush1.bf16.msra.mxu0 0
        %1949 = vmatprep.subr.bf16.mxu0 0
        %1950 = vmatpush1.bf16.msra.mxu0 0
        %1951 = vmatprep.subr.bf16.mxu0 0
        %1952 = vmatpush1.bf16.msra.mxu0 0
        %1953 = vmatprep.subr.bf16.mxu0 0
        %1954 = vmatpush1.bf16.msra.mxu0 0
        %1955 = vmatprep.subr.bf16.mxu0 0
        %1956 = vmatpush1.bf16.msra.mxu0 0
        %1957 = vmatprep.subr.bf16.mxu0 0
        %1958 = vmatpush1.bf16.msra.mxu0 0
        %1959 = vmatprep.subr.bf16.mxu0 0
        %1960 = vmatpush1.bf16.msra.mxu0 %v1941
        %1961 = vmatprep.subr.bf16.mxu0 0
        %1962 = vmatpush1.bf16.msra.mxu0 %v1940
        %1963 = vmatprep.subr.bf16.mxu0 0
        %1964 = vmatpush2.bf16.msra.mxu0 0
        %1965 = vmatprep.subr.bf16.mxu0 0
        %1966 = vmatpush2.bf16.msra.mxu0 0
        %1967 = vmatprep.subr.bf16.mxu0 0
        %1968 = vmatpush2.bf16.msra.mxu0 0
        %1969 = vmatprep.subr.bf16.mxu0 0
        %1970 = vmatpush2.bf16.msra.mxu0 0
        %1971 = vmatprep.subr.bf16.mxu0 0
        %1972 = vmatpush2.bf16.msra.mxu0 0
        %1973 = vmatprep.subr.bf16.mxu0 0
        %1974 = vmatpush2.bf16.msra.mxu0 0
        %1975 = vmatprep.subr.bf16.mxu0 0
        %1976 = vmatpush2.bf16.msra.mxu0 0
        %1977 = vmatprep.subr.bf16.mxu0 0
        %1978 = vmatpush2.bf16.msra.mxu0 0
        %1979 = vmatprep.mubr.bf16.mxu0 0
        %1980 = vmatmul.mubr.bf16.gmra.mxu0 %v1945
        %v1981 = vpop.f32.mrf.mxu0
        %v1982 = vadd.f32 0.0, %v1981
        %v1983 = vpop.f32.mrf.mxu0
        %v1984 = vpop.f32.mrf.mxu0
        %v1985 = vadd.f32 0.0, %v1984
        %v1986 = vpop.f32.mrf.mxu0
        %1987 = vdwg.mxu0
        %v1988 = vadd.f32 %v881, %v1982
        %v1989 = vadd.f32 %v882, %v1985
        %v1990 = vld [vmem:[%s777] sm:$0x1]
        %v1992 = vlaneseq
        %v1993 = vshrl.u32 %v1992, 7
        %v1994 = vsub.s32 0, %v1993
        %v1995 = vrot.slane %v1990, %v1994
        %v1997 = vadd.f32 %v1988, %v1995
        %v1998 = vadd.f32 %v1989, %v1995
        %v1999 = vld [vmem:[%s780] sm:$0x1]
        %v2000 = vld [vmem:[%s783] sm:$0x1]
        %v2001 = vsel %vm885, %v1997, 0.0
        %2002 = vadd.xlane.f32.xlu0 %v2001
        %v2003 = vpop.xlane.xlu0 %2002
        %v2004 = vsel %vm885, %v1998, 0.0
        %2005 = vadd.xlane.f32.xlu0 %v2004
        %v2006 = vpop.xlane.xlu0 %2005
        %v2007 = vmul.f32 %v2003, %v892
        %v2008 = vmul.f32 %v2006, %v892
        %v2009 = vsub.f32 %v1997, %v2007
        %v2010 = vsub.f32 %v1998, %v2008
        %v2011 = vmul.f32 %v2009, %v2009
        %v2012 = vmul.f32 %v2010, %v2010
        %v2013 = vsel %vm885, %v2011, 0.0
        %2014 = vadd.xlane.f32.xlu0 %v2013
        %v2015 = vpop.xlane.xlu0 %2014
        %v2016 = vsel %vm885, %v2012, 0.0
        %2017 = vadd.xlane.f32.xlu0 %v2016
        %v2018 = vpop.xlane.xlu0 %2017
        %v2019 = vmul.f32 %v2015, %v892
        %v2020 = vmul.f32 %v2018, %v892
        %v2021 = vadd.f32 %v2019, 1e-05
        %v2022 = vadd.f32 %v2020, 1e-05
        %v2023 = vrsqrt.pop %v2021
        %v2024 = vrsqrt.pop %v2022
        %v2025 = vmul.f32 %v2009, %v2023
        %v2026 = vmul.f32 %v2010, %v2024
        %v2028 = vlaneseq
        %v2029 = vshrl.u32 %v2028, 7
        %v2030 = vsub.s32 0, %v2029
        %v2031 = vrot.slane %v1999, %v2030
        %v2033 = vmul.f32 %v2025, %v2031
        %v2034 = vmul.f32 %v2026, %v2031
        %v2036 = vlaneseq
        %v2037 = vshrl.u32 %v2036, 7
        %v2038 = vsub.s32 0, %v2037
        %v2039 = vrot.slane %v2000, %v2038
        %v2041 = vadd.f32 %v2033, %v2039
        %v2042 = vadd.f32 %v2034, %v2039
        %v2043 = vld [vmem:[%s788] sm:$0xf]
        %v2044 = vld [vmem:[%s788 + $0x4] sm:$0xf]
        %v2045 = vld [vmem:[%s788 + $0x8] sm:$0xf]
        %v2046 = vld [vmem:[%s788 + $0xc] sm:$0xf]
        %v2047 = vpack.c.bf16 %v2042, %v2041
        %v2048 = vld [vmem:[%s791] sm:$0x1]
        %v2050 = vlaneseq
        %v2051 = vshrl.u32 %v2050, 7
        %v2052 = vsub.s32 0, %v2051
        %v2053 = vrot.slane %v2048, %v2052
        %v2059 = vunpack.c.l.b16 %v2043
        %v2060 = vunpack.c.l.b16 %v2044
        %v2061 = vunpack.c.l.b16 %v2045
        %v2062 = vunpack.c.l.b16 %v2046
        %v2063 = vpack.c.b16 %v2060, %v2059
        %v2064 = vpack.c.b16 %v2062, %v2061
        %v2068 = vsel %vm885, %v2047, 0
        %2070 = vmatprep.subr.bf16.mxu0 0
        %2071 = vmatpush1.bf16.msra.mxu0 0
        %2072 = vmatprep.subr.bf16.mxu0 0
        %2073 = vmatpush1.bf16.msra.mxu0 0
        %2074 = vmatprep.subr.bf16.mxu0 0
        %2075 = vmatpush1.bf16.msra.mxu0 0
        %2076 = vmatprep.subr.bf16.mxu0 0
        %2077 = vmatpush1.bf16.msra.mxu0 0
        %2078 = vmatprep.subr.bf16.mxu0 0
        %2079 = vmatpush1.bf16.msra.mxu0 0
        %2080 = vmatprep.subr.bf16.mxu0 0
        %2081 = vmatpush1.bf16.msra.mxu0 0
        %2082 = vmatprep.subr.bf16.mxu0 0
        %2083 = vmatpush1.bf16.msra.mxu0 %v2064
        %2084 = vmatprep.subr.bf16.mxu0 0
        %2085 = vmatpush1.bf16.msra.mxu0 %v2063
        %2086 = vmatprep.subr.bf16.mxu0 0
        %2087 = vmatpush2.bf16.msra.mxu0 0
        %2088 = vmatprep.subr.bf16.mxu0 0
        %2089 = vmatpush2.bf16.msra.mxu0 0
        %2090 = vmatprep.subr.bf16.mxu0 0
        %2091 = vmatpush2.bf16.msra.mxu0 0
        %2092 = vmatprep.subr.bf16.mxu0 0
        %2093 = vmatpush2.bf16.msra.mxu0 0
        %2094 = vmatprep.subr.bf16.mxu0 0
        %2095 = vmatpush2.bf16.msra.mxu0 0
        %2096 = vmatprep.subr.bf16.mxu0 0
        %2097 = vmatpush2.bf16.msra.mxu0 0
        %2098 = vmatprep.subr.bf16.mxu0 0
        %2099 = vmatpush2.bf16.msra.mxu0 0
        %2100 = vmatprep.subr.bf16.mxu0 0
        %2101 = vmatpush2.bf16.msra.mxu0 0
        %2102 = vmatprep.mubr.bf16.mxu0 0
        %2103 = vmatmul.mubr.bf16.gmra.mxu0 %v2068
        %v2104 = vpop.f32.mrf.mxu0
        %v2105 = vadd.f32 %v2053, %v2104
        %v2106 = vpop.f32.mrf.mxu0
        %v2107 = vpop.f32.mrf.mxu0
        %v2108 = vadd.f32 %v2053, %v2107
        %v2109 = vpop.f32.mrf.mxu0
        %2110 = vdwg.mxu0
        %v2111 = vmul.f32 %v2105, 0.5
        %v2112 = vmul.f32 %v2108, 0.5
        %v2113 = vmul.f32 %v2105, 0.044715
        %v2114 = vmul.f32 %v2108, 0.044715
        %v2115 = vmul.f32 %v2113, %v2105
        %v2116 = vmul.f32 %v2114, %v2108
        %v2117 = vmul.f32 %v2115, %v2105
        %v2118 = vmul.f32 %v2116, %v2108
        %v2119 = vadd.f32 %v2105, %v2117
        %v2120 = vadd.f32 %v2108, %v2118
        %v2121 = vmul.f32 %v2119, 0.7978846
        %v2122 = vmul.f32 %v2120, 0.7978846
        %v2123 = vtanh.pop %v2121
        %v2124 = vtanh.pop %v2122
        %v2125 = vadd.f32 %v2123, 1.0
        %v2126 = vadd.f32 %v2124, 1.0
        %v2127 = vmul.f32 %v2111, %v2125
        %v2128 = vmul.f32 %v2112, %v2126
        %v2129 = vld [vmem:[%s796] sm:$0xf]
        %v2130 = vld [vmem:[%s796 + $0x4] sm:$0xf]
        %v2131 = vld [vmem:[%s796 + $0x8] sm:$0xf]
        %v2132 = vld [vmem:[%s796 + $0xc] sm:$0xf]
        %v2133 = vld [vmem:[%s796 + $0x10] sm:$0xf]
        %v2134 = vld [vmem:[%s796 + $0x14] sm:$0xf]
        %v2135 = vld [vmem:[%s796 + $0x18] sm:$0xf]
        %v2136 = vld [vmem:[%s796 + $0x1c] sm:$0xf]
        %v2137 = vld [vmem:[%s796 + $0x20] sm:$0xf]
        %v2138 = vld [vmem:[%s796 + $0x24] sm:$0xf]
        %v2139 = vld [vmem:[%s796 + $0x28] sm:$0xf]
        %v2140 = vld [vmem:[%s796 + $0x2c] sm:$0xf]
        %v2141 = vld [vmem:[%s796 + $0x30] sm:$0xf]
        %v2142 = vld [vmem:[%s796 + $0x34] sm:$0xf]
        %v2143 = vld [vmem:[%s796 + $0x38] sm:$0xf]
        %v2144 = vld [vmem:[%s796 + $0x3c] sm:$0xf]
        %v2145 = vpack.c.bf16 %v2128, %v2127
        %v2162 = vunpack.c.l.b16 %v2129
        %v2163 = vunpack.c.l.b16 %v2130
        %v2164 = vunpack.c.l.b16 %v2131
        %v2165 = vunpack.c.l.b16 %v2132
        %v2166 = vunpack.c.l.b16 %v2133
        %v2167 = vunpack.c.l.b16 %v2134
        %v2168 = vunpack.c.l.b16 %v2135
        %v2169 = vunpack.c.l.b16 %v2136
        %v2170 = vunpack.c.l.b16 %v2137
        %v2171 = vunpack.c.l.b16 %v2138
        %v2172 = vunpack.c.l.b16 %v2139
        %v2173 = vunpack.c.l.b16 %v2140
        %v2174 = vunpack.c.l.b16 %v2141
        %v2175 = vunpack.c.l.b16 %v2142
        %v2176 = vunpack.c.l.b16 %v2143
        %v2177 = vunpack.c.l.b16 %v2144
        %v2178 = vpack.c.b16 %v2163, %v2162
        %v2179 = vpack.c.b16 %v2165, %v2164
        %v2180 = vpack.c.b16 %v2167, %v2166
        %v2181 = vpack.c.b16 %v2169, %v2168
        %v2182 = vpack.c.b16 %v2171, %v2170
        %v2183 = vpack.c.b16 %v2173, %v2172
        %v2184 = vpack.c.b16 %v2175, %v2174
        %v2185 = vpack.c.b16 %v2177, %v2176
        %2194 = vmatprep.subr.bf16.mxu0 0
        %2195 = vmatpush1.bf16.msra.mxu0 %v2185
        %2196 = vmatprep.subr.bf16.mxu0 0
        %2197 = vmatpush1.bf16.msra.mxu0 %v2184
        %2198 = vmatprep.subr.bf16.mxu0 0
        %2199 = vmatpush1.bf16.msra.mxu0 %v2183
        %2200 = vmatprep.subr.bf16.mxu0 0
        %2201 = vmatpush1.bf16.msra.mxu0 %v2182
        %2202 = vmatprep.subr.bf16.mxu0 0
        %2203 = vmatpush1.bf16.msra.mxu0 %v2181
        %2204 = vmatprep.subr.bf16.mxu0 0
        %2205 = vmatpush1.bf16.msra.mxu0 %v2180
        %2206 = vmatprep.subr.bf16.mxu0 0
        %2207 = vmatpush1.bf16.msra.mxu0 %v2179
        %2208 = vmatprep.subr.bf16.mxu0 0
        %2209 = vmatpush1.bf16.msra.mxu0 %v2178
        %2210 = vmatprep.subr.bf16.mxu0 0
        %2211 = vmatpush2.bf16.msra.mxu0 0
        %2212 = vmatprep.subr.bf16.mxu0 0
        %2213 = vmatpush2.bf16.msra.mxu0 0
        %2214 = vmatprep.subr.bf16.mxu0 0
        %2215 = vmatpush2.bf16.msra.mxu0 0
        %2216 = vmatprep.subr.bf16.mxu0 0
        %2217 = vmatpush2.bf16.msra.mxu0 0
        %2218 = vmatprep.subr.bf16.mxu0 0
        %2219 = vmatpush2.bf16.msra.mxu0 0
        %2220 = vmatprep.subr.bf16.mxu0 0
        %2221 = vmatpush2.bf16.msra.mxu0 0
        %2222 = vmatprep.subr.bf16.mxu0 0
        %2223 = vmatpush2.bf16.msra.mxu0 0
        %2224 = vmatprep.subr.bf16.mxu0 0
        %2225 = vmatpush2.bf16.msra.mxu0 0
        %2226 = vmatprep.mubr.bf16.mxu0 0
        %2227 = vmatmul.mubr.bf16.gmra.mxu0 %v2145
        %v2228 = vpop.f32.mrf.mxu0
        %v2229 = vadd.f32 0.0, %v2228
        %v2230 = vpop.f32.mrf.mxu0
        %v2231 = vpop.f32.mrf.mxu0
        %v2232 = vadd.f32 0.0, %v2231
        %v2233 = vpop.f32.mrf.mxu0
        %2234 = vdwg.mxu0
        %v2235 = vadd.f32 %v1997, %v2229
        %v2236 = vadd.f32 %v1998, %v2232
        %v2237 = vld [vmem:[%s799] sm:$0x1]
        %v2239 = vlaneseq
        %v2240 = vshrl.u32 %v2239, 7
        %v2241 = vsub.s32 0, %v2240
        %v2242 = vrot.slane %v2237, %v2241
        %v2244 = vadd.f32 %v2235, %v2242
        %v2245 = vadd.f32 %v2236, %v2242
        %2246 = vst.msk [vmem:[#allocation2] sm:$0xff] %vm885, %v2244
        %2247 = vst.msk [vmem:[#allocation2 + $0x8] sm:$0xff] %vm885, %v2245
        %p2248 = scmp.eq.s32.totalorder %s36, 1
        // Predicated region
        $region101: #{tpu_custom_call.1} parent=95 // pred_check
          %p2249 = pneg %p2248
        $region102: #{tpu_custom_call.1} parent=95 // pred_check_branch
          %2251 = sbr.rel (%p2249) target = $region104
        $region103: #{tpu_custom_call.1} parent=95 // pred_region
          %v2252 = vld [vmem:[%s16] sm:$0x1]
          %v2253 = vld [vmem:[%s17] sm:$0x1]
          %v2254 = vsel %vm885, %v2244, 0.0
          %2255 = vadd.xlane.f32.xlu0 %v2254
          %v2256 = vpop.xlane.xlu0 %2255
          %v2257 = vsel %vm885, %v2245, 0.0
          %2258 = vadd.xlane.f32.xlu0 %v2257
          %v2259 = vpop.xlane.xlu0 %2258
          %v2260 = vmul.f32 %v2256, %v892
          %v2261 = vmul.f32 %v2259, %v892
          %v2262 = vsub.f32 %v2244, %v2260
          %v2263 = vsub.f32 %v2245, %v2261
          %v2264 = vmul.f32 %v2262, %v2262
          %v2265 = vmul.f32 %v2263, %v2263
          %v2266 = vsel %vm885, %v2264, 0.0
          %2267 = vadd.xlane.f32.xlu0 %v2266
          %v2268 = vpop.xlane.xlu0 %2267
          %v2269 = vsel %vm885, %v2265, 0.0
          %2270 = vadd.xlane.f32.xlu0 %v2269
          %v2271 = vpop.xlane.xlu0 %2270
          %v2272 = vmul.f32 %v2268, %v892
          %v2273 = vmul.f32 %v2271, %v892
          %v2274 = vadd.f32 %v2272, 1e-05
          %v2275 = vadd.f32 %v2273, 1e-05
          %v2276 = vrsqrt.pop %v2274
          %v2277 = vrsqrt.pop %v2275
          %v2278 = vmul.f32 %v2262, %v2276
          %v2279 = vmul.f32 %v2263, %v2277
          %v2281 = vlaneseq
          %v2282 = vshrl.u32 %v2281, 7
          %v2283 = vsub.s32 0, %v2282
          %v2284 = vrot.slane %v2252, %v2283
          %v2286 = vmul.f32 %v2278, %v2284
          %v2287 = vmul.f32 %v2279, %v2284
          %v2289 = vlaneseq
          %v2290 = vshrl.u32 %v2289, 7
          %v2291 = vsub.s32 0, %v2290
          %v2292 = vrot.slane %v2253, %v2291
          %v2294 = vadd.f32 %v2286, %v2292
          %v2295 = vadd.f32 %v2287, %v2292
          %v2296 = vld [vmem:[%s18] sm:$0xf]
          %v2297 = vld [vmem:[%s18 + $0x4] sm:$0xf]
          %v2298 = vld [vmem:[%s18 + $0x8] sm:$0xf]
          %v2299 = vld [vmem:[%s18 + $0xc] sm:$0xf]
          %v2300 = vpack.c.bf16 %v2295, %v2294
          %v2305 = vunpack.c.l.b16 %v2296
          %v2306 = vunpack.c.l.b16 %v2297
          %v2307 = vunpack.c.l.b16 %v2298
          %v2308 = vunpack.c.l.b16 %v2299
          %v2309 = vpack.c.b16 %v2306, %v2305
          %v2310 = vpack.c.b16 %v2308, %v2307
          %v2314 = vsel %vm885, %v2300, 0
          %2316 = vmatprep.subr.bf16.mxu0 0
          %2317 = vmatpush1.bf16.msra.mxu0 0
          %2318 = vmatprep.subr.bf16.mxu0 0
          %2319 = vmatpush1.bf16.msra.mxu0 0
          %2320 = vmatprep.subr.bf16.mxu0 0
          %2321 = vmatpush1.bf16.msra.mxu0 0
          %2322 = vmatprep.subr.bf16.mxu0 0
          %2323 = vmatpush1.bf16.msra.mxu0 0
          %2324 = vmatprep.subr.bf16.mxu0 0
          %2325 = vmatpush1.bf16.msra.mxu0 0
          %2326 = vmatprep.subr.bf16.mxu0 0
          %2327 = vmatpush1.bf16.msra.mxu0 0
          %2328 = vmatprep.subr.bf16.mxu0 0
          %2329 = vmatpush1.bf16.msra.mxu0 %v2310
          %2330 = vmatprep.subr.bf16.mxu0 0
          %2331 = vmatpush1.bf16.msra.mxu0 %v2309
          %2332 = vmatprep.subr.bf16.mxu0 0
          %2333 = vmatpush2.bf16.msra.mxu0 0
          %2334 = vmatprep.subr.bf16.mxu0 0
          %2335 = vmatpush2.bf16.msra.mxu0 0
          %2336 = vmatprep.subr.bf16.mxu0 0
          %2337 = vmatpush2.bf16.msra.mxu0 0
          %2338 = vmatprep.subr.bf16.mxu0 0
          %2339 = vmatpush2.bf16.msra.mxu0 0
          %2340 = vmatprep.subr.bf16.mxu0 0
          %2341 = vmatpush2.bf16.msra.mxu0 0
          %2342 = vmatprep.subr.bf16.mxu0 0
          %2343 = vmatpush2.bf16.msra.mxu0 0
          %2344 = vmatprep.subr.bf16.mxu0 0
          %2345 = vmatpush2.bf16.msra.mxu0 0
          %2346 = vmatprep.subr.bf16.mxu0 0
          %2347 = vmatpush2.bf16.msra.mxu0 0
          %2348 = vmatprep.mubr.bf16.mxu0 0
          %2349 = vmatmul.mubr.bf16.gmra.mxu0 %v2314
          %v2350 = vpop.f32.mrf.mxu0
          %v2351 = vadd.f32 0.0, %v2350
          %v2352 = vpop.f32.mrf.mxu0
          %v2353 = vpop.f32.mrf.mxu0
          %v2354 = vadd.f32 0.0, %v2353
          %v2355 = vpop.f32.mrf.mxu0
          %2356 = vdwg.mxu0
          %2357 = vst [vmem:[#allocation3] sm:$0xff] %v2351
          %2358 = vst [vmem:[#allocation3 + $0x8] sm:$0xff] %v2354
        $region104: #{tpu_custom_call.1} parent=95 // pred_fallthru
          _
        // Predicated region
        $region105: #{tpu_custom_call.1} parent=95 // pred_check
          %p2359 = pneg %p525
        $region106: #{tpu_custom_call.1} parent=95 // pred_check_branch
          %2361 = sbr.rel (%p2359) target = $region108
        $region107: #{tpu_custom_call.1} parent=95 // pred_region
          %s2362 = smul.u32 2, %s35
          %s2364 = ssub.s32 256, 256
          %2365 = vsyncadd [#allocation4], %s2364
          %s2366 = smul.addr %s2362, 128
          %s2367 = scalar_lea.hbm %s19, %s2366
          %s2368 = sshll.u32 [#allocation3], 4
          %s2369 = int_to_ptr.vmem [resolvable:$true] %s2368
          %2374 = dma.vmem_to_hbm [thread:$0]  %s2369, 256, %s2367, [#allocation4], 128, 128, 8
        $region108: #{tpu_custom_call.1} parent=95 // pred_fallthru
          _
        // Predicated region
        $region109: #{tpu_custom_call.1} parent=95 // pred_check
          %p2375 = pneg %p525
        $region110: #{tpu_custom_call.1} parent=95 // pred_check_branch
          %2377 = sbr.rel (%p2375) target = $region112
        $region111: #{tpu_custom_call.1} parent=95 // pred_region
          %2378 = dma.done [#allocation4], 256
        $region112: #{tpu_custom_call.1} parent=95 // pred_fallthru
          _
      $region96: #{tpu_custom_call.1} parent=5 // pred_fallthru
        _
      %p2379 = scmp.le.s32.totalorder 2, %s26
      // Predicated region
      $region113: #{tpu_custom_call.1} parent=5 // pred_check
        %p2380 = pneg %p2379
      $region114: #{tpu_custom_call.1} parent=5 // pred_check_branch
        %2382 = sbr.rel (%p2380) target = $region116
      $region115: #{tpu_custom_call.1} parent=5 // pred_region
        %s2383 = ssub.s32 %s26, 2
      $region116: #{tpu_custom_call.1} parent=5 // pred_fallthru
        _
    $region6: #{tpu_custom_call.1} parent=1 // loop_footer
      %s30 = sadd.s32 1, %s26
    $region7: #{tpu_custom_call.1} parent=1 // loop_footer_branch
      %25 = sbr.rel target = $region3
    $region8: #{tpu_custom_call.1} parent=1 // loop_exit
      _
    %2384 = vsyncpa [#allocation4], 1
    %s2385 = scalar_lea.sflag [#allocation4], 1
    %2386 = vsyncpa %s2385, 1

</llo_original>
